<compile_context>
chip_gen: v5e
topology: v5e:2x2
jax: 0.10.0
libtpu: 0.0.40
codegen_flags: <defaults>
</compile_context>

<pallas_src>
import functools

import numpy as np
import jax
import jax.numpy as jnp
from jax import lax
from jax.experimental import pallas as pl
from jax.experimental.pallas import tpu as pltpu


# ---------------------------------------------------------------------------
# Single fused kernel: entire forward pass, VMEM-resident.
# ---------------------------------------------------------------------------
def _fused_forward_kernel(
    audio_ref, video_ref,
    a_sel1, a_g1, a_b1, a_sel2, a_g2, a_b2, a_sel3, a_g3, a_b3, a_fcw, a_fcb,
    v_sel1, v_g1, v_b1, v_sel2, v_g2, v_b2, v_sel3, v_g3, v_b3, v_fcw, v_fcb,
    w1a, w1v, b1, w2d, b2d, w2a, b2a,
    out_ref,
):
    f32, bf16 = jnp.float32, jnp.bfloat16

    def conv_block(act, sel_ref, g_ref, b_ref):
        # act: (Rin, L) bf16, rows are (batch, chan[, height])-major, lanes = spatial.
        # sel: (L, 4*Lo) constant 0/1 tap selection (in-kernel "im2col" on lanes).
        # g:   (4, Rout, Rin) per-tap channel/row mixing (weights x I_batch).
        # b:   (Rout, 1) f32 bias column.
        lo = sel_ref.shape[1] // g_ref.shape[0]
        taps = jnp.dot(act, sel_ref[...], preferred_element_type=f32).astype(bf16)
        acc = b_ref[...]                                       # broadcasts on lanes
        for k in range(g_ref.shape[0]):
            acc = acc + jnp.dot(g_ref[k], taps[:, k * lo:(k + 1) * lo],
                                preferred_element_type=f32)
        return jnp.maximum(acc, 0.0).astype(bf16)              # ReLU, f32 epilogue

    # ----------------------------- audio branch -----------------------------
    a = audio_ref[...].astype(bf16)                            # (B, L)      rows = b
    a = conv_block(a, a_sel1, a_g1, a_b1)                      # (B*H, L/2)
    a = conv_block(a, a_sel2, a_g2, a_b2)                      # (B*H, L/4)
    a = conv_block(a, a_sel3, a_g3, a_b3)                      # (B,   L/8)  Cout=1
    audio_feats = jnp.dot(a, a_fcw[...],
                          preferred_element_type=f32) + a_fcb[...]      # (B, F)

    # ----------------------------- video branch -----------------------------
    v = video_ref[...].astype(bf16)                            # (B*C*H, W) rows=(b,c,h)
    v = conv_block(v, v_sel1, v_g1, v_b1)                      # (B*Hc*H/2, W/2)
    v = conv_block(v, v_sel2, v_g2, v_b2)                      # (B*Hc*H/4, W/4)
    v = conv_block(v, v_sel3, v_g3, v_b3)                      # (Ho*B, Wo) rows=(ho,b)
    bsz = audio_ref.shape[0]
    wo = v.shape[1]
    n_ho = v.shape[0] // bsz
    vfw = v_fcw[...]                                           # (Ho*Wo, F) bf16
    video_feats = v_fcb[...]                                   # (1, F) f32
    for ho in range(n_ho):                                     # Flatten+Linear folded
        video_feats = video_feats + jnp.dot(
            v[ho * bsz:(ho + 1) * bsz, :], vfw[ho * wo:(ho + 1) * wo, :],
            preferred_element_type=f32)                        # (B, F)

    # --------------- fused decoder + asr head (concat folded) ---------------
    af = audio_feats.astype(bf16)
    vf = video_feats.astype(bf16)
    h = (jnp.dot(af, w1a[...], preferred_element_type=f32)
         + jnp.dot(vf, w1v[...], preferred_element_type=f32)
         + b1[...])
    h = jnp.maximum(h, 0.0).astype(bf16)                       # (B, 2F)
    fdim = w1a.shape[0]
    pred = jnp.dot(h[:, :fdim], w2d[...], preferred_element_type=f32) + b2d[...]
    tok = jnp.dot(h[:, fdim:], w2a[...], preferred_element_type=f32) + b2a[...]
    nd = pred.shape[1]
    out_ref[:, :nd] = pred                                     # lane-dense slab
    out_ref[:, nd:] = tok


# ---------------------------------------------------------------------------
# Wrapper: one pallas_call, whole arrays in VMEM, no grid.
# ---------------------------------------------------------------------------
_PREP_ORDER = (
    "a_sel1", "a_g1", "a_b1", "a_sel2", "a_g2", "a_b2", "a_sel3", "a_g3", "a_b3",
    "a_fcw", "a_fcb",
    "v_sel1", "v_g1", "v_b1", "v_sel2", "v_g2", "v_b2", "v_sel3", "v_g3", "v_b3",
    "v_fcw", "v_fcb",
    "w1a", "w1v", "b1", "w2d", "b2d", "w2a", "b2a",
)


def forward(prepped, mix_audio, s_video, s_audio_length, *, n_tokens):
    B = mix_audio.shape[0]
    n_audio = prepped["b2d"].shape[1]
    n_tok_out = prepped["b2a"].shape[1]
    _, C, Hv, Wv = s_video.shape
    video_in = s_video.reshape(B * C * Hv, Wv)          # rows=(b,c,h), lanes=w (bitcast)

    args = [mix_audio, video_in] + [prepped[k] for k in _PREP_ORDER]
    bytes_acc = sum(int(np.prod(a.shape)) * a.dtype.itemsize for a in args)
    bytes_acc += B * (n_audio + n_tok_out) * 4
    vmem = pl.BlockSpec(memory_space=pltpu.MemorySpace.VMEM)

    slab = pl.pallas_call(
        _fused_forward_kernel,
        out_shape=jax.ShapeDtypeStruct((B, n_audio + n_tok_out), jnp.float32),
        in_specs=[vmem] * len(args),
        out_specs=vmem,
        cost_estimate=pl.CostEstimate(flops=12_000_000, transcendentals=0,
                                      bytes_accessed=bytes_acc),
    )(*args)

    return {
        "predicted_audio": slab[:, :n_audio],
        "tokens_logits": slab[:, n_audio:].reshape(B, -1, n_tokens),
        "s_audio_length": s_audio_length // 128,
    }


# ---------------------------------------------------------------------------
# Parameter construction (deterministic, synthetic, "math" orientation)
# ---------------------------------------------------------------------------
def init_params(key, n_audio_feats, n_video_feats, n_video_channels,
                n_hidden_channels, n_tokens, fc_hidden):
    keys = jax.random.split(key, 32)
    k = iter(range(32))

    def w(shape):
        return jax.random.normal(keys[next(k)], shape, jnp.float32) * 0.05

    def b(n):
        return jax.random.normal(keys[next(k)], (n,), jnp.float32) * 0.01

    H = n_hidden_channels
    p = {}
    # audio_net
    p["a_w1"], p["a_b1"] = w((H, 1, 4)), b(H)
    p["a_w2"], p["a_b2"] = w((H, H, 4)), b(H)
    p["a_w3"], p["a_b3"] = w((1, H, 4)), b(1)
    p["a_fc_w"], p["a_fc_b"] = w((n_audio_feats // 8, fc_hidden)), b(fc_hidden)
    # video_net
    C = n_video_channels
    p["v_w1"], p["v_b1"] = w((H, C, 4, 4)), b(H)
    p["v_w2"], p["v_b2"] = w((H, H, 4, 4)), b(H)
    p["v_w3"], p["v_b3"] = w((1, H, 4, 4)), b(1)
    p["v_fc_w"], p["v_fc_b"] = w(((n_video_feats // 8) ** 2, fc_hidden)), b(fc_hidden)
    # decoder
    p["d_w1"], p["d_b1"] = w((2 * fc_hidden, fc_hidden)), b(fc_hidden)
    p["d_w2"], p["d_b2"] = w((fc_hidden, n_audio_feats)), b(n_audio_feats)
    # asr_net
    asr_out = n_audio_feats * n_tokens // 128
    p["asr_w1"], p["asr_b1"] = w((2 * fc_hidden, fc_hidden)), b(fc_hidden)
    p["asr_w2"], p["asr_b2"] = w((fc_hidden, asr_out)), b(asr_out)
    return p


def prepare_params(params, batch_size, n_audio_feats, n_video_channels, n_video_feats):
    """One-time prep: fold the stride-2/pad-1 patch extraction and conv weights
    into constant matmul operands, pre-cast to bf16, pre-concatenate the head."""
    B = batch_size
    p = {k: np.asarray(v, np.float32) for k, v in params.items()}
    bf16, f32 = jnp.bfloat16, jnp.float32

    def sel(L):
        # (L, 4*Lo): column k*Lo+o selects padded input position 2o+k-1.
        Lo = L // 2
        S = np.zeros((L, 4 * Lo), np.float32)
        for k in range(4):
            for o in range(Lo):
                src = 2 * o + k - 1
                if 0 <= src < L:
                    S[src, k * Lo + o] = 1.0
        return jnp.asarray(S, bf16)

    def mix_1d(W):
        # (4, B*Cout, B*Cin): per-tap channel mixing, block-diag over batch.
        Cout, Cin, K = W.shape
        G = np.zeros((K, B * Cout, B * Cin), np.float32)
        for k in range(K):
            for b in range(B):
                G[k, b * Cout:(b + 1) * Cout, b * Cin:(b + 1) * Cin] = W[:, :, k]
        return jnp.asarray(G, bf16)

    def bias_rows(bvec, reps_inner=1):
        # bias column for rows ordered (b, co[, ho]): value = bvec[co].
        return jnp.asarray(np.tile(np.repeat(bvec, reps_inner), B)[:, None], np.float32)

    def mix_2d(W, h_in, rows_hb=False):
        # (4(kw), Rout, B*Cin*Hin): folds kh row-selection + channel mixing.
        Cout, Cin, KH, KW = W.shape
        h_out = h_in // 2
        G = np.zeros((KW, B * Cout * h_out, B * Cin * h_in), np.float32)
        for kw in range(KW):
            for b in range(B):
                for co in range(Cout):
                    for ho in range(h_out):
                        r = ho * B + b if rows_hb else (b * Cout + co) * h_out + ho
                        for kh in range(KH):
                            h = 2 * ho + kh - 1
                            if 0 <= h < h_in:
                                for ci in range(Cin):
                                    G[kw, r, (b * Cin + ci) * h_in + h] = W[co, ci, kh, kw]
        return jnp.asarray(G, bf16)

    La, Hv = n_audio_feats, n_video_feats
    F = p["d_w1"].shape[1]

    return {
        # audio branch
        "a_sel1": sel(La), "a_g1": mix_1d(p["a_w1"]), "a_b1": bias_rows(p["a_b1"]),
        "a_sel2": sel(La // 2), "a_g2": mix_1d(p["a_w2"]), "a_b2": bias_rows(p["a_b2"]),
        "a_sel3": sel(La // 4), "a_g3": mix_1d(p["a_w3"]), "a_b3": bias_rows(p["a_b3"]),
        "a_fcw": jnp.asarray(p["a_fc_w"], bf16),
        "a_fcb": jnp.asarray(p["a_fc_b"][None, :], f32),
        # video branch
        "v_sel1": sel(Hv), "v_g1": mix_2d(p["v_w1"], Hv),
        "v_b1": bias_rows(p["v_b1"], Hv // 2),
        "v_sel2": sel(Hv // 2), "v_g2": mix_2d(p["v_w2"], Hv // 2),
        "v_b2": bias_rows(p["v_b2"], Hv // 4),
        "v_sel3": sel(Hv // 4), "v_g3": mix_2d(p["v_w3"], Hv // 4, rows_hb=True),
        "v_b3": jnp.asarray(np.full((B * (Hv // 8), 1), p["v_b3"][0], np.float32)),
        "v_fcw": jnp.asarray(p["v_fc_w"], bf16),
        "v_fcb": jnp.asarray(p["v_fc_b"][None, :], f32),
        # fused decoder + asr head (feats concat folded into split weights)
        "w1a": jnp.asarray(np.concatenate([p["d_w1"][:F], p["asr_w1"][:F]], axis=1), bf16),
        "w1v": jnp.asarray(np.concatenate([p["d_w1"][F:], p["asr_w1"][F:]], axis=1), bf16),
        "b1": jnp.asarray(np.concatenate([p["d_b1"], p["asr_b1"]])[None, :], f32),
        "w2d": jnp.asarray(p["d_w2"], bf16),
        "b2d": jnp.asarray(p["d_b2"][None, :], f32),
        "w2a": jnp.asarray(p["asr_w2"], bf16),
        "b2a": jnp.asarray(p["asr_b2"][None, :], f32),
    }


# ---------------------------------------------------------------------------
# Pure-JAX f32 reference (for the in-script correctness check)
# ---------------------------------------------------------------------------
def reference_forward(params, mix_audio, s_video, n_tokens):
    def conv1d(x, w, b):
        y = lax.conv_general_dilated(x, w, window_strides=(2,), padding=((1, 1),),
                                     dimension_numbers=("NCH", "OIH", "NCH"))
        return jax.nn.relu(y + b[None, :, None])

    def conv2d(x, w, b):
        y = lax.conv_general_dilated(x, w, window_strides=(2, 2),
                                     padding=((1, 1), (1, 1)),
                                     dimension_numbers=("NCHW", "OIHW", "NCHW"))
        return jax.nn.relu(y + b[None, :, None, None])

    a = mix_audio[:, None, :]
    a = conv1d(a, params["a_w1"], params["a_b1"])
    a = conv1d(a, params["a_w2"], params["a_b2"])
    a = conv1d(a, params["a_w3"], params["a_b3"])
    audio_feats = a.reshape(a.shape[0], -1) @ params["a_fc_w"] + params["a_fc_b"]

    v = conv2d(s_video, params["v_w1"], params["v_b1"])
    v = conv2d(v, params["v_w2"], params["v_b2"])
    v = conv2d(v, params["v_w3"], params["v_b3"])
    video_feats = v.reshape(v.shape[0], -1) @ params["v_fc_w"] + params["v_fc_b"]

    feats = jnp.concatenate([audio_feats, video_feats], axis=-1)
    hd = jax.nn.relu(feats @ params["d_w1"] + params["d_b1"])
    predicted = hd @ params["d_w2"] + params["d_b2"]
    ha = jax.nn.relu(feats @ params["asr_w1"] + params["asr_b1"])
    tokens = ha @ params["asr_w2"] + params["asr_b2"]
    return predicted, tokens.reshape(tokens.shape[0], -1, n_tokens)


# ---------------------------------------------------------------------------
if __name__ == "__main__":
    B = 2
    n_audio_feats = 256          # divisible by 8 and 128
    n_video_feats = 32
    n_video_channels = 3
    n_hidden_channels = 8
    n_tokens = 32
    fc_hidden = 128

    key = jax.random.PRNGKey(0)
    kp, ka, kv = jax.random.split(key, 3)

    params = init_params(kp, n_audio_feats, n_video_feats, n_video_channels,
                         n_hidden_channels, n_tokens, fc_hidden)
    prepped = prepare_params(params, B, n_audio_feats, n_video_channels, n_video_feats)

    mix_audio = jax.random.normal(ka, (B, n_audio_feats), jnp.float32)
    s_video = jax.random.normal(
        kv, (B, n_video_channels, n_video_feats, n_video_feats), jnp.float32)
    s_audio_length = jnp.array([256, 200], dtype=jnp.int32)

    fwd = jax.jit(functools.partial(forward, n_tokens=n_tokens))
    out = fwd(prepped, mix_audio, s_video, s_audio_length)
    out = jax.tree_util.tree_map(jax.block_until_ready, out)

    assert out["predicted_audio"].shape == (B, n_audio_feats)
    assert out["tokens_logits"].shape == (B, n_audio_feats // 128, n_tokens)
    assert out["s_audio_length"].shape == (B,)

    # correctness vs. f32 reference (kernel uses bf16 MXU operands -> loose tol)
    ref_pred, ref_tok = reference_forward(params, mix_audio, s_video, n_tokens)
    np.testing.assert_allclose(np.asarray(out["predicted_audio"]),
                               np.asarray(ref_pred), rtol=0, atol=5e-2)
    np.testing.assert_allclose(np.asarray(out["tokens_logits"]),
                               np.asarray(ref_tok), rtol=0, atol=5e-2)

    print("KERNEL_OK")
</pallas_src>

<mosaic_0001>
module attributes {stable_mosaic.version = 11 : i64} {
  func.func @_fused_forward_kernel(%arg0: memref<2x256xf32, #tpu.memory_space<vmem>>, %arg1: memref<192x32xf32, #tpu.memory_space<vmem>>, %arg2: memref<256x512xbf16, #tpu.memory_space<vmem>>, %arg3: memref<4x16x2xbf16, #tpu.memory_space<vmem>>, %arg4: memref<16x1xf32, #tpu.memory_space<vmem>>, %arg5: memref<128x256xbf16, #tpu.memory_space<vmem>>, %arg6: memref<4x16x16xbf16, #tpu.memory_space<vmem>>, %arg7: memref<16x1xf32, #tpu.memory_space<vmem>>, %arg8: memref<64x128xbf16, #tpu.memory_space<vmem>>, %arg9: memref<4x2x16xbf16, #tpu.memory_space<vmem>>, %arg10: memref<2x1xf32, #tpu.memory_space<vmem>>, %arg11: memref<32x128xbf16, #tpu.memory_space<vmem>>, %arg12: memref<1x128xf32, #tpu.memory_space<vmem>>, %arg13: memref<32x64xbf16, #tpu.memory_space<vmem>>, %arg14: memref<4x256x192xbf16, #tpu.memory_space<vmem>>, %arg15: memref<256x1xf32, #tpu.memory_space<vmem>>, %arg16: memref<16x32xbf16, #tpu.memory_space<vmem>>, %arg17: memref<4x128x256xbf16, #tpu.memory_space<vmem>>, %arg18: memref<128x1xf32, #tpu.memory_space<vmem>>, %arg19: memref<8x16xbf16, #tpu.memory_space<vmem>>, %arg20: memref<4x8x128xbf16, #tpu.memory_space<vmem>>, %arg21: memref<8x1xf32, #tpu.memory_space<vmem>>, %arg22: memref<16x128xbf16, #tpu.memory_space<vmem>>, %arg23: memref<1x128xf32, #tpu.memory_space<vmem>>, %arg24: memref<128x256xbf16, #tpu.memory_space<vmem>>, %arg25: memref<128x256xbf16, #tpu.memory_space<vmem>>, %arg26: memref<1x256xf32, #tpu.memory_space<vmem>>, %arg27: memref<128x256xbf16, #tpu.memory_space<vmem>>, %arg28: memref<1x256xf32, #tpu.memory_space<vmem>>, %arg29: memref<128x64xbf16, #tpu.memory_space<vmem>>, %arg30: memref<1x64xf32, #tpu.memory_space<vmem>>, %arg31: memref<2x320xf32, #tpu.memory_space<vmem>>) attributes {dimension_semantics = [], scalar_prefetch = 0 : i64, scratch_operands = 0 : i64, tpu.core_type = #tpu.core_type<tc>} {
    %c0 = arith.constant 0 : index
    %c0_0 = arith.constant 0 : index
    %0 = vector.load %arg0[%c0, %c0_0] : memref<2x256xf32, #tpu.memory_space<vmem>>, vector<2x256xf32>
    %1 = arith.truncf %0 : vector<2x256xf32> to vector<2x256xbf16>
    %c0_1 = arith.constant 0 : index
    %c0_2 = arith.constant 0 : index
    %2 = vector.load %arg2[%c0_1, %c0_2] : memref<256x512xbf16, #tpu.memory_space<vmem>>, vector<256x512xbf16>
    %cst = arith.constant dense<0.000000e+00> : vector<2x512xf32>
    %3 = tpu.matmul %1, %2, %cst {dimension_numbers = #tpu.dot_dimension_numbers<[1], [0], [0], [1], [0, 0, 1, 1], [], []>} : vector<2x256xbf16>, vector<256x512xbf16>, vector<2x512xf32> -> vector<2x512xf32>
    %4 = arith.truncf %3 : vector<2x512xf32> to vector<2x512xbf16>
    %c0_3 = arith.constant 0 : index
    %c0_4 = arith.constant 0 : index
    %5 = vector.load %arg4[%c0_3, %c0_4] : memref<16x1xf32, #tpu.memory_space<vmem>>, vector<16x1xf32>
    %c0_5 = arith.constant 0 : index
    %c0_6 = arith.constant 0 : index
    %c0_7 = arith.constant 0 : index
    %6 = vector.load %arg3[%c0_5, %c0_6, %c0_7] : memref<4x16x2xbf16, #tpu.memory_space<vmem>>, vector<1x16x2xbf16>
    %7 = vector.shape_cast %6 : vector<1x16x2xbf16> to vector<16x2xbf16>
    %8 = vector.extract_strided_slice %4 {offsets = [0, 0], sizes = [2, 128], strides = [1, 1]} : vector<2x512xbf16> to vector<2x128xbf16>
    %cst_8 = arith.constant dense<0.000000e+00> : vector<16x128xf32>
    %9 = tpu.matmul %7, %8, %cst_8 {dimension_numbers = #tpu.dot_dimension_numbers<[1], [0], [0], [1], [0, 0, 1, 1], [], []>} : vector<16x2xbf16>, vector<2x128xbf16>, vector<16x128xf32> -> vector<16x128xf32>
    %10 = vector.broadcast %5 : vector<16x1xf32> to vector<16x128xf32>
    %11 = arith.addf %10, %9 : vector<16x128xf32>
    %c1 = arith.constant 1 : index
    %c0_9 = arith.constant 0 : index
    %c0_10 = arith.constant 0 : index
    %12 = vector.load %arg3[%c1, %c0_9, %c0_10] : memref<4x16x2xbf16, #tpu.memory_space<vmem>>, vector<1x16x2xbf16>
    %13 = vector.shape_cast %12 : vector<1x16x2xbf16> to vector<16x2xbf16>
    %14 = vector.extract_strided_slice %4 {offsets = [0, 128], sizes = [2, 128], strides = [1, 1]} : vector<2x512xbf16> to vector<2x128xbf16>
    %cst_11 = arith.constant dense<0.000000e+00> : vector<16x128xf32>
    %15 = tpu.matmul %13, %14, %cst_11 {dimension_numbers = #tpu.dot_dimension_numbers<[1], [0], [0], [1], [0, 0, 1, 1], [], []>} : vector<16x2xbf16>, vector<2x128xbf16>, vector<16x128xf32> -> vector<16x128xf32>
    %16 = arith.addf %11, %15 : vector<16x128xf32>
    %c2 = arith.constant 2 : index
    %c0_12 = arith.constant 0 : index
    %c0_13 = arith.constant 0 : index
    %17 = vector.load %arg3[%c2, %c0_12, %c0_13] : memref<4x16x2xbf16, #tpu.memory_space<vmem>>, vector<1x16x2xbf16>
    %18 = vector.shape_cast %17 : vector<1x16x2xbf16> to vector<16x2xbf16>
    %19 = vector.extract_strided_slice %4 {offsets = [0, 256], sizes = [2, 128], strides = [1, 1]} : vector<2x512xbf16> to vector<2x128xbf16>
    %cst_14 = arith.constant dense<0.000000e+00> : vector<16x128xf32>
    %20 = tpu.matmul %18, %19, %cst_14 {dimension_numbers = #tpu.dot_dimension_numbers<[1], [0], [0], [1], [0, 0, 1, 1], [], []>} : vector<16x2xbf16>, vector<2x128xbf16>, vector<16x128xf32> -> vector<16x128xf32>
    %21 = arith.addf %16, %20 : vector<16x128xf32>
    %c3 = arith.constant 3 : index
    %c0_15 = arith.constant 0 : index
    %c0_16 = arith.constant 0 : index
    %22 = vector.load %arg3[%c3, %c0_15, %c0_16] : memref<4x16x2xbf16, #tpu.memory_space<vmem>>, vector<1x16x2xbf16>
    %23 = vector.shape_cast %22 : vector<1x16x2xbf16> to vector<16x2xbf16>
    %24 = vector.extract_strided_slice %4 {offsets = [0, 384], sizes = [2, 128], strides = [1, 1]} : vector<2x512xbf16> to vector<2x128xbf16>
    %cst_17 = arith.constant dense<0.000000e+00> : vector<16x128xf32>
    %25 = tpu.matmul %23, %24, %cst_17 {dimension_numbers = #tpu.dot_dimension_numbers<[1], [0], [0], [1], [0, 0, 1, 1], [], []>} : vector<16x2xbf16>, vector<2x128xbf16>, vector<16x128xf32> -> vector<16x128xf32>
    %26 = arith.addf %21, %25 : vector<16x128xf32>
    %cst_18 = arith.constant 0.000000e+00 : f32
    %27 = vector.broadcast %cst_18 : f32 to vector<16x128xf32>
    %28 = arith.maximumf %26, %27 : vector<16x128xf32>
    %29 = arith.truncf %28 : vector<16x128xf32> to vector<16x128xbf16>
    %c0_19 = arith.constant 0 : index
    %c0_20 = arith.constant 0 : index
    %30 = vector.load %arg5[%c0_19, %c0_20] : memref<128x256xbf16, #tpu.memory_space<vmem>>, vector<128x256xbf16>
    %cst_21 = arith.constant dense<0.000000e+00> : vector<16x256xf32>
    %31 = tpu.matmul %29, %30, %cst_21 {dimension_numbers = #tpu.dot_dimension_numbers<[1], [0], [0], [1], [0, 0, 1, 1], [], []>} : vector<16x128xbf16>, vector<128x256xbf16>, vector<16x256xf32> -> vector<16x256xf32>
    %32 = arith.truncf %31 : vector<16x256xf32> to vector<16x256xbf16>
    %c0_22 = arith.constant 0 : index
    %c0_23 = arith.constant 0 : index
    %33 = vector.load %arg7[%c0_22, %c0_23] : memref<16x1xf32, #tpu.memory_space<vmem>>, vector<16x1xf32>
    %c0_24 = arith.constant 0 : index
    %c0_25 = arith.constant 0 : index
    %c0_26 = arith.constant 0 : index
    %34 = vector.load %arg6[%c0_24, %c0_25, %c0_26] : memref<4x16x16xbf16, #tpu.memory_space<vmem>>, vector<1x16x16xbf16>
    %35 = vector.shape_cast %34 : vector<1x16x16xbf16> to vector<16x16xbf16>
    %36 = vector.extract_strided_slice %32 {offsets = [0, 0], sizes = [16, 64], strides = [1, 1]} : vector<16x256xbf16> to vector<16x64xbf16>
    %cst_27 = arith.constant dense<0.000000e+00> : vector<16x64xf32>
    %37 = tpu.matmul %35, %36, %cst_27 {dimension_numbers = #tpu.dot_dimension_numbers<[1], [0], [0], [1], [0, 0, 1, 1], [], []>} : vector<16x16xbf16>, vector<16x64xbf16>, vector<16x64xf32> -> vector<16x64xf32>
    %38 = vector.broadcast %33 : vector<16x1xf32> to vector<16x64xf32>
    %39 = arith.addf %38, %37 : vector<16x64xf32>
    %c1_28 = arith.constant 1 : index
    %c0_29 = arith.constant 0 : index
    %c0_30 = arith.constant 0 : index
    %40 = vector.load %arg6[%c1_28, %c0_29, %c0_30] : memref<4x16x16xbf16, #tpu.memory_space<vmem>>, vector<1x16x16xbf16>
    %41 = vector.shape_cast %40 : vector<1x16x16xbf16> to vector<16x16xbf16>
    %42 = vector.extract_strided_slice %32 {offsets = [0, 64], sizes = [16, 64], strides = [1, 1]} : vector<16x256xbf16> to vector<16x64xbf16>
    %cst_31 = arith.constant dense<0.000000e+00> : vector<16x64xf32>
    %43 = tpu.matmul %41, %42, %cst_31 {dimension_numbers = #tpu.dot_dimension_numbers<[1], [0], [0], [1], [0, 0, 1, 1], [], []>} : vector<16x16xbf16>, vector<16x64xbf16>, vector<16x64xf32> -> vector<16x64xf32>
    %44 = arith.addf %39, %43 : vector<16x64xf32>
    %c2_32 = arith.constant 2 : index
    %c0_33 = arith.constant 0 : index
    %c0_34 = arith.constant 0 : index
    %45 = vector.load %arg6[%c2_32, %c0_33, %c0_34] : memref<4x16x16xbf16, #tpu.memory_space<vmem>>, vector<1x16x16xbf16>
    %46 = vector.shape_cast %45 : vector<1x16x16xbf16> to vector<16x16xbf16>
    %47 = vector.extract_strided_slice %32 {offsets = [0, 128], sizes = [16, 64], strides = [1, 1]} : vector<16x256xbf16> to vector<16x64xbf16>
    %cst_35 = arith.constant dense<0.000000e+00> : vector<16x64xf32>
    %48 = tpu.matmul %46, %47, %cst_35 {dimension_numbers = #tpu.dot_dimension_numbers<[1], [0], [0], [1], [0, 0, 1, 1], [], []>} : vector<16x16xbf16>, vector<16x64xbf16>, vector<16x64xf32> -> vector<16x64xf32>
    %49 = arith.addf %44, %48 : vector<16x64xf32>
    %c3_36 = arith.constant 3 : index
    %c0_37 = arith.constant 0 : index
    %c0_38 = arith.constant 0 : index
    %50 = vector.load %arg6[%c3_36, %c0_37, %c0_38] : memref<4x16x16xbf16, #tpu.memory_space<vmem>>, vector<1x16x16xbf16>
    %51 = vector.shape_cast %50 : vector<1x16x16xbf16> to vector<16x16xbf16>
    %52 = vector.extract_strided_slice %32 {offsets = [0, 192], sizes = [16, 64], strides = [1, 1]} : vector<16x256xbf16> to vector<16x64xbf16>
    %cst_39 = arith.constant dense<0.000000e+00> : vector<16x64xf32>
    %53 = tpu.matmul %51, %52, %cst_39 {dimension_numbers = #tpu.dot_dimension_numbers<[1], [0], [0], [1], [0, 0, 1, 1], [], []>} : vector<16x16xbf16>, vector<16x64xbf16>, vector<16x64xf32> -> vector<16x64xf32>
    %54 = arith.addf %49, %53 : vector<16x64xf32>
    %cst_40 = arith.constant 0.000000e+00 : f32
    %55 = vector.broadcast %cst_40 : f32 to vector<16x64xf32>
    %56 = arith.maximumf %54, %55 : vector<16x64xf32>
    %57 = arith.truncf %56 : vector<16x64xf32> to vector<16x64xbf16>
    %c0_41 = arith.constant 0 : index
    %c0_42 = arith.constant 0 : index
    %58 = vector.load %arg8[%c0_41, %c0_42] : memref<64x128xbf16, #tpu.memory_space<vmem>>, vector<64x128xbf16>
    %cst_43 = arith.constant dense<0.000000e+00> : vector<16x128xf32>
    %59 = tpu.matmul %57, %58, %cst_43 {dimension_numbers = #tpu.dot_dimension_numbers<[1], [0], [0], [1], [0, 0, 1, 1], [], []>} : vector<16x64xbf16>, vector<64x128xbf16>, vector<16x128xf32> -> vector<16x128xf32>
    %60 = arith.truncf %59 : vector<16x128xf32> to vector<16x128xbf16>
    %c0_44 = arith.constant 0 : index
    %c0_45 = arith.constant 0 : index
    %61 = vector.load %arg10[%c0_44, %c0_45] : memref<2x1xf32, #tpu.memory_space<vmem>>, vector<2x1xf32>
    %c0_46 = arith.constant 0 : index
    %c0_47 = arith.constant 0 : index
    %c0_48 = arith.constant 0 : index
    %62 = vector.load %arg9[%c0_46, %c0_47, %c0_48] : memref<4x2x16xbf16, #tpu.memory_space<vmem>>, vector<1x2x16xbf16>
    %63 = vector.shape_cast %62 : vector<1x2x16xbf16> to vector<2x16xbf16>
    %64 = vector.extract_strided_slice %60 {offsets = [0, 0], sizes = [16, 32], strides = [1, 1]} : vector<16x128xbf16> to vector<16x32xbf16>
    %cst_49 = arith.constant dense<0.000000e+00> : vector<2x32xf32>
    %65 = tpu.matmul %63, %64, %cst_49 {dimension_numbers = #tpu.dot_dimension_numbers<[1], [0], [0], [1], [0, 0, 1, 1], [], []>} : vector<2x16xbf16>, vector<16x32xbf16>, vector<2x32xf32> -> vector<2x32xf32>
    %66 = vector.broadcast %61 : vector<2x1xf32> to vector<2x32xf32>
    %67 = arith.addf %66, %65 : vector<2x32xf32>
    %c1_50 = arith.constant 1 : index
    %c0_51 = arith.constant 0 : index
    %c0_52 = arith.constant 0 : index
    %68 = vector.load %arg9[%c1_50, %c0_51, %c0_52] : memref<4x2x16xbf16, #tpu.memory_space<vmem>>, vector<1x2x16xbf16>
    %69 = vector.shape_cast %68 : vector<1x2x16xbf16> to vector<2x16xbf16>
    %70 = vector.extract_strided_slice %60 {offsets = [0, 32], sizes = [16, 32], strides = [1, 1]} : vector<16x128xbf16> to vector<16x32xbf16>
    %cst_53 = arith.constant dense<0.000000e+00> : vector<2x32xf32>
    %71 = tpu.matmul %69, %70, %cst_53 {dimension_numbers = #tpu.dot_dimension_numbers<[1], [0], [0], [1], [0, 0, 1, 1], [], []>} : vector<2x16xbf16>, vector<16x32xbf16>, vector<2x32xf32> -> vector<2x32xf32>
    %72 = arith.addf %67, %71 : vector<2x32xf32>
    %c2_54 = arith.constant 2 : index
    %c0_55 = arith.constant 0 : index
    %c0_56 = arith.constant 0 : index
    %73 = vector.load %arg9[%c2_54, %c0_55, %c0_56] : memref<4x2x16xbf16, #tpu.memory_space<vmem>>, vector<1x2x16xbf16>
    %74 = vector.shape_cast %73 : vector<1x2x16xbf16> to vector<2x16xbf16>
    %75 = vector.extract_strided_slice %60 {offsets = [0, 64], sizes = [16, 32], strides = [1, 1]} : vector<16x128xbf16> to vector<16x32xbf16>
    %cst_57 = arith.constant dense<0.000000e+00> : vector<2x32xf32>
    %76 = tpu.matmul %74, %75, %cst_57 {dimension_numbers = #tpu.dot_dimension_numbers<[1], [0], [0], [1], [0, 0, 1, 1], [], []>} : vector<2x16xbf16>, vector<16x32xbf16>, vector<2x32xf32> -> vector<2x32xf32>
    %77 = arith.addf %72, %76 : vector<2x32xf32>
    %c3_58 = arith.constant 3 : index
    %c0_59 = arith.constant 0 : index
    %c0_60 = arith.constant 0 : index
    %78 = vector.load %arg9[%c3_58, %c0_59, %c0_60] : memref<4x2x16xbf16, #tpu.memory_space<vmem>>, vector<1x2x16xbf16>
    %79 = vector.shape_cast %78 : vector<1x2x16xbf16> to vector<2x16xbf16>
    %80 = vector.extract_strided_slice %60 {offsets = [0, 96], sizes = [16, 32], strides = [1, 1]} : vector<16x128xbf16> to vector<16x32xbf16>
    %cst_61 = arith.constant dense<0.000000e+00> : vector<2x32xf32>
    %81 = tpu.matmul %79, %80, %cst_61 {dimension_numbers = #tpu.dot_dimension_numbers<[1], [0], [0], [1], [0, 0, 1, 1], [], []>} : vector<2x16xbf16>, vector<16x32xbf16>, vector<2x32xf32> -> vector<2x32xf32>
    %82 = arith.addf %77, %81 : vector<2x32xf32>
    %cst_62 = arith.constant 0.000000e+00 : f32
    %83 = vector.broadcast %cst_62 : f32 to vector<2x32xf32>
    %84 = arith.maximumf %82, %83 : vector<2x32xf32>
    %85 = arith.truncf %84 : vector<2x32xf32> to vector<2x32xbf16>
    %c0_63 = arith.constant 0 : index
    %c0_64 = arith.constant 0 : index
    %86 = vector.load %arg11[%c0_63, %c0_64] : memref<32x128xbf16, #tpu.memory_space<vmem>>, vector<32x128xbf16>
    %cst_65 = arith.constant dense<0.000000e+00> : vector<2x128xf32>
    %87 = tpu.matmul %85, %86, %cst_65 {dimension_numbers = #tpu.dot_dimension_numbers<[1], [0], [0], [1], [0, 0, 1, 1], [], []>} : vector<2x32xbf16>, vector<32x128xbf16>, vector<2x128xf32> -> vector<2x128xf32>
    %c0_66 = arith.constant 0 : index
    %c0_67 = arith.constant 0 : index
    %88 = vector.load %arg12[%c0_66, %c0_67] : memref<1x128xf32, #tpu.memory_space<vmem>>, vector<1x128xf32>
    %89 = vector.broadcast %88 : vector<1x128xf32> to vector<2x128xf32>
    %90 = arith.addf %87, %89 : vector<2x128xf32>
    %c0_68 = arith.constant 0 : index
    %c0_69 = arith.constant 0 : index
    %91 = vector.load %arg1[%c0_68, %c0_69] : memref<192x32xf32, #tpu.memory_space<vmem>>, vector<192x32xf32>
    %92 = arith.truncf %91 : vector<192x32xf32> to vector<192x32xbf16>
    %c0_70 = arith.constant 0 : index
    %c0_71 = arith.constant 0 : index
    %93 = vector.load %arg13[%c0_70, %c0_71] : memref<32x64xbf16, #tpu.memory_space<vmem>>, vector<32x64xbf16>
    %cst_72 = arith.constant dense<0.000000e+00> : vector<192x64xf32>
    %94 = tpu.matmul %92, %93, %cst_72 {dimension_numbers = #tpu.dot_dimension_numbers<[1], [0], [0], [1], [0, 0, 1, 1], [], []>} : vector<192x32xbf16>, vector<32x64xbf16>, vector<192x64xf32> -> vector<192x64xf32>
    %95 = arith.truncf %94 : vector<192x64xf32> to vector<192x64xbf16>
    %c0_73 = arith.constant 0 : index
    %c0_74 = arith.constant 0 : index
    %96 = vector.load %arg15[%c0_73, %c0_74] : memref<256x1xf32, #tpu.memory_space<vmem>>, vector<256x1xf32>
    %c0_75 = arith.constant 0 : index
    %c0_76 = arith.constant 0 : index
    %c0_77 = arith.constant 0 : index
    %97 = vector.load %arg14[%c0_75, %c0_76, %c0_77] : memref<4x256x192xbf16, #tpu.memory_space<vmem>>, vector<1x256x192xbf16>
    %98 = vector.shape_cast %97 : vector<1x256x192xbf16> to vector<256x192xbf16>
    %99 = vector.extract_strided_slice %95 {offsets = [0, 0], sizes = [192, 16], strides = [1, 1]} : vector<192x64xbf16> to vector<192x16xbf16>
    %cst_78 = arith.constant dense<0.000000e+00> : vector<256x16xf32>
    %100 = tpu.matmul %98, %99, %cst_78 {dimension_numbers = #tpu.dot_dimension_numbers<[1], [0], [0], [1], [0, 0, 1, 1], [], []>} : vector<256x192xbf16>, vector<192x16xbf16>, vector<256x16xf32> -> vector<256x16xf32>
    %101 = vector.broadcast %96 : vector<256x1xf32> to vector<256x16xf32>
    %102 = arith.addf %101, %100 : vector<256x16xf32>
    %c1_79 = arith.constant 1 : index
    %c0_80 = arith.constant 0 : index
    %c0_81 = arith.constant 0 : index
    %103 = vector.load %arg14[%c1_79, %c0_80, %c0_81] : memref<4x256x192xbf16, #tpu.memory_space<vmem>>, vector<1x256x192xbf16>
    %104 = vector.shape_cast %103 : vector<1x256x192xbf16> to vector<256x192xbf16>
    %105 = vector.extract_strided_slice %95 {offsets = [0, 16], sizes = [192, 16], strides = [1, 1]} : vector<192x64xbf16> to vector<192x16xbf16>
    %cst_82 = arith.constant dense<0.000000e+00> : vector<256x16xf32>
    %106 = tpu.matmul %104, %105, %cst_82 {dimension_numbers = #tpu.dot_dimension_numbers<[1], [0], [0], [1], [0, 0, 1, 1], [], []>} : vector<256x192xbf16>, vector<192x16xbf16>, vector<256x16xf32> -> vector<256x16xf32>
    %107 = arith.addf %102, %106 : vector<256x16xf32>
    %c2_83 = arith.constant 2 : index
    %c0_84 = arith.constant 0 : index
    %c0_85 = arith.constant 0 : index
    %108 = vector.load %arg14[%c2_83, %c0_84, %c0_85] : memref<4x256x192xbf16, #tpu.memory_space<vmem>>, vector<1x256x192xbf16>
    %109 = vector.shape_cast %108 : vector<1x256x192xbf16> to vector<256x192xbf16>
    %110 = vector.extract_strided_slice %95 {offsets = [0, 32], sizes = [192, 16], strides = [1, 1]} : vector<192x64xbf16> to vector<192x16xbf16>
    %cst_86 = arith.constant dense<0.000000e+00> : vector<256x16xf32>
    %111 = tpu.matmul %109, %110, %cst_86 {dimension_numbers = #tpu.dot_dimension_numbers<[1], [0], [0], [1], [0, 0, 1, 1], [], []>} : vector<256x192xbf16>, vector<192x16xbf16>, vector<256x16xf32> -> vector<256x16xf32>
    %112 = arith.addf %107, %111 : vector<256x16xf32>
    %c3_87 = arith.constant 3 : index
    %c0_88 = arith.constant 0 : index
    %c0_89 = arith.constant 0 : index
    %113 = vector.load %arg14[%c3_87, %c0_88, %c0_89] : memref<4x256x192xbf16, #tpu.memory_space<vmem>>, vector<1x256x192xbf16>
    %114 = vector.shape_cast %113 : vector<1x256x192xbf16> to vector<256x192xbf16>
    %115 = vector.extract_strided_slice %95 {offsets = [0, 48], sizes = [192, 16], strides = [1, 1]} : vector<192x64xbf16> to vector<192x16xbf16>
    %cst_90 = arith.constant dense<0.000000e+00> : vector<256x16xf32>
    %116 = tpu.matmul %114, %115, %cst_90 {dimension_numbers = #tpu.dot_dimension_numbers<[1], [0], [0], [1], [0, 0, 1, 1], [], []>} : vector<256x192xbf16>, vector<192x16xbf16>, vector<256x16xf32> -> vector<256x16xf32>
    %117 = arith.addf %112, %116 : vector<256x16xf32>
    %cst_91 = arith.constant 0.000000e+00 : f32
    %118 = vector.broadcast %cst_91 : f32 to vector<256x16xf32>
    %119 = arith.maximumf %117, %118 : vector<256x16xf32>
    %120 = arith.truncf %119 : vector<256x16xf32> to vector<256x16xbf16>
    %c0_92 = arith.constant 0 : index
    %c0_93 = arith.constant 0 : index
    %121 = vector.load %arg16[%c0_92, %c0_93] : memref<16x32xbf16, #tpu.memory_space<vmem>>, vector<16x32xbf16>
    %cst_94 = arith.constant dense<0.000000e+00> : vector<256x32xf32>
    %122 = tpu.matmul %120, %121, %cst_94 {dimension_numbers = #tpu.dot_dimension_numbers<[1], [0], [0], [1], [0, 0, 1, 1], [], []>} : vector<256x16xbf16>, vector<16x32xbf16>, vector<256x32xf32> -> vector<256x32xf32>
    %123 = arith.truncf %122 : vector<256x32xf32> to vector<256x32xbf16>
    %c0_95 = arith.constant 0 : index
    %c0_96 = arith.constant 0 : index
    %124 = vector.load %arg18[%c0_95, %c0_96] : memref<128x1xf32, #tpu.memory_space<vmem>>, vector<128x1xf32>
    %c0_97 = arith.constant 0 : index
    %c0_98 = arith.constant 0 : index
    %c0_99 = arith.constant 0 : index
    %125 = vector.load %arg17[%c0_97, %c0_98, %c0_99] : memref<4x128x256xbf16, #tpu.memory_space<vmem>>, vector<1x128x256xbf16>
    %126 = vector.shape_cast %125 : vector<1x128x256xbf16> to vector<128x256xbf16>
    %127 = vector.extract_strided_slice %123 {offsets = [0, 0], sizes = [256, 8], strides = [1, 1]} : vector<256x32xbf16> to vector<256x8xbf16>
    %cst_100 = arith.constant dense<0.000000e+00> : vector<128x8xf32>
    %128 = tpu.matmul %126, %127, %cst_100 {dimension_numbers = #tpu.dot_dimension_numbers<[1], [0], [0], [1], [0, 0, 1, 1], [], []>} : vector<128x256xbf16>, vector<256x8xbf16>, vector<128x8xf32> -> vector<128x8xf32>
    %129 = vector.broadcast %124 : vector<128x1xf32> to vector<128x8xf32>
    %130 = arith.addf %129, %128 : vector<128x8xf32>
    %c1_101 = arith.constant 1 : index
    %c0_102 = arith.constant 0 : index
    %c0_103 = arith.constant 0 : index
    %131 = vector.load %arg17[%c1_101, %c0_102, %c0_103] : memref<4x128x256xbf16, #tpu.memory_space<vmem>>, vector<1x128x256xbf16>
    %132 = vector.shape_cast %131 : vector<1x128x256xbf16> to vector<128x256xbf16>
    %133 = vector.extract_strided_slice %123 {offsets = [0, 8], sizes = [256, 8], strides = [1, 1]} : vector<256x32xbf16> to vector<256x8xbf16>
    %cst_104 = arith.constant dense<0.000000e+00> : vector<128x8xf32>
    %134 = tpu.matmul %132, %133, %cst_104 {dimension_numbers = #tpu.dot_dimension_numbers<[1], [0], [0], [1], [0, 0, 1, 1], [], []>} : vector<128x256xbf16>, vector<256x8xbf16>, vector<128x8xf32> -> vector<128x8xf32>
    %135 = arith.addf %130, %134 : vector<128x8xf32>
    %c2_105 = arith.constant 2 : index
    %c0_106 = arith.constant 0 : index
    %c0_107 = arith.constant 0 : index
    %136 = vector.load %arg17[%c2_105, %c0_106, %c0_107] : memref<4x128x256xbf16, #tpu.memory_space<vmem>>, vector<1x128x256xbf16>
    %137 = vector.shape_cast %136 : vector<1x128x256xbf16> to vector<128x256xbf16>
    %138 = vector.extract_strided_slice %123 {offsets = [0, 16], sizes = [256, 8], strides = [1, 1]} : vector<256x32xbf16> to vector<256x8xbf16>
    %cst_108 = arith.constant dense<0.000000e+00> : vector<128x8xf32>
    %139 = tpu.matmul %137, %138, %cst_108 {dimension_numbers = #tpu.dot_dimension_numbers<[1], [0], [0], [1], [0, 0, 1, 1], [], []>} : vector<128x256xbf16>, vector<256x8xbf16>, vector<128x8xf32> -> vector<128x8xf32>
    %140 = arith.addf %135, %139 : vector<128x8xf32>
    %c3_109 = arith.constant 3 : index
    %c0_110 = arith.constant 0 : index
    %c0_111 = arith.constant 0 : index
    %141 = vector.load %arg17[%c3_109, %c0_110, %c0_111] : memref<4x128x256xbf16, #tpu.memory_space<vmem>>, vector<1x128x256xbf16>
    %142 = vector.shape_cast %141 : vector<1x128x256xbf16> to vector<128x256xbf16>
    %143 = vector.extract_strided_slice %123 {offsets = [0, 24], sizes = [256, 8], strides = [1, 1]} : vector<256x32xbf16> to vector<256x8xbf16>
    %cst_112 = arith.constant dense<0.000000e+00> : vector<128x8xf32>
    %144 = tpu.matmul %142, %143, %cst_112 {dimension_numbers = #tpu.dot_dimension_numbers<[1], [0], [0], [1], [0, 0, 1, 1], [], []>} : vector<128x256xbf16>, vector<256x8xbf16>, vector<128x8xf32> -> vector<128x8xf32>
    %145 = arith.addf %140, %144 : vector<128x8xf32>
    %cst_113 = arith.constant 0.000000e+00 : f32
    %146 = vector.broadcast %cst_113 : f32 to vector<128x8xf32>
    %147 = arith.maximumf %145, %146 : vector<128x8xf32>
    %148 = arith.truncf %147 : vector<128x8xf32> to vector<128x8xbf16>
    %c0_114 = arith.constant 0 : index
    %c0_115 = arith.constant 0 : index
    %149 = vector.load %arg19[%c0_114, %c0_115] : memref<8x16xbf16, #tpu.memory_space<vmem>>, vector<8x16xbf16>
    %cst_116 = arith.constant dense<0.000000e+00> : vector<128x16xf32>
    %150 = tpu.matmul %148, %149, %cst_116 {dimension_numbers = #tpu.dot_dimension_numbers<[1], [0], [0], [1], [0, 0, 1, 1], [], []>} : vector<128x8xbf16>, vector<8x16xbf16>, vector<128x16xf32> -> vector<128x16xf32>
    %151 = arith.truncf %150 : vector<128x16xf32> to vector<128x16xbf16>
    %c0_117 = arith.constant 0 : index
    %c0_118 = arith.constant 0 : index
    %152 = vector.load %arg21[%c0_117, %c0_118] : memref<8x1xf32, #tpu.memory_space<vmem>>, vector<8x1xf32>
    %c0_119 = arith.constant 0 : index
    %c0_120 = arith.constant 0 : index
    %c0_121 = arith.constant 0 : index
    %153 = vector.load %arg20[%c0_119, %c0_120, %c0_121] : memref<4x8x128xbf16, #tpu.memory_space<vmem>>, vector<1x8x128xbf16>
    %154 = vector.shape_cast %153 : vector<1x8x128xbf16> to vector<8x128xbf16>
    %155 = vector.extract_strided_slice %151 {offsets = [0, 0], sizes = [128, 4], strides = [1, 1]} : vector<128x16xbf16> to vector<128x4xbf16>
    %cst_122 = arith.constant dense<0.000000e+00> : vector<8x4xf32>
    %156 = tpu.matmul %154, %155, %cst_122 {dimension_numbers = #tpu.dot_dimension_numbers<[1], [0], [0], [1], [0, 0, 1, 1], [], []>} : vector<8x128xbf16>, vector<128x4xbf16>, vector<8x4xf32> -> vector<8x4xf32>
    %157 = vector.broadcast %152 : vector<8x1xf32> to vector<8x4xf32>
    %158 = arith.addf %157, %156 : vector<8x4xf32>
    %c1_123 = arith.constant 1 : index
    %c0_124 = arith.constant 0 : index
    %c0_125 = arith.constant 0 : index
    %159 = vector.load %arg20[%c1_123, %c0_124, %c0_125] : memref<4x8x128xbf16, #tpu.memory_space<vmem>>, vector<1x8x128xbf16>
    %160 = vector.shape_cast %159 : vector<1x8x128xbf16> to vector<8x128xbf16>
    %161 = vector.extract_strided_slice %151 {offsets = [0, 4], sizes = [128, 4], strides = [1, 1]} : vector<128x16xbf16> to vector<128x4xbf16>
    %cst_126 = arith.constant dense<0.000000e+00> : vector<8x4xf32>
    %162 = tpu.matmul %160, %161, %cst_126 {dimension_numbers = #tpu.dot_dimension_numbers<[1], [0], [0], [1], [0, 0, 1, 1], [], []>} : vector<8x128xbf16>, vector<128x4xbf16>, vector<8x4xf32> -> vector<8x4xf32>
    %163 = arith.addf %158, %162 : vector<8x4xf32>
    %c2_127 = arith.constant 2 : index
    %c0_128 = arith.constant 0 : index
    %c0_129 = arith.constant 0 : index
    %164 = vector.load %arg20[%c2_127, %c0_128, %c0_129] : memref<4x8x128xbf16, #tpu.memory_space<vmem>>, vector<1x8x128xbf16>
    %165 = vector.shape_cast %164 : vector<1x8x128xbf16> to vector<8x128xbf16>
    %166 = vector.extract_strided_slice %151 {offsets = [0, 8], sizes = [128, 4], strides = [1, 1]} : vector<128x16xbf16> to vector<128x4xbf16>
    %cst_130 = arith.constant dense<0.000000e+00> : vector<8x4xf32>
    %167 = tpu.matmul %165, %166, %cst_130 {dimension_numbers = #tpu.dot_dimension_numbers<[1], [0], [0], [1], [0, 0, 1, 1], [], []>} : vector<8x128xbf16>, vector<128x4xbf16>, vector<8x4xf32> -> vector<8x4xf32>
    %168 = arith.addf %163, %167 : vector<8x4xf32>
    %c3_131 = arith.constant 3 : index
    %c0_132 = arith.constant 0 : index
    %c0_133 = arith.constant 0 : index
    %169 = vector.load %arg20[%c3_131, %c0_132, %c0_133] : memref<4x8x128xbf16, #tpu.memory_space<vmem>>, vector<1x8x128xbf16>
    %170 = vector.shape_cast %169 : vector<1x8x128xbf16> to vector<8x128xbf16>
    %171 = vector.extract_strided_slice %151 {offsets = [0, 12], sizes = [128, 4], strides = [1, 1]} : vector<128x16xbf16> to vector<128x4xbf16>
    %cst_134 = arith.constant dense<0.000000e+00> : vector<8x4xf32>
    %172 = tpu.matmul %170, %171, %cst_134 {dimension_numbers = #tpu.dot_dimension_numbers<[1], [0], [0], [1], [0, 0, 1, 1], [], []>} : vector<8x128xbf16>, vector<128x4xbf16>, vector<8x4xf32> -> vector<8x4xf32>
    %173 = arith.addf %168, %172 : vector<8x4xf32>
    %cst_135 = arith.constant 0.000000e+00 : f32
    %174 = vector.broadcast %cst_135 : f32 to vector<8x4xf32>
    %175 = arith.maximumf %173, %174 : vector<8x4xf32>
    %176 = arith.truncf %175 : vector<8x4xf32> to vector<8x4xbf16>
    %c0_136 = arith.constant 0 : index
    %c0_137 = arith.constant 0 : index
    %177 = vector.load %arg22[%c0_136, %c0_137] : memref<16x128xbf16, #tpu.memory_space<vmem>>, vector<16x128xbf16>
    %c0_138 = arith.constant 0 : index
    %c0_139 = arith.constant 0 : index
    %178 = vector.load %arg23[%c0_138, %c0_139] : memref<1x128xf32, #tpu.memory_space<vmem>>, vector<1x128xf32>
    %179 = vector.extract_strided_slice %176 {offsets = [0, 0], sizes = [2, 4], strides = [1, 1]} : vector<8x4xbf16> to vector<2x4xbf16>
    %180 = vector.extract_strided_slice %177 {offsets = [0, 0], sizes = [4, 128], strides = [1, 1]} : vector<16x128xbf16> to vector<4x128xbf16>
    %cst_140 = arith.constant dense<0.000000e+00> : vector<2x128xf32>
    %181 = tpu.matmul %179, %180, %cst_140 {dimension_numbers = #tpu.dot_dimension_numbers<[1], [0], [0], [1], [0, 0, 1, 1], [], []>} : vector<2x4xbf16>, vector<4x128xbf16>, vector<2x128xf32> -> vector<2x128xf32>
    %182 = vector.broadcast %178 : vector<1x128xf32> to vector<2x128xf32>
    %183 = arith.addf %182, %181 : vector<2x128xf32>
    %184 = vector.extract_strided_slice %176 {offsets = [2, 0], sizes = [2, 4], strides = [1, 1]} : vector<8x4xbf16> to vector<2x4xbf16>
    %185 = vector.extract_strided_slice %177 {offsets = [4, 0], sizes = [4, 128], strides = [1, 1]} : vector<16x128xbf16> to vector<4x128xbf16>
    %cst_141 = arith.constant dense<0.000000e+00> : vector<2x128xf32>
    %186 = tpu.matmul %184, %185, %cst_141 {dimension_numbers = #tpu.dot_dimension_numbers<[1], [0], [0], [1], [0, 0, 1, 1], [], []>} : vector<2x4xbf16>, vector<4x128xbf16>, vector<2x128xf32> -> vector<2x128xf32>
    %187 = arith.addf %183, %186 : vector<2x128xf32>
    %188 = vector.extract_strided_slice %176 {offsets = [4, 0], sizes = [2, 4], strides = [1, 1]} : vector<8x4xbf16> to vector<2x4xbf16>
    %189 = vector.extract_strided_slice %177 {offsets = [8, 0], sizes = [4, 128], strides = [1, 1]} : vector<16x128xbf16> to vector<4x128xbf16>
    %cst_142 = arith.constant dense<0.000000e+00> : vector<2x128xf32>
    %190 = tpu.matmul %188, %189, %cst_142 {dimension_numbers = #tpu.dot_dimension_numbers<[1], [0], [0], [1], [0, 0, 1, 1], [], []>} : vector<2x4xbf16>, vector<4x128xbf16>, vector<2x128xf32> -> vector<2x128xf32>
    %191 = arith.addf %187, %190 : vector<2x128xf32>
    %192 = vector.extract_strided_slice %176 {offsets = [6, 0], sizes = [2, 4], strides = [1, 1]} : vector<8x4xbf16> to vector<2x4xbf16>
    %193 = vector.extract_strided_slice %177 {offsets = [12, 0], sizes = [4, 128], strides = [1, 1]} : vector<16x128xbf16> to vector<4x128xbf16>
    %cst_143 = arith.constant dense<0.000000e+00> : vector<2x128xf32>
    %194 = tpu.matmul %192, %193, %cst_143 {dimension_numbers = #tpu.dot_dimension_numbers<[1], [0], [0], [1], [0, 0, 1, 1], [], []>} : vector<2x4xbf16>, vector<4x128xbf16>, vector<2x128xf32> -> vector<2x128xf32>
    %195 = arith.addf %191, %194 : vector<2x128xf32>
    %196 = arith.truncf %90 : vector<2x128xf32> to vector<2x128xbf16>
    %197 = arith.truncf %195 : vector<2x128xf32> to vector<2x128xbf16>
    %c0_144 = arith.constant 0 : index
    %c0_145 = arith.constant 0 : index
    %198 = vector.load %arg24[%c0_144, %c0_145] : memref<128x256xbf16, #tpu.memory_space<vmem>>, vector<128x256xbf16>
    %cst_146 = arith.constant dense<0.000000e+00> : vector<2x256xf32>
    %199 = tpu.matmul %196, %198, %cst_146 {dimension_numbers = #tpu.dot_dimension_numbers<[1], [0], [0], [1], [0, 0, 1, 1], [], []>} : vector<2x128xbf16>, vector<128x256xbf16>, vector<2x256xf32> -> vector<2x256xf32>
    %c0_147 = arith.constant 0 : index
    %c0_148 = arith.constant 0 : index
    %200 = vector.load %arg25[%c0_147, %c0_148] : memref<128x256xbf16, #tpu.memory_space<vmem>>, vector<128x256xbf16>
    %cst_149 = arith.constant dense<0.000000e+00> : vector<2x256xf32>
    %201 = tpu.matmul %197, %200, %cst_149 {dimension_numbers = #tpu.dot_dimension_numbers<[1], [0], [0], [1], [0, 0, 1, 1], [], []>} : vector<2x128xbf16>, vector<128x256xbf16>, vector<2x256xf32> -> vector<2x256xf32>
    %202 = arith.addf %199, %201 : vector<2x256xf32>
    %c0_150 = arith.constant 0 : index
    %c0_151 = arith.constant 0 : index
    %203 = vector.load %arg26[%c0_150, %c0_151] : memref<1x256xf32, #tpu.memory_space<vmem>>, vector<1x256xf32>
    %204 = vector.broadcast %203 : vector<1x256xf32> to vector<2x256xf32>
    %205 = arith.addf %202, %204 : vector<2x256xf32>
    %cst_152 = arith.constant 0.000000e+00 : f32
    %206 = vector.broadcast %cst_152 : f32 to vector<2x256xf32>
    %207 = arith.maximumf %205, %206 : vector<2x256xf32>
    %208 = arith.truncf %207 : vector<2x256xf32> to vector<2x256xbf16>
    %209 = vector.extract_strided_slice %208 {offsets = [0, 0], sizes = [2, 128], strides = [1, 1]} : vector<2x256xbf16> to vector<2x128xbf16>
    %c0_153 = arith.constant 0 : index
    %c0_154 = arith.constant 0 : index
    %210 = vector.load %arg27[%c0_153, %c0_154] : memref<128x256xbf16, #tpu.memory_space<vmem>>, vector<128x256xbf16>
    %cst_155 = arith.constant dense<0.000000e+00> : vector<2x256xf32>
    %211 = tpu.matmul %209, %210, %cst_155 {dimension_numbers = #tpu.dot_dimension_numbers<[1], [0], [0], [1], [0, 0, 1, 1], [], []>} : vector<2x128xbf16>, vector<128x256xbf16>, vector<2x256xf32> -> vector<2x256xf32>
    %c0_156 = arith.constant 0 : index
    %c0_157 = arith.constant 0 : index
    %212 = vector.load %arg28[%c0_156, %c0_157] : memref<1x256xf32, #tpu.memory_space<vmem>>, vector<1x256xf32>
    %213 = vector.broadcast %212 : vector<1x256xf32> to vector<2x256xf32>
    %214 = arith.addf %211, %213 : vector<2x256xf32>
    %215 = vector.extract_strided_slice %208 {offsets = [0, 128], sizes = [2, 128], strides = [1, 1]} : vector<2x256xbf16> to vector<2x128xbf16>
    %c0_158 = arith.constant 0 : index
    %c0_159 = arith.constant 0 : index
    %216 = vector.load %arg29[%c0_158, %c0_159] : memref<128x64xbf16, #tpu.memory_space<vmem>>, vector<128x64xbf16>
    %cst_160 = arith.constant dense<0.000000e+00> : vector<2x64xf32>
    %217 = tpu.matmul %215, %216, %cst_160 {dimension_numbers = #tpu.dot_dimension_numbers<[1], [0], [0], [1], [0, 0, 1, 1], [], []>} : vector<2x128xbf16>, vector<128x64xbf16>, vector<2x64xf32> -> vector<2x64xf32>
    %c0_161 = arith.constant 0 : index
    %c0_162 = arith.constant 0 : index
    %218 = vector.load %arg30[%c0_161, %c0_162] : memref<1x64xf32, #tpu.memory_space<vmem>>, vector<1x64xf32>
    %219 = vector.broadcast %218 : vector<1x64xf32> to vector<2x64xf32>
    %220 = arith.addf %217, %219 : vector<2x64xf32>
    %c0_163 = arith.constant 0 : index
    %c0_164 = arith.constant 0 : index
    %221 = vector.load %arg31[%c0_163, %c0_164] : memref<2x320xf32, #tpu.memory_space<vmem>>, vector<2x256xf32>
    tpu.vector_store %arg31[%c0_163, %c0_164], %214 {strides = array<i32>} : memref<2x320xf32, #tpu.memory_space<vmem>>, vector<2x256xf32>,
    %c0_165 = arith.constant 0 : index
    %c256 = arith.constant 256 : index
    %222 = vector.load %arg31[%c0_165, %c256] : memref<2x320xf32, #tpu.memory_space<vmem>>, vector<2x64xf32>
    tpu.vector_store %arg31[%c0_165, %c256], %220 {strides = array<i32>} : memref<2x320xf32, #tpu.memory_space<vmem>>, vector<2x64xf32>,
    return
  }
}

</mosaic_0001>

<llo_original>
// kernel: forward.1
$region0: #{forward.1}
  #allocation0 [shape = 'u32[]', space=smem, size = 0x4, offset = 0x4, fixed_abs, tag = 'smem constant byte address 0x4 - core index']
  #allocation1 [shape = 'u32[72,128]{1,0:T(1,128)}', space=vmem, size = 0x9000, scoped, tag = 'internal scratch']
  %s0 = inlined_call_operand.smem [shape: u32[32], index: -1, kind: input, shape index: {}]
  %s1 = sld [smem:[%s0]]
  %s2 = scalar_lea.smem %s0, 1
  %s3 = sld [smem:[%s2]]
  %s4 = scalar_lea.smem %s0, 2
  %s5 = sld [smem:[%s4]]
  %s6 = scalar_lea.smem %s0, 3
  %s7 = sld [smem:[%s6]]
  %s8 = scalar_lea.smem %s0, 4
  %s9 = sld [smem:[%s8]]
  %s10 = scalar_lea.smem %s0, 5
  %s11 = sld [smem:[%s10]]
  %s12 = scalar_lea.smem %s0, 6
  %s13 = sld [smem:[%s12]]
  %s14 = scalar_lea.smem %s0, 7
  %s15 = sld [smem:[%s14]]
  %s16 = scalar_lea.smem %s0, 8
  %s17 = sld [smem:[%s16]]
  %s18 = scalar_lea.smem %s0, 9
  %s19 = sld [smem:[%s18]]
  %s20 = scalar_lea.smem %s0, 10
  %s21 = sld [smem:[%s20]]
  %s22 = scalar_lea.smem %s0, 11
  %s23 = sld [smem:[%s22]]
  %s24 = scalar_lea.smem %s0, 12
  %s25 = sld [smem:[%s24]]
  %s26 = scalar_lea.smem %s0, 13
  %s27 = sld [smem:[%s26]]
  %s28 = scalar_lea.smem %s0, 14
  %s29 = sld [smem:[%s28]]
  %s30 = scalar_lea.smem %s0, 15
  %s31 = sld [smem:[%s30]]
  %s32 = scalar_lea.smem %s0, 16
  %s33 = sld [smem:[%s32]]
  %s34 = scalar_lea.smem %s0, 17
  %s35 = sld [smem:[%s34]]
  %s36 = scalar_lea.smem %s0, 18
  %s37 = sld [smem:[%s36]]
  %s38 = scalar_lea.smem %s0, 19
  %s39 = sld [smem:[%s38]]
  %s40 = scalar_lea.smem %s0, 20
  %s41 = sld [smem:[%s40]]
  %s42 = scalar_lea.smem %s0, 21
  %s43 = sld [smem:[%s42]]
  %s44 = scalar_lea.smem %s0, 22
  %s45 = sld [smem:[%s44]]
  %s46 = scalar_lea.smem %s0, 23
  %s47 = sld [smem:[%s46]]
  %s48 = scalar_lea.smem %s0, 24
  %s49 = sld [smem:[%s48]]
  %s50 = scalar_lea.smem %s0, 25
  %s51 = sld [smem:[%s50]]
  %s52 = scalar_lea.smem %s0, 26
  %s53 = sld [smem:[%s52]]
  %s54 = scalar_lea.smem %s0, 27
  %s55 = sld [smem:[%s54]]
  %s56 = scalar_lea.smem %s0, 28
  %s57 = sld [smem:[%s56]]
  %s58 = scalar_lea.smem %s0, 29
  %s59 = sld [smem:[%s58]]
  %s60 = scalar_lea.smem %s0, 30
  %s61 = sld [smem:[%s60]]
  %s62 = scalar_lea.smem %s0, 31
  %s63 = sld [smem:[%s62]]
  %s64 = sld [smem:[#allocation0]]
  $region134: #{forward.1} parent=0
    _
  %s66 = ssub.s32 1, %s64
  %s67 = scalar_select 0, %s66, %s64
  // Predicated region
  $region2: #{forward.1} parent=0 // pred_check
    _
  $region3: #{forward.1} parent=0 // pred_check_branch
    %69 = sbr.rel (0) target = $region5
  $region4: #{forward.1} parent=0 // pred_region
    _
  $region5: #{forward.1} parent=0 // pred_fallthru
    _
  // Predicated region
  $region6: #{forward.1} parent=0 // pred_check
    _
  $region7: #{forward.1} parent=0 // pred_check_branch
    %71 = sbr.rel (0) target = $region9
  $region8: #{forward.1} parent=0 // pred_region
    _
  $region9: #{forward.1} parent=0 // pred_fallthru
    _
  // Predicated region
  $region10: #{forward.1} parent=0 // pred_check
    _
  $region11: #{forward.1} parent=0 // pred_check_branch
    %73 = sbr.rel (0) target = $region13
  $region12: #{forward.1} parent=0 // pred_region
    _
  $region13: #{forward.1} parent=0 // pred_fallthru
    _
  // Predicated region
  $region14: #{forward.1} parent=0 // pred_check
    _
  $region15: #{forward.1} parent=0 // pred_check_branch
    %75 = sbr.rel (0) target = $region17
  $region16: #{forward.1} parent=0 // pred_region
    _
  $region17: #{forward.1} parent=0 // pred_fallthru
    _
  // Predicated region
  $region18: #{forward.1} parent=0 // pred_check
    _
  $region19: #{forward.1} parent=0 // pred_check_branch
    %77 = sbr.rel (0) target = $region21
  $region20: #{forward.1} parent=0 // pred_region
    _
  $region21: #{forward.1} parent=0 // pred_fallthru
    _
  // Predicated region
  $region22: #{forward.1} parent=0 // pred_check
    _
  $region23: #{forward.1} parent=0 // pred_check_branch
    %79 = sbr.rel (0) target = $region25
  $region24: #{forward.1} parent=0 // pred_region
    _
  $region25: #{forward.1} parent=0 // pred_fallthru
    _
  // Predicated region
  $region26: #{forward.1} parent=0 // pred_check
    _
  $region27: #{forward.1} parent=0 // pred_check_branch
    %81 = sbr.rel (0) target = $region29
  $region28: #{forward.1} parent=0 // pred_region
    _
  $region29: #{forward.1} parent=0 // pred_fallthru
    _
  // Predicated region
  $region30: #{forward.1} parent=0 // pred_check
    _
  $region31: #{forward.1} parent=0 // pred_check_branch
    %83 = sbr.rel (0) target = $region33
  $region32: #{forward.1} parent=0 // pred_region
    _
  $region33: #{forward.1} parent=0 // pred_fallthru
    _
  // Predicated region
  $region34: #{forward.1} parent=0 // pred_check
    _
  $region35: #{forward.1} parent=0 // pred_check_branch
    %85 = sbr.rel (0) target = $region37
  $region36: #{forward.1} parent=0 // pred_region
    _
  $region37: #{forward.1} parent=0 // pred_fallthru
    _
  // Predicated region
  $region38: #{forward.1} parent=0 // pred_check
    _
  $region39: #{forward.1} parent=0 // pred_check_branch
    %87 = sbr.rel (0) target = $region41
  $region40: #{forward.1} parent=0 // pred_region
    _
  $region41: #{forward.1} parent=0 // pred_fallthru
    _
  // Predicated region
  $region42: #{forward.1} parent=0 // pred_check
    _
  $region43: #{forward.1} parent=0 // pred_check_branch
    %89 = sbr.rel (0) target = $region45
  $region44: #{forward.1} parent=0 // pred_region
    _
  $region45: #{forward.1} parent=0 // pred_fallthru
    _
  // Predicated region
  $region46: #{forward.1} parent=0 // pred_check
    _
  $region47: #{forward.1} parent=0 // pred_check_branch
    %91 = sbr.rel (0) target = $region49
  $region48: #{forward.1} parent=0 // pred_region
    _
  $region49: #{forward.1} parent=0 // pred_fallthru
    _
  // Predicated region
  $region50: #{forward.1} parent=0 // pred_check
    _
  $region51: #{forward.1} parent=0 // pred_check_branch
    %93 = sbr.rel (0) target = $region53
  $region52: #{forward.1} parent=0 // pred_region
    _
  $region53: #{forward.1} parent=0 // pred_fallthru
    _
  // Predicated region
  $region54: #{forward.1} parent=0 // pred_check
    _
  $region55: #{forward.1} parent=0 // pred_check_branch
    %95 = sbr.rel (0) target = $region57
  $region56: #{forward.1} parent=0 // pred_region
    _
  $region57: #{forward.1} parent=0 // pred_fallthru
    _
  // Predicated region
  $region58: #{forward.1} parent=0 // pred_check
    _
  $region59: #{forward.1} parent=0 // pred_check_branch
    %97 = sbr.rel (0) target = $region61
  $region60: #{forward.1} parent=0 // pred_region
    _
  $region61: #{forward.1} parent=0 // pred_fallthru
    _
  // Predicated region
  $region62: #{forward.1} parent=0 // pred_check
    _
  $region63: #{forward.1} parent=0 // pred_check_branch
    %99 = sbr.rel (0) target = $region65
  $region64: #{forward.1} parent=0 // pred_region
    _
  $region65: #{forward.1} parent=0 // pred_fallthru
    _
  // Predicated region
  $region66: #{forward.1} parent=0 // pred_check
    _
  $region67: #{forward.1} parent=0 // pred_check_branch
    %101 = sbr.rel (0) target = $region69
  $region68: #{forward.1} parent=0 // pred_region
    _
  $region69: #{forward.1} parent=0 // pred_fallthru
    _
  // Predicated region
  $region70: #{forward.1} parent=0 // pred_check
    _
  $region71: #{forward.1} parent=0 // pred_check_branch
    %103 = sbr.rel (0) target = $region73
  $region72: #{forward.1} parent=0 // pred_region
    _
  $region73: #{forward.1} parent=0 // pred_fallthru
    _
  // Predicated region
  $region74: #{forward.1} parent=0 // pred_check
    _
  $region75: #{forward.1} parent=0 // pred_check_branch
    %105 = sbr.rel (0) target = $region77
  $region76: #{forward.1} parent=0 // pred_region
    _
  $region77: #{forward.1} parent=0 // pred_fallthru
    _
  // Predicated region
  $region78: #{forward.1} parent=0 // pred_check
    _
  $region79: #{forward.1} parent=0 // pred_check_branch
    %107 = sbr.rel (0) target = $region81
  $region80: #{forward.1} parent=0 // pred_region
    _
  $region81: #{forward.1} parent=0 // pred_fallthru
    _
  // Predicated region
  $region82: #{forward.1} parent=0 // pred_check
    _
  $region83: #{forward.1} parent=0 // pred_check_branch
    %109 = sbr.rel (0) target = $region85
  $region84: #{forward.1} parent=0 // pred_region
    _
  $region85: #{forward.1} parent=0 // pred_fallthru
    _
  // Predicated region
  $region86: #{forward.1} parent=0 // pred_check
    _
  $region87: #{forward.1} parent=0 // pred_check_branch
    %111 = sbr.rel (0) target = $region89
  $region88: #{forward.1} parent=0 // pred_region
    _
  $region89: #{forward.1} parent=0 // pred_fallthru
    _
  // Predicated region
  $region90: #{forward.1} parent=0 // pred_check
    _
  $region91: #{forward.1} parent=0 // pred_check_branch
    %113 = sbr.rel (0) target = $region93
  $region92: #{forward.1} parent=0 // pred_region
    _
  $region93: #{forward.1} parent=0 // pred_fallthru
    _
  // Predicated region
  $region94: #{forward.1} parent=0 // pred_check
    _
  $region95: #{forward.1} parent=0 // pred_check_branch
    %115 = sbr.rel (0) target = $region97
  $region96: #{forward.1} parent=0 // pred_region
    _
  $region97: #{forward.1} parent=0 // pred_fallthru
    _
  // Predicated region
  $region98: #{forward.1} parent=0 // pred_check
    _
  $region99: #{forward.1} parent=0 // pred_check_branch
    %117 = sbr.rel (0) target = $region101
  $region100: #{forward.1} parent=0 // pred_region
    _
  $region101: #{forward.1} parent=0 // pred_fallthru
    _
  // Predicated region
  $region102: #{forward.1} parent=0 // pred_check
    _
  $region103: #{forward.1} parent=0 // pred_check_branch
    %119 = sbr.rel (0) target = $region105
  $region104: #{forward.1} parent=0 // pred_region
    _
  $region105: #{forward.1} parent=0 // pred_fallthru
    _
  // Predicated region
  $region106: #{forward.1} parent=0 // pred_check
    _
  $region107: #{forward.1} parent=0 // pred_check_branch
    %121 = sbr.rel (0) target = $region109
  $region108: #{forward.1} parent=0 // pred_region
    _
  $region109: #{forward.1} parent=0 // pred_fallthru
    _
  // Predicated region
  $region110: #{forward.1} parent=0 // pred_check
    _
  $region111: #{forward.1} parent=0 // pred_check_branch
    %123 = sbr.rel (0) target = $region113
  $region112: #{forward.1} parent=0 // pred_region
    _
  $region113: #{forward.1} parent=0 // pred_fallthru
    _
  // Predicated region
  $region114: #{forward.1} parent=0 // pred_check
    _
  $region115: #{forward.1} parent=0 // pred_check_branch
    %125 = sbr.rel (0) target = $region117
  $region116: #{forward.1} parent=0 // pred_region
    _
  $region117: #{forward.1} parent=0 // pred_fallthru
    _
  // Predicated region
  $region118: #{forward.1} parent=0 // pred_check
    _
  $region119: #{forward.1} parent=0 // pred_check_branch
    %127 = sbr.rel (0) target = $region121
  $region120: #{forward.1} parent=0 // pred_region
    _
  $region121: #{forward.1} parent=0 // pred_fallthru
    _
  // Predicated region
  $region122: #{forward.1} parent=0 // pred_check
    _
  $region123: #{forward.1} parent=0 // pred_check_branch
    %129 = sbr.rel (0) target = $region125
  $region124: #{forward.1} parent=0 // pred_region
    _
  $region125: #{forward.1} parent=0 // pred_fallthru
    _
  %v131 = vld [vmem:[%s1] sm:$0xf]
  %133 = vst [vmem:[#allocation1] ss:$4 sm:$0xff] %v131
  %v134 = vld.sshfl [vmem:[#allocation1] sm:$0xff pattern:$0x73625140]
  %v135 = vld.sshfl [vmem:[#allocation1 + $0x8] sm:$0xff pattern:$0x73625140]
  %v138 = vpack.c.bf16 %v134, %v134
  %v139 = vpack.c.bf16 %v135, %v135
  %v140 = vld [vmem:[%s5] sm:$0xff]
  %v141 = vld [vmem:[%s5 + $0x8] sm:$0xff]
  %v142 = vld [vmem:[%s5 + $0x10] sm:$0xff]
  %v143 = vld [vmem:[%s5 + $0x18] sm:$0xff]
  %v144 = vld [vmem:[%s5 + $0x20] sm:$0xff]
  %v145 = vld [vmem:[%s5 + $0x28] sm:$0xff]
  %v146 = vld [vmem:[%s5 + $0x30] sm:$0xff]
  %v147 = vld [vmem:[%s5 + $0x38] sm:$0xff]
  %v148 = vld [vmem:[%s5 + $0x40] sm:$0xff]
  %v149 = vld [vmem:[%s5 + $0x48] sm:$0xff]
  %v150 = vld [vmem:[%s5 + $0x50] sm:$0xff]
  %v151 = vld [vmem:[%s5 + $0x58] sm:$0xff]
  %v152 = vld [vmem:[%s5 + $0x60] sm:$0xff]
  %v153 = vld [vmem:[%s5 + $0x68] sm:$0xff]
  %v154 = vld [vmem:[%s5 + $0x70] sm:$0xff]
  %v155 = vld [vmem:[%s5 + $0x78] sm:$0xff]
  %v156 = vld [vmem:[%s5 + $0x80] sm:$0xff]
  %v157 = vld [vmem:[%s5 + $0x88] sm:$0xff]
  %v158 = vld [vmem:[%s5 + $0x90] sm:$0xff]
  %v159 = vld [vmem:[%s5 + $0x98] sm:$0xff]
  %v160 = vld [vmem:[%s5 + $0xa0] sm:$0xff]
  %v161 = vld [vmem:[%s5 + $0xa8] sm:$0xff]
  %v162 = vld [vmem:[%s5 + $0xb0] sm:$0xff]
  %v163 = vld [vmem:[%s5 + $0xb8] sm:$0xff]
  %v164 = vld [vmem:[%s5 + $0xc0] sm:$0xff]
  %v165 = vld [vmem:[%s5 + $0xc8] sm:$0xff]
  %v166 = vld [vmem:[%s5 + $0xd0] sm:$0xff]
  %v167 = vld [vmem:[%s5 + $0xd8] sm:$0xff]
  %v168 = vld [vmem:[%s5 + $0xe0] sm:$0xff]
  %v169 = vld [vmem:[%s5 + $0xe8] sm:$0xff]
  %v170 = vld [vmem:[%s5 + $0xf0] sm:$0xff]
  %v171 = vld [vmem:[%s5 + $0xf8] sm:$0xff]
  %v172 = vld [vmem:[%s5 + $0x100] sm:$0xff]
  %v173 = vld [vmem:[%s5 + $0x108] sm:$0xff]
  %v174 = vld [vmem:[%s5 + $0x110] sm:$0xff]
  %v175 = vld [vmem:[%s5 + $0x118] sm:$0xff]
  %v176 = vld [vmem:[%s5 + $0x120] sm:$0xff]
  %v177 = vld [vmem:[%s5 + $0x128] sm:$0xff]
  %v178 = vld [vmem:[%s5 + $0x130] sm:$0xff]
  %v179 = vld [vmem:[%s5 + $0x138] sm:$0xff]
  %v180 = vld [vmem:[%s5 + $0x140] sm:$0xff]
  %v181 = vld [vmem:[%s5 + $0x148] sm:$0xff]
  %v182 = vld [vmem:[%s5 + $0x150] sm:$0xff]
  %v183 = vld [vmem:[%s5 + $0x158] sm:$0xff]
  %v184 = vld [vmem:[%s5 + $0x160] sm:$0xff]
  %v185 = vld [vmem:[%s5 + $0x168] sm:$0xff]
  %v186 = vld [vmem:[%s5 + $0x170] sm:$0xff]
  %v187 = vld [vmem:[%s5 + $0x178] sm:$0xff]
  %v188 = vld [vmem:[%s5 + $0x180] sm:$0xff]
  %v189 = vld [vmem:[%s5 + $0x188] sm:$0xff]
  %v190 = vld [vmem:[%s5 + $0x190] sm:$0xff]
  %v191 = vld [vmem:[%s5 + $0x198] sm:$0xff]
  %v192 = vld [vmem:[%s5 + $0x1a0] sm:$0xff]
  %v193 = vld [vmem:[%s5 + $0x1a8] sm:$0xff]
  %v194 = vld [vmem:[%s5 + $0x1b0] sm:$0xff]
  %v195 = vld [vmem:[%s5 + $0x1b8] sm:$0xff]
  %v196 = vld [vmem:[%s5 + $0x1c0] sm:$0xff]
  %v197 = vld [vmem:[%s5 + $0x1c8] sm:$0xff]
  %v198 = vld [vmem:[%s5 + $0x1d0] sm:$0xff]
  %v199 = vld [vmem:[%s5 + $0x1d8] sm:$0xff]
  %v200 = vld [vmem:[%s5 + $0x1e0] sm:$0xff]
  %v201 = vld [vmem:[%s5 + $0x1e8] sm:$0xff]
  %v202 = vld [vmem:[%s5 + $0x1f0] sm:$0xff]
  %v203 = vld [vmem:[%s5 + $0x1f8] sm:$0xff]
  %v268 = vunpack.c.l.b16 %v140
  %v269 = vunpack.c.h.b16 %v140
  %v270 = vunpack.c.l.b16 %v141
  %v271 = vunpack.c.h.b16 %v141
  %v272 = vunpack.c.l.b16 %v142
  %v273 = vunpack.c.h.b16 %v142
  %v274 = vunpack.c.l.b16 %v143
  %v275 = vunpack.c.h.b16 %v143
  %v276 = vunpack.c.l.b16 %v144
  %v277 = vunpack.c.h.b16 %v144
  %v278 = vunpack.c.l.b16 %v145
  %v279 = vunpack.c.h.b16 %v145
  %v280 = vunpack.c.l.b16 %v146
  %v281 = vunpack.c.h.b16 %v146
  %v282 = vunpack.c.l.b16 %v147
  %v283 = vunpack.c.h.b16 %v147
  %v284 = vunpack.c.l.b16 %v148
  %v285 = vunpack.c.h.b16 %v148
  %v286 = vunpack.c.l.b16 %v149
  %v287 = vunpack.c.h.b16 %v149
  %v288 = vunpack.c.l.b16 %v150
  %v289 = vunpack.c.h.b16 %v150
  %v290 = vunpack.c.l.b16 %v151
  %v291 = vunpack.c.h.b16 %v151
  %v292 = vunpack.c.l.b16 %v152
  %v293 = vunpack.c.h.b16 %v152
  %v294 = vunpack.c.l.b16 %v153
  %v295 = vunpack.c.h.b16 %v153
  %v296 = vunpack.c.l.b16 %v154
  %v297 = vunpack.c.h.b16 %v154
  %v298 = vunpack.c.l.b16 %v155
  %v299 = vunpack.c.h.b16 %v155
  %v300 = vunpack.c.l.b16 %v156
  %v301 = vunpack.c.h.b16 %v156
  %v302 = vunpack.c.l.b16 %v157
  %v303 = vunpack.c.h.b16 %v157
  %v304 = vunpack.c.l.b16 %v158
  %v305 = vunpack.c.h.b16 %v158
  %v306 = vunpack.c.l.b16 %v159
  %v307 = vunpack.c.h.b16 %v159
  %v308 = vunpack.c.l.b16 %v160
  %v309 = vunpack.c.h.b16 %v160
  %v310 = vunpack.c.l.b16 %v161
  %v311 = vunpack.c.h.b16 %v161
  %v312 = vunpack.c.l.b16 %v162
  %v313 = vunpack.c.h.b16 %v162
  %v314 = vunpack.c.l.b16 %v163
  %v315 = vunpack.c.h.b16 %v163
  %v316 = vunpack.c.l.b16 %v164
  %v317 = vunpack.c.h.b16 %v164
  %v318 = vunpack.c.l.b16 %v165
  %v319 = vunpack.c.h.b16 %v165
  %v320 = vunpack.c.l.b16 %v166
  %v321 = vunpack.c.h.b16 %v166
  %v322 = vunpack.c.l.b16 %v167
  %v323 = vunpack.c.h.b16 %v167
  %v324 = vunpack.c.l.b16 %v168
  %v325 = vunpack.c.h.b16 %v168
  %v326 = vunpack.c.l.b16 %v169
  %v327 = vunpack.c.h.b16 %v169
  %v328 = vunpack.c.l.b16 %v170
  %v329 = vunpack.c.h.b16 %v170
  %v330 = vunpack.c.l.b16 %v171
  %v331 = vunpack.c.h.b16 %v171
  %v332 = vunpack.c.l.b16 %v172
  %v333 = vunpack.c.h.b16 %v172
  %v334 = vunpack.c.l.b16 %v173
  %v335 = vunpack.c.h.b16 %v173
  %v336 = vunpack.c.l.b16 %v174
  %v337 = vunpack.c.h.b16 %v174
  %v338 = vunpack.c.l.b16 %v175
  %v339 = vunpack.c.h.b16 %v175
  %v340 = vunpack.c.l.b16 %v176
  %v341 = vunpack.c.h.b16 %v176
  %v342 = vunpack.c.l.b16 %v177
  %v343 = vunpack.c.h.b16 %v177
  %v344 = vunpack.c.l.b16 %v178
  %v345 = vunpack.c.h.b16 %v178
  %v346 = vunpack.c.l.b16 %v179
  %v347 = vunpack.c.h.b16 %v179
  %v348 = vunpack.c.l.b16 %v180
  %v349 = vunpack.c.h.b16 %v180
  %v350 = vunpack.c.l.b16 %v181
  %v351 = vunpack.c.h.b16 %v181
  %v352 = vunpack.c.l.b16 %v182
  %v353 = vunpack.c.h.b16 %v182
  %v354 = vunpack.c.l.b16 %v183
  %v355 = vunpack.c.h.b16 %v183
  %v356 = vunpack.c.l.b16 %v184
  %v357 = vunpack.c.h.b16 %v184
  %v358 = vunpack.c.l.b16 %v185
  %v359 = vunpack.c.h.b16 %v185
  %v360 = vunpack.c.l.b16 %v186
  %v361 = vunpack.c.h.b16 %v186
  %v362 = vunpack.c.l.b16 %v187
  %v363 = vunpack.c.h.b16 %v187
  %v364 = vunpack.c.l.b16 %v188
  %v365 = vunpack.c.h.b16 %v188
  %v366 = vunpack.c.l.b16 %v189
  %v367 = vunpack.c.h.b16 %v189
  %v368 = vunpack.c.l.b16 %v190
  %v369 = vunpack.c.h.b16 %v190
  %v370 = vunpack.c.l.b16 %v191
  %v371 = vunpack.c.h.b16 %v191
  %v372 = vunpack.c.l.b16 %v192
  %v373 = vunpack.c.h.b16 %v192
  %v374 = vunpack.c.l.b16 %v193
  %v375 = vunpack.c.h.b16 %v193
  %v376 = vunpack.c.l.b16 %v194
  %v377 = vunpack.c.h.b16 %v194
  %v378 = vunpack.c.l.b16 %v195
  %v379 = vunpack.c.h.b16 %v195
  %v380 = vunpack.c.l.b16 %v196
  %v381 = vunpack.c.h.b16 %v196
  %v382 = vunpack.c.l.b16 %v197
  %v383 = vunpack.c.h.b16 %v197
  %v384 = vunpack.c.l.b16 %v198
  %v385 = vunpack.c.h.b16 %v198
  %v386 = vunpack.c.l.b16 %v199
  %v387 = vunpack.c.h.b16 %v199
  %v388 = vunpack.c.l.b16 %v200
  %v389 = vunpack.c.h.b16 %v200
  %v390 = vunpack.c.l.b16 %v201
  %v391 = vunpack.c.h.b16 %v201
  %v392 = vunpack.c.l.b16 %v202
  %v393 = vunpack.c.h.b16 %v202
  %v394 = vunpack.c.l.b16 %v203
  %v395 = vunpack.c.h.b16 %v203
  %v396 = vpack.c.b16 %v272, %v268
  %v397 = vpack.c.b16 %v273, %v269
  %v398 = vpack.c.b16 %v274, %v270
  %v399 = vpack.c.b16 %v275, %v271
  %v400 = vpack.c.b16 %v280, %v276
  %v401 = vpack.c.b16 %v281, %v277
  %v402 = vpack.c.b16 %v282, %v278
  %v403 = vpack.c.b16 %v283, %v279
  %v404 = vpack.c.b16 %v288, %v284
  %v405 = vpack.c.b16 %v289, %v285
  %v406 = vpack.c.b16 %v290, %v286
  %v407 = vpack.c.b16 %v291, %v287
  %v408 = vpack.c.b16 %v296, %v292
  %v409 = vpack.c.b16 %v297, %v293
  %v410 = vpack.c.b16 %v298, %v294
  %v411 = vpack.c.b16 %v299, %v295
  %v412 = vpack.c.b16 %v304, %v300
  %v413 = vpack.c.b16 %v305, %v301
  %v414 = vpack.c.b16 %v306, %v302
  %v415 = vpack.c.b16 %v307, %v303
  %v416 = vpack.c.b16 %v312, %v308
  %v417 = vpack.c.b16 %v313, %v309
  %v418 = vpack.c.b16 %v314, %v310
  %v419 = vpack.c.b16 %v315, %v311
  %v420 = vpack.c.b16 %v320, %v316
  %v421 = vpack.c.b16 %v321, %v317
  %v422 = vpack.c.b16 %v322, %v318
  %v423 = vpack.c.b16 %v323, %v319
  %v424 = vpack.c.b16 %v328, %v324
  %v425 = vpack.c.b16 %v329, %v325
  %v426 = vpack.c.b16 %v330, %v326
  %v427 = vpack.c.b16 %v331, %v327
  %v428 = vpack.c.b16 %v336, %v332
  %v429 = vpack.c.b16 %v337, %v333
  %v430 = vpack.c.b16 %v338, %v334
  %v431 = vpack.c.b16 %v339, %v335
  %v432 = vpack.c.b16 %v344, %v340
  %v433 = vpack.c.b16 %v345, %v341
  %v434 = vpack.c.b16 %v346, %v342
  %v435 = vpack.c.b16 %v347, %v343
  %v436 = vpack.c.b16 %v352, %v348
  %v437 = vpack.c.b16 %v353, %v349
  %v438 = vpack.c.b16 %v354, %v350
  %v439 = vpack.c.b16 %v355, %v351
  %v440 = vpack.c.b16 %v360, %v356
  %v441 = vpack.c.b16 %v361, %v357
  %v442 = vpack.c.b16 %v362, %v358
  %v443 = vpack.c.b16 %v363, %v359
  %v444 = vpack.c.b16 %v368, %v364
  %v445 = vpack.c.b16 %v369, %v365
  %v446 = vpack.c.b16 %v370, %v366
  %v447 = vpack.c.b16 %v371, %v367
  %v448 = vpack.c.b16 %v376, %v372
  %v449 = vpack.c.b16 %v377, %v373
  %v450 = vpack.c.b16 %v378, %v374
  %v451 = vpack.c.b16 %v379, %v375
  %v452 = vpack.c.b16 %v384, %v380
  %v453 = vpack.c.b16 %v385, %v381
  %v454 = vpack.c.b16 %v386, %v382
  %v455 = vpack.c.b16 %v387, %v383
  %v456 = vpack.c.b16 %v392, %v388
  %v457 = vpack.c.b16 %v393, %v389
  %v458 = vpack.c.b16 %v394, %v390
  %v459 = vpack.c.b16 %v395, %v391
  %524 = vmatpush.bf16.msra.mxu0 %v424
  %525 = vmatpush.bf16.msra.mxu0 %v420
  %526 = vmatpush.bf16.msra.mxu0 %v416
  %527 = vmatpush.bf16.msra.mxu0 %v412
  %528 = vmatpush.bf16.msra.mxu0 %v408
  %529 = vmatpush.bf16.msra.mxu0 %v404
  %530 = vmatpush.bf16.msra.mxu0 %v400
  %531 = vmatpush.bf16.msra.mxu0 %v396
  %532 = vmatmul.bf16.gmra.mxu0 %v138
  %v533 = vpop.f32.mrf.mxu0
  %v534 = vadd.f32 0.0, %v533
  %v535 = vpop.f32.mrf.mxu0
  %536 = vdwg.mxu0
  %537 = vmatpush.bf16.msra.mxu0 %v456
  %538 = vmatpush.bf16.msra.mxu0 %v452
  %539 = vmatpush.bf16.msra.mxu0 %v448
  %540 = vmatpush.bf16.msra.mxu0 %v444
  %541 = vmatpush.bf16.msra.mxu0 %v440
  %542 = vmatpush.bf16.msra.mxu0 %v436
  %543 = vmatpush.bf16.msra.mxu0 %v432
  %544 = vmatpush.bf16.msra.mxu0 %v428
  %545 = vmatmul.bf16.gmra.mxu0 %v139
  %v546 = vpop.f32.mrf.mxu0
  %v547 = vadd.f32 %v534, %v546
  %v548 = vpop.f32.mrf.mxu0
  %549 = vdwg.mxu0
  %550 = vmatpush.bf16.msra.mxu0 %v425
  %551 = vmatpush.bf16.msra.mxu0 %v421
  %552 = vmatpush.bf16.msra.mxu0 %v417
  %553 = vmatpush.bf16.msra.mxu0 %v413
  %554 = vmatpush.bf16.msra.mxu0 %v409
  %555 = vmatpush.bf16.msra.mxu0 %v405
  %556 = vmatpush.bf16.msra.mxu0 %v401
  %557 = vmatpush.bf16.msra.mxu0 %v397
  %558 = vmatmul.bf16.gmra.mxu0 %v138
  %v559 = vpop.f32.mrf.mxu0
  %v560 = vadd.f32 0.0, %v559
  %v561 = vpop.f32.mrf.mxu0
  %562 = vdwg.mxu0
  %563 = vmatpush.bf16.msra.mxu0 %v457
  %564 = vmatpush.bf16.msra.mxu0 %v453
  %565 = vmatpush.bf16.msra.mxu0 %v449
  %566 = vmatpush.bf16.msra.mxu0 %v445
  %567 = vmatpush.bf16.msra.mxu0 %v441
  %568 = vmatpush.bf16.msra.mxu0 %v437
  %569 = vmatpush.bf16.msra.mxu0 %v433
  %570 = vmatpush.bf16.msra.mxu0 %v429
  %571 = vmatmul.bf16.gmra.mxu0 %v139
  %v572 = vpop.f32.mrf.mxu0
  %v573 = vadd.f32 %v560, %v572
  %v574 = vpop.f32.mrf.mxu0
  %575 = vdwg.mxu0
  %576 = vmatpush.bf16.msra.mxu0 %v426
  %577 = vmatpush.bf16.msra.mxu0 %v422
  %578 = vmatpush.bf16.msra.mxu0 %v418
  %579 = vmatpush.bf16.msra.mxu0 %v414
  %580 = vmatpush.bf16.msra.mxu0 %v410
  %581 = vmatpush.bf16.msra.mxu0 %v406
  %582 = vmatpush.bf16.msra.mxu0 %v402
  %583 = vmatpush.bf16.msra.mxu0 %v398
  %584 = vmatmul.bf16.gmra.mxu0 %v138
  %v585 = vpop.f32.mrf.mxu0
  %v586 = vadd.f32 0.0, %v585
  %v587 = vpop.f32.mrf.mxu0
  %588 = vdwg.mxu0
  %589 = vmatpush.bf16.msra.mxu0 %v458
  %590 = vmatpush.bf16.msra.mxu0 %v454
  %591 = vmatpush.bf16.msra.mxu0 %v450
  %592 = vmatpush.bf16.msra.mxu0 %v446
  %593 = vmatpush.bf16.msra.mxu0 %v442
  %594 = vmatpush.bf16.msra.mxu0 %v438
  %595 = vmatpush.bf16.msra.mxu0 %v434
  %596 = vmatpush.bf16.msra.mxu0 %v430
  %597 = vmatmul.bf16.gmra.mxu0 %v139
  %v598 = vpop.f32.mrf.mxu0
  %v599 = vadd.f32 %v586, %v598
  %v600 = vpop.f32.mrf.mxu0
  %601 = vdwg.mxu0
  %602 = vmatpush.bf16.msra.mxu0 %v427
  %603 = vmatpush.bf16.msra.mxu0 %v423
  %604 = vmatpush.bf16.msra.mxu0 %v419
  %605 = vmatpush.bf16.msra.mxu0 %v415
  %606 = vmatpush.bf16.msra.mxu0 %v411
  %607 = vmatpush.bf16.msra.mxu0 %v407
  %608 = vmatpush.bf16.msra.mxu0 %v403
  %609 = vmatpush.bf16.msra.mxu0 %v399
  %610 = vmatmul.bf16.gmra.mxu0 %v138
  %v611 = vpop.f32.mrf.mxu0
  %v612 = vadd.f32 0.0, %v611
  %v613 = vpop.f32.mrf.mxu0
  %614 = vdwg.mxu0
  %615 = vmatpush.bf16.msra.mxu0 %v459
  %616 = vmatpush.bf16.msra.mxu0 %v455
  %617 = vmatpush.bf16.msra.mxu0 %v451
  %618 = vmatpush.bf16.msra.mxu0 %v447
  %619 = vmatpush.bf16.msra.mxu0 %v443
  %620 = vmatpush.bf16.msra.mxu0 %v439
  %621 = vmatpush.bf16.msra.mxu0 %v435
  %622 = vmatpush.bf16.msra.mxu0 %v431
  %623 = vmatmul.bf16.gmra.mxu0 %v139
  %v624 = vpop.f32.mrf.mxu0
  %v625 = vadd.f32 %v612, %v624
  %v626 = vpop.f32.mrf.mxu0
  %627 = vdwg.mxu0
  %v628 = vpack.c.bf16 %v573, %v547
  %v629 = vpack.c.bf16 %v625, %v599
  %v630 = vld [vmem:[%s9] sm:$0xff]
  %v631 = vld [vmem:[%s9 + $0x8] sm:$0xff]
  %v632 = vld [vmem:[%s7] sm:$0xf]
  %v633 = vld [vmem:[%s7 + $0x4] sm:$0xf]
  %v636 = vunpack.c.l.b16 %v632
  %v637 = vunpack.c.l.b16 %v633
  %v638 = vpack.c.b16 %v637, %v636
  %vm639 = vcmask 15360
  %v641 = vsel %vm639, %v638, 0
  %vm643 = vcmask 1040384
  %v645 = vsel %vm643, %v628, 0
  %647 = vmatpush.bf16.msra.mxu0 0
  %648 = vmatpush.bf16.msra.mxu0 0
  %649 = vmatpush.bf16.msra.mxu0 0
  %650 = vmatpush.bf16.msra.mxu0 0
  %651 = vmatpush.bf16.msra.mxu0 0
  %652 = vmatpush.bf16.msra.mxu0 0
  %653 = vmatpush.bf16.msra.mxu0 0
  %654 = vmatpush.bf16.msra.mxu0 %v645
  %655 = vmatmul.bf16.gmra.mxu0 %v641
  %v656 = vpop.f32.mrf.mxu0
  %v657 = vadd.f32 0.0, %v656
  %v658 = vpop.f32.mrf.mxu0
  %v659 = vadd.f32 0.0, %v658
  %660 = vdwg.mxu0
  %662 = vset.pattern.permute.xlu0 0
  %663 = vperm.xlu0 %662, %v630
  %v664 = vpop.permute.xlu0 %663
  %667 = vset.pattern.permute.xlu0 0
  %668 = vperm.xlu0 %667, %v631
  %v669 = vpop.permute.xlu0 %668
  %v671 = vadd.f32 %v664, %v657
  %v672 = vadd.f32 %v669, %v659
  %s673 = scalar_lea.vmem %s7, 8
  %v674 = vld [vmem:[%s673] sm:$0xf]
  %v675 = vld [vmem:[%s673 + $0x4] sm:$0xf]
  %v678 = vunpack.c.l.b16 %v674
  %v679 = vunpack.c.l.b16 %v675
  %v680 = vpack.c.b16 %v679, %v678
  %v682 = vunpack.c.h.b16 %v628
  %v683 = vpack.c.b16 %v682, %v682
  %v685 = vsel %vm639, %v680, 0
  %v688 = vsel %vm643, %v683, 0
  %690 = vmatpush.bf16.msra.mxu0 0
  %691 = vmatpush.bf16.msra.mxu0 0
  %692 = vmatpush.bf16.msra.mxu0 0
  %693 = vmatpush.bf16.msra.mxu0 0
  %694 = vmatpush.bf16.msra.mxu0 0
  %695 = vmatpush.bf16.msra.mxu0 0
  %696 = vmatpush.bf16.msra.mxu0 0
  %697 = vmatpush.bf16.msra.mxu0 %v688
  %698 = vmatmul.bf16.gmra.mxu0 %v685
  %v699 = vpop.f32.mrf.mxu0
  %v700 = vadd.f32 0.0, %v699
  %v701 = vpop.f32.mrf.mxu0
  %v702 = vadd.f32 0.0, %v701
  %703 = vdwg.mxu0
  %v704 = vadd.f32 %v671, %v700
  %v705 = vadd.f32 %v672, %v702
  %s706 = scalar_lea.vmem %s7, 16
  %v707 = vld [vmem:[%s706] sm:$0xf]
  %v708 = vld [vmem:[%s706 + $0x4] sm:$0xf]
  %v711 = vunpack.c.l.b16 %v707
  %v712 = vunpack.c.l.b16 %v708
  %v713 = vpack.c.b16 %v712, %v711
  %v715 = vsel %vm639, %v713, 0
  %v718 = vsel %vm643, %v629, 0
  %720 = vmatpush.bf16.msra.mxu0 0
  %721 = vmatpush.bf16.msra.mxu0 0
  %722 = vmatpush.bf16.msra.mxu0 0
  %723 = vmatpush.bf16.msra.mxu0 0
  %724 = vmatpush.bf16.msra.mxu0 0
  %725 = vmatpush.bf16.msra.mxu0 0
  %726 = vmatpush.bf16.msra.mxu0 0
  %727 = vmatpush.bf16.msra.mxu0 %v718
  %728 = vmatmul.bf16.gmra.mxu0 %v715
  %v729 = vpop.f32.mrf.mxu0
  %v730 = vadd.f32 0.0, %v729
  %v731 = vpop.f32.mrf.mxu0
  %v732 = vadd.f32 0.0, %v731
  %733 = vdwg.mxu0
  %v734 = vadd.f32 %v704, %v730
  %v735 = vadd.f32 %v705, %v732
  %s736 = scalar_lea.vmem %s7, 24
  %v737 = vld [vmem:[%s736] sm:$0xf]
  %v738 = vld [vmem:[%s736 + $0x4] sm:$0xf]
  %v741 = vunpack.c.l.b16 %v737
  %v742 = vunpack.c.l.b16 %v738
  %v743 = vpack.c.b16 %v742, %v741
  %v745 = vunpack.c.h.b16 %v629
  %v746 = vpack.c.b16 %v745, %v745
  %v748 = vsel %vm639, %v743, 0
  %v751 = vsel %vm643, %v746, 0
  %753 = vmatpush.bf16.msra.mxu0 0
  %754 = vmatpush.bf16.msra.mxu0 0
  %755 = vmatpush.bf16.msra.mxu0 0
  %756 = vmatpush.bf16.msra.mxu0 0
  %757 = vmatpush.bf16.msra.mxu0 0
  %758 = vmatpush.bf16.msra.mxu0 0
  %759 = vmatpush.bf16.msra.mxu0 0
  %760 = vmatpush.bf16.msra.mxu0 %v751
  %761 = vmatmul.bf16.gmra.mxu0 %v748
  %v762 = vpop.f32.mrf.mxu0
  %v763 = vadd.f32 0.0, %v762
  %v764 = vpop.f32.mrf.mxu0
  %v765 = vadd.f32 0.0, %v764
  %766 = vdwg.mxu0
  %v767 = vadd.f32 %v734, %v763
  %v768 = vadd.f32 %v735, %v765
  %v769 = vmax.f32 %v767, 0.0
  %v770 = vmax.f32 %v768, 0.0
  %v771 = vpack.c.bf16 %v770, %v769
  %v772 = vld [vmem:[%s11] sm:$0xff]
  %v773 = vld [vmem:[%s11 + $0x8] sm:$0xff]
  %v774 = vld [vmem:[%s11 + $0x10] sm:$0xff]
  %v775 = vld [vmem:[%s11 + $0x18] sm:$0xff]
  %v776 = vld [vmem:[%s11 + $0x20] sm:$0xff]
  %v777 = vld [vmem:[%s11 + $0x28] sm:$0xff]
  %v778 = vld [vmem:[%s11 + $0x30] sm:$0xff]
  %v779 = vld [vmem:[%s11 + $0x38] sm:$0xff]
  %v780 = vld [vmem:[%s11 + $0x40] sm:$0xff]
  %v781 = vld [vmem:[%s11 + $0x48] sm:$0xff]
  %v782 = vld [vmem:[%s11 + $0x50] sm:$0xff]
  %v783 = vld [vmem:[%s11 + $0x58] sm:$0xff]
  %v784 = vld [vmem:[%s11 + $0x60] sm:$0xff]
  %v785 = vld [vmem:[%s11 + $0x68] sm:$0xff]
  %v786 = vld [vmem:[%s11 + $0x70] sm:$0xff]
  %v787 = vld [vmem:[%s11 + $0x78] sm:$0xff]
  %v804 = vunpack.c.l.b16 %v772
  %v805 = vunpack.c.h.b16 %v772
  %v806 = vunpack.c.l.b16 %v773
  %v807 = vunpack.c.h.b16 %v773
  %v808 = vunpack.c.l.b16 %v774
  %v809 = vunpack.c.h.b16 %v774
  %v810 = vunpack.c.l.b16 %v775
  %v811 = vunpack.c.h.b16 %v775
  %v812 = vunpack.c.l.b16 %v776
  %v813 = vunpack.c.h.b16 %v776
  %v814 = vunpack.c.l.b16 %v777
  %v815 = vunpack.c.h.b16 %v777
  %v816 = vunpack.c.l.b16 %v778
  %v817 = vunpack.c.h.b16 %v778
  %v818 = vunpack.c.l.b16 %v779
  %v819 = vunpack.c.h.b16 %v779
  %v820 = vunpack.c.l.b16 %v780
  %v821 = vunpack.c.h.b16 %v780
  %v822 = vunpack.c.l.b16 %v781
  %v823 = vunpack.c.h.b16 %v781
  %v824 = vunpack.c.l.b16 %v782
  %v825 = vunpack.c.h.b16 %v782
  %v826 = vunpack.c.l.b16 %v783
  %v827 = vunpack.c.h.b16 %v783
  %v828 = vunpack.c.l.b16 %v784
  %v829 = vunpack.c.h.b16 %v784
  %v830 = vunpack.c.l.b16 %v785
  %v831 = vunpack.c.h.b16 %v785
  %v832 = vunpack.c.l.b16 %v786
  %v833 = vunpack.c.h.b16 %v786
  %v834 = vunpack.c.l.b16 %v787
  %v835 = vunpack.c.h.b16 %v787
  %v836 = vpack.c.b16 %v806, %v804
  %v837 = vpack.c.b16 %v807, %v805
  %v838 = vpack.c.b16 %v810, %v808
  %v839 = vpack.c.b16 %v811, %v809
  %v840 = vpack.c.b16 %v814, %v812
  %v841 = vpack.c.b16 %v815, %v813
  %v842 = vpack.c.b16 %v818, %v816
  %v843 = vpack.c.b16 %v819, %v817
  %v844 = vpack.c.b16 %v822, %v820
  %v845 = vpack.c.b16 %v823, %v821
  %v846 = vpack.c.b16 %v826, %v824
  %v847 = vpack.c.b16 %v827, %v825
  %v848 = vpack.c.b16 %v830, %v828
  %v849 = vpack.c.b16 %v831, %v829
  %v850 = vpack.c.b16 %v834, %v832
  %v851 = vpack.c.b16 %v835, %v833
  %868 = vmatpush.bf16.msra.mxu0 %v850
  %869 = vmatpush.bf16.msra.mxu0 %v848
  %870 = vmatpush.bf16.msra.mxu0 %v846
  %871 = vmatpush.bf16.msra.mxu0 %v844
  %872 = vmatpush.bf16.msra.mxu0 %v842
  %873 = vmatpush.bf16.msra.mxu0 %v840
  %874 = vmatpush.bf16.msra.mxu0 %v838
  %875 = vmatpush.bf16.msra.mxu0 %v836
  %876 = vmatmul.bf16.gmra.mxu0 %v771
  %v877 = vpop.f32.mrf.mxu0
  %v878 = vadd.f32 0.0, %v877
  %v879 = vpop.f32.mrf.mxu0
  %v880 = vadd.f32 0.0, %v879
  %881 = vdwg.mxu0
  %882 = vmatpush.bf16.msra.mxu0 %v851
  %883 = vmatpush.bf16.msra.mxu0 %v849
  %884 = vmatpush.bf16.msra.mxu0 %v847
  %885 = vmatpush.bf16.msra.mxu0 %v845
  %886 = vmatpush.bf16.msra.mxu0 %v843
  %887 = vmatpush.bf16.msra.mxu0 %v841
  %888 = vmatpush.bf16.msra.mxu0 %v839
  %889 = vmatpush.bf16.msra.mxu0 %v837
  %890 = vmatmul.bf16.gmra.mxu0 %v771
  %v891 = vpop.f32.mrf.mxu0
  %v892 = vadd.f32 0.0, %v891
  %v893 = vpop.f32.mrf.mxu0
  %v894 = vadd.f32 0.0, %v893
  %895 = vdwg.mxu0
  %v896 = vpack.c.bf16 %v892, %v878
  %v897 = vpack.c.bf16 %v894, %v880
  %v898 = vld [vmem:[%s15] sm:$0xff]
  %v899 = vld [vmem:[%s15 + $0x8] sm:$0xff]
  %v900 = vld [vmem:[%s13] sm:$0xf]
  %v901 = vld [vmem:[%s13 + $0x4] sm:$0xf]
  %v904 = vunpack.c.l.b16 %v900
  %v905 = vunpack.c.l.b16 %v901
  %v906 = vpack.c.b16 %v905, %v904
  %v909 = vunpack.c.l.b16 %v896
  %v910 = vunpack.c.l.b16 %v897
  %v911 = vpack.c.b16 %v910, %v909
  %vm913 = vcmask 130048
  %v915 = vsel %vm913, %v906, 0
  %917 = vmatpush.bf16.msra.mxu0 0
  %918 = vmatpush.bf16.msra.mxu0 0
  %919 = vmatpush.bf16.msra.mxu0 0
  %920 = vmatpush.bf16.msra.mxu0 0
  %921 = vmatpush.bf16.msra.mxu0 0
  %922 = vmatpush.bf16.msra.mxu0 0
  %923 = vmatpush.bf16.msra.mxu0 0
  %924 = vmatpush.bf16.msra.mxu0 %v911
  %925 = vmatmul.bf16.gmra.mxu0 %v915
  %v926 = vpop.f32.mrf.mxu0
  %v927 = vadd.f32 0.0, %v926
  %v928 = vpop.f32.mrf.mxu0
  %v929 = vadd.f32 0.0, %v928
  %930 = vdwg.mxu0
  %932 = vset.pattern.permute.xlu0 0
  %933 = vperm.xlu0 %932, %v898
  %v934 = vpop.permute.xlu0 %933
  %937 = vset.pattern.permute.xlu0 0
  %938 = vperm.xlu0 %937, %v899
  %v939 = vpop.permute.xlu0 %938
  %v941 = vadd.f32 %v934, %v927
  %v942 = vadd.f32 %v939, %v929
  %s943 = scalar_lea.vmem %s13, 8
  %v944 = vld [vmem:[%s943] sm:$0xf]
  %v945 = vld [vmem:[%s943 + $0x4] sm:$0xf]
  %v948 = vunpack.c.l.b16 %v944
  %v949 = vunpack.c.l.b16 %v945
  %v950 = vpack.c.b16 %v949, %v948
  %951 = vrot.lane.b32.xlu0 %v911, 64
  %v952 = vpop.permute.xlu0 %951
  %v955 = vsel %vm913, %v950, 0
  %957 = vmatpush.bf16.msra.mxu0 0
  %958 = vmatpush.bf16.msra.mxu0 0
  %959 = vmatpush.bf16.msra.mxu0 0
  %960 = vmatpush.bf16.msra.mxu0 0
  %961 = vmatpush.bf16.msra.mxu0 0
  %962 = vmatpush.bf16.msra.mxu0 0
  %963 = vmatpush.bf16.msra.mxu0 0
  %964 = vmatpush.bf16.msra.mxu0 %v952
  %965 = vmatmul.bf16.gmra.mxu0 %v955
  %v966 = vpop.f32.mrf.mxu0
  %v967 = vadd.f32 0.0, %v966
  %v968 = vpop.f32.mrf.mxu0
  %v969 = vadd.f32 0.0, %v968
  %970 = vdwg.mxu0
  %v971 = vadd.f32 %v941, %v967
  %v972 = vadd.f32 %v942, %v969
  %s973 = scalar_lea.vmem %s13, 16
  %v974 = vld [vmem:[%s973] sm:$0xf]
  %v975 = vld [vmem:[%s973 + $0x4] sm:$0xf]
  %v978 = vunpack.c.l.b16 %v974
  %v979 = vunpack.c.l.b16 %v975
  %v980 = vpack.c.b16 %v979, %v978
  %v981 = vunpack.c.h.b16 %v896
  %v982 = vunpack.c.h.b16 %v897
  %v983 = vpack.c.b16 %v982, %v981
  %v986 = vsel %vm913, %v980, 0
  %988 = vmatpush.bf16.msra.mxu0 0
  %989 = vmatpush.bf16.msra.mxu0 0
  %990 = vmatpush.bf16.msra.mxu0 0
  %991 = vmatpush.bf16.msra.mxu0 0
  %992 = vmatpush.bf16.msra.mxu0 0
  %993 = vmatpush.bf16.msra.mxu0 0
  %994 = vmatpush.bf16.msra.mxu0 0
  %995 = vmatpush.bf16.msra.mxu0 %v983
  %996 = vmatmul.bf16.gmra.mxu0 %v986
  %v997 = vpop.f32.mrf.mxu0
  %v998 = vadd.f32 0.0, %v997
  %v999 = vpop.f32.mrf.mxu0
  %v1000 = vadd.f32 0.0, %v999
  %1001 = vdwg.mxu0
  %v1002 = vadd.f32 %v971, %v998
  %v1003 = vadd.f32 %v972, %v1000
  %s1004 = scalar_lea.vmem %s13, 24
  %v1005 = vld [vmem:[%s1004] sm:$0xf]
  %v1006 = vld [vmem:[%s1004 + $0x4] sm:$0xf]
  %v1009 = vunpack.c.l.b16 %v1005
  %v1010 = vunpack.c.l.b16 %v1006
  %v1011 = vpack.c.b16 %v1010, %v1009
  %1012 = vrot.lane.b32.xlu0 %v983, 64
  %v1013 = vpop.permute.xlu0 %1012
  %v1016 = vsel %vm913, %v1011, 0
  %1018 = vmatpush.bf16.msra.mxu0 0
  %1019 = vmatpush.bf16.msra.mxu0 0
  %1020 = vmatpush.bf16.msra.mxu0 0
  %1021 = vmatpush.bf16.msra.mxu0 0
  %1022 = vmatpush.bf16.msra.mxu0 0
  %1023 = vmatpush.bf16.msra.mxu0 0
  %1024 = vmatpush.bf16.msra.mxu0 0
  %1025 = vmatpush.bf16.msra.mxu0 %v1013
  %1026 = vmatmul.bf16.gmra.mxu0 %v1016
  %v1027 = vpop.f32.mrf.mxu0
  %v1028 = vadd.f32 0.0, %v1027
  %v1029 = vpop.f32.mrf.mxu0
  %v1030 = vadd.f32 0.0, %v1029
  %1031 = vdwg.mxu0
  %v1032 = vadd.f32 %v1002, %v1028
  %v1033 = vadd.f32 %v1003, %v1030
  %v1034 = vmax.f32 %v1032, 0.0
  %v1035 = vmax.f32 %v1033, 0.0
  %v1036 = vpack.c.bf16 %v1035, %v1034
  %v1037 = vld [vmem:[%s17] sm:$0xf]
  %v1038 = vld [vmem:[%s17 + $0x4] sm:$0xf]
  %v1039 = vld [vmem:[%s17 + $0x8] sm:$0xf]
  %v1040 = vld [vmem:[%s17 + $0xc] sm:$0xf]
  %v1041 = vld [vmem:[%s17 + $0x10] sm:$0xf]
  %v1042 = vld [vmem:[%s17 + $0x14] sm:$0xf]
  %v1043 = vld [vmem:[%s17 + $0x18] sm:$0xf]
  %v1044 = vld [vmem:[%s17 + $0x1c] sm:$0xf]
  %v1053 = vunpack.c.l.b16 %v1037
  %v1054 = vunpack.c.l.b16 %v1038
  %v1055 = vunpack.c.l.b16 %v1039
  %v1056 = vunpack.c.l.b16 %v1040
  %v1057 = vunpack.c.l.b16 %v1041
  %v1058 = vunpack.c.l.b16 %v1042
  %v1059 = vunpack.c.l.b16 %v1043
  %v1060 = vunpack.c.l.b16 %v1044
  %v1061 = vpack.c.b16 %v1054, %v1053
  %v1062 = vpack.c.b16 %v1056, %v1055
  %v1063 = vpack.c.b16 %v1058, %v1057
  %v1064 = vpack.c.b16 %v1060, %v1059
  %vm1069 = vcmask 523264
  %v1071 = vsel %vm1069, %v1036, 0
  %1073 = vmatpush.bf16.msra.mxu0 0
  %1074 = vmatpush.bf16.msra.mxu0 0
  %1075 = vmatpush.bf16.msra.mxu0 0
  %1076 = vmatpush.bf16.msra.mxu0 0
  %1077 = vmatpush.bf16.msra.mxu0 %v1064
  %1078 = vmatpush.bf16.msra.mxu0 %v1063
  %1079 = vmatpush.bf16.msra.mxu0 %v1062
  %1080 = vmatpush.bf16.msra.mxu0 %v1061
  %1081 = vmatmul.bf16.gmra.mxu0 %v1071
  %v1082 = vpop.f32.mrf.mxu0
  %v1083 = vadd.f32 0.0, %v1082
  %v1084 = vpop.f32.mrf.mxu0
  %v1085 = vadd.f32 0.0, %v1084
  %1086 = vdwg.mxu0
  %v1087 = vpack.c.bf16 %v1083, %v1083
  %v1088 = vpack.c.bf16 %v1085, %v1085
  %v1089 = vld [vmem:[%s21] sm:$0x3]
  %v1090 = vld [vmem:[%s19] sm:$0x1]
  %v1093 = vunpack.c.l.b16 %v1087
  %v1094 = vunpack.c.l.b16 %v1088
  %v1095 = vpack.c.b16 %v1094, %v1093
  %v1098 = vsel %vm913, %v1090, 0
  %1100 = vmatpush.bf16.msra.mxu0 0
  %1101 = vmatpush.bf16.msra.mxu0 0
  %1102 = vmatpush.bf16.msra.mxu0 0
  %1103 = vmatpush.bf16.msra.mxu0 0
  %1104 = vmatpush.bf16.msra.mxu0 0
  %1105 = vmatpush.bf16.msra.mxu0 0
  %1106 = vmatpush.bf16.msra.mxu0 0
  %1107 = vmatpush.bf16.msra.mxu0 %v1095
  %1108 = vmatmul.bf16.gmra.mxu0 %v1098
  %v1109 = vpop.f32.mrf.mxu0
  %v1110 = vadd.f32 0.0, %v1109
  %v1111 = vpop.f32.mrf.mxu0
  %1112 = vdwg.mxu0
  %1114 = vset.pattern.permute.xlu0 0
  %1115 = vperm.xlu0 %1114, %v1089
  %v1116 = vpop.permute.xlu0 %1115
  %v1118 = vadd.f32 %v1116, %v1110
  %s1119 = scalar_lea.vmem %s19, 1
  %v1120 = vld [vmem:[%s1119] sm:$0x1]
  %1121 = vrot.lane.b32.xlu0 %v1095, 96
  %v1122 = vpop.permute.xlu0 %1121
  %v1125 = vsel %vm913, %v1120, 0
  %1127 = vmatpush.bf16.msra.mxu0 0
  %1128 = vmatpush.bf16.msra.mxu0 0
  %1129 = vmatpush.bf16.msra.mxu0 0
  %1130 = vmatpush.bf16.msra.mxu0 0
  %1131 = vmatpush.bf16.msra.mxu0 0
  %1132 = vmatpush.bf16.msra.mxu0 0
  %1133 = vmatpush.bf16.msra.mxu0 0
  %1134 = vmatpush.bf16.msra.mxu0 %v1122
  %1135 = vmatmul.bf16.gmra.mxu0 %v1125
  %v1136 = vpop.f32.mrf.mxu0
  %v1137 = vadd.f32 0.0, %v1136
  %v1138 = vpop.f32.mrf.mxu0
  %1139 = vdwg.mxu0
  %v1140 = vadd.f32 %v1118, %v1137
  %s1141 = scalar_lea.vmem %s19, 2
  %v1142 = vld [vmem:[%s1141] sm:$0x1]
  %1143 = vrot.lane.b32.xlu0 %v1095, 64
  %v1144 = vpop.permute.xlu0 %1143
  %v1147 = vsel %vm913, %v1142, 0
  %1149 = vmatpush.bf16.msra.mxu0 0
  %1150 = vmatpush.bf16.msra.mxu0 0
  %1151 = vmatpush.bf16.msra.mxu0 0
  %1152 = vmatpush.bf16.msra.mxu0 0
  %1153 = vmatpush.bf16.msra.mxu0 0
  %1154 = vmatpush.bf16.msra.mxu0 0
  %1155 = vmatpush.bf16.msra.mxu0 0
  %1156 = vmatpush.bf16.msra.mxu0 %v1144
  %1157 = vmatmul.bf16.gmra.mxu0 %v1147
  %v1158 = vpop.f32.mrf.mxu0
  %v1159 = vadd.f32 0.0, %v1158
  %v1160 = vpop.f32.mrf.mxu0
  %1161 = vdwg.mxu0
  %v1162 = vadd.f32 %v1140, %v1159
  %s1163 = scalar_lea.vmem %s19, 3
  %v1164 = vld [vmem:[%s1163] sm:$0x1]
  %1165 = vrot.lane.b32.xlu0 %v1095, 32
  %v1166 = vpop.permute.xlu0 %1165
  %v1169 = vsel %vm913, %v1164, 0
  %1171 = vmatpush.bf16.msra.mxu0 0
  %1172 = vmatpush.bf16.msra.mxu0 0
  %1173 = vmatpush.bf16.msra.mxu0 0
  %1174 = vmatpush.bf16.msra.mxu0 0
  %1175 = vmatpush.bf16.msra.mxu0 0
  %1176 = vmatpush.bf16.msra.mxu0 0
  %1177 = vmatpush.bf16.msra.mxu0 0
  %1178 = vmatpush.bf16.msra.mxu0 %v1166
  %1179 = vmatmul.bf16.gmra.mxu0 %v1169
  %v1180 = vpop.f32.mrf.mxu0
  %v1181 = vadd.f32 0.0, %v1180
  %v1182 = vpop.f32.mrf.mxu0
  %1183 = vdwg.mxu0
  %v1184 = vadd.f32 %v1162, %v1181
  %v1185 = vmax.f32 %v1184, 0.0
  %v1186 = vpack.c.bf16 %v1185, %v1185
  %v1187 = vld [vmem:[%s23] sm:$0xf]
  %v1188 = vld [vmem:[%s23 + $0x4] sm:$0xf]
  %v1189 = vld [vmem:[%s23 + $0x8] sm:$0xf]
  %v1190 = vld [vmem:[%s23 + $0xc] sm:$0xf]
  %v1191 = vld [vmem:[%s25] sm:$0x1]
  %v1193 = vperm.slane %v1191, 0
  %v1199 = vunpack.c.l.b16 %v1187
  %v1200 = vunpack.c.l.b16 %v1188
  %v1201 = vunpack.c.l.b16 %v1189
  %v1202 = vunpack.c.l.b16 %v1190
  %v1203 = vpack.c.b16 %v1200, %v1199
  %v1204 = vpack.c.b16 %v1202, %v1201
  %vm1207 = vcmask 261120
  %v1209 = vsel %vm1207, %v1186, 0
  %1211 = vmatpush.bf16.msra.mxu0 0
  %1212 = vmatpush.bf16.msra.mxu0 0
  %1213 = vmatpush.bf16.msra.mxu0 0
  %1214 = vmatpush.bf16.msra.mxu0 0
  %1215 = vmatpush.bf16.msra.mxu0 0
  %1216 = vmatpush.bf16.msra.mxu0 0
  %1217 = vmatpush.bf16.msra.mxu0 %v1204
  %1218 = vmatpush.bf16.msra.mxu0 %v1203
  %1219 = vmatmul.bf16.gmra.mxu0 %v1209
  %v1220 = vpop.f32.mrf.mxu0
  %v1221 = vadd.f32 %v1193, %v1220
  %v1222 = vpop.f32.mrf.mxu0
  %1223 = vdwg.mxu0
  %v1224 = vld [vmem:[%s3] sm:$0xff]
  %v1225 = vld [vmem:[%s3 + $0x8] sm:$0xff]
  %v1226 = vld [vmem:[%s3 + $0x10] sm:$0xff]
  %v1227 = vld [vmem:[%s3 + $0x18] sm:$0xff]
  %v1228 = vld [vmem:[%s3 + $0x20] sm:$0xff]
  %v1229 = vld [vmem:[%s3 + $0x28] sm:$0xff]
  %v1230 = vld [vmem:[%s3 + $0x30] sm:$0xff]
  %v1231 = vld [vmem:[%s3 + $0x38] sm:$0xff]
  %v1232 = vld [vmem:[%s3 + $0x40] sm:$0xff]
  %v1233 = vld [vmem:[%s3 + $0x48] sm:$0xff]
  %v1234 = vld [vmem:[%s3 + $0x50] sm:$0xff]
  %v1235 = vld [vmem:[%s3 + $0x58] sm:$0xff]
  %v1236 = vld [vmem:[%s3 + $0x60] sm:$0xff]
  %v1237 = vld [vmem:[%s3 + $0x68] sm:$0xff]
  %v1238 = vld [vmem:[%s3 + $0x70] sm:$0xff]
  %v1239 = vld [vmem:[%s3 + $0x78] sm:$0xff]
  %v1240 = vld [vmem:[%s3 + $0x80] sm:$0xff]
  %v1241 = vld [vmem:[%s3 + $0x88] sm:$0xff]
  %v1242 = vld [vmem:[%s3 + $0x90] sm:$0xff]
  %v1243 = vld [vmem:[%s3 + $0x98] sm:$0xff]
  %v1244 = vld [vmem:[%s3 + $0xa0] sm:$0xff]
  %v1245 = vld [vmem:[%s3 + $0xa8] sm:$0xff]
  %v1246 = vld [vmem:[%s3 + $0xb0] sm:$0xff]
  %v1247 = vld [vmem:[%s3 + $0xb8] sm:$0xff]
  %v1248 = vpack.c.bf16 %v1225, %v1224
  %v1249 = vpack.c.bf16 %v1227, %v1226
  %v1250 = vpack.c.bf16 %v1229, %v1228
  %v1251 = vpack.c.bf16 %v1231, %v1230
  %v1252 = vpack.c.bf16 %v1233, %v1232
  %v1253 = vpack.c.bf16 %v1235, %v1234
  %v1254 = vpack.c.bf16 %v1237, %v1236
  %v1255 = vpack.c.bf16 %v1239, %v1238
  %v1256 = vpack.c.bf16 %v1241, %v1240
  %v1257 = vpack.c.bf16 %v1243, %v1242
  %v1258 = vpack.c.bf16 %v1245, %v1244
  %v1259 = vpack.c.bf16 %v1247, %v1246
  %v1260 = vld [vmem:[%s27] sm:$0xf]
  %v1261 = vld [vmem:[%s27 + $0x4] sm:$0xf]
  %v1262 = vld [vmem:[%s27 + $0x8] sm:$0xf]
  %v1263 = vld [vmem:[%s27 + $0xc] sm:$0xf]
  %v1268 = vunpack.c.l.b16 %v1260
  %v1269 = vunpack.c.l.b16 %v1261
  %v1270 = vunpack.c.l.b16 %v1262
  %v1271 = vunpack.c.l.b16 %v1263
  %v1272 = vpack.c.b16 %v1269, %v1268
  %v1273 = vpack.c.b16 %v1271, %v1270
  %v1277 = vsel %vm1207, %v1248, 0
  %v1280 = vsel %vm1207, %v1249, 0
  %v1283 = vsel %vm1207, %v1250, 0
  %v1286 = vsel %vm1207, %v1251, 0
  %v1289 = vsel %vm1207, %v1252, 0
  %v1292 = vsel %vm1207, %v1253, 0
  %v1295 = vsel %vm1207, %v1254, 0
  %v1298 = vsel %vm1207, %v1255, 0
  %v1301 = vsel %vm1207, %v1256, 0
  %v1304 = vsel %vm1207, %v1257, 0
  %v1307 = vsel %vm1207, %v1258, 0
  %v1310 = vsel %vm1207, %v1259, 0
  %1312 = vmatpush.bf16.msra.mxu0 0
  %1313 = vmatpush.bf16.msra.mxu0 0
  %1314 = vmatpush.bf16.msra.mxu0 0
  %1315 = vmatpush.bf16.msra.mxu0 0
  %1316 = vmatpush.bf16.msra.mxu0 0
  %1317 = vmatpush.bf16.msra.mxu0 0
  %1318 = vmatpush.bf16.msra.mxu0 %v1273
  %1319 = vmatpush.bf16.msra.mxu0 %v1272
  %1320 = vmatmul.bf16.gmra.mxu0 %v1277
  %v1321 = vpop.f32.mrf.mxu0
  %v1322 = vadd.f32 0.0, %v1321
  %v1323 = vpop.f32.mrf.mxu0
  %v1324 = vadd.f32 0.0, %v1323
  %1325 = vmatmul.bf16.gmra.mxu0 %v1280
  %v1326 = vpop.f32.mrf.mxu0
  %v1327 = vadd.f32 0.0, %v1326
  %v1328 = vpop.f32.mrf.mxu0
  %v1329 = vadd.f32 0.0, %v1328
  %1330 = vmatmul.bf16.gmra.mxu0 %v1283
  %v1331 = vpop.f32.mrf.mxu0
  %v1332 = vadd.f32 0.0, %v1331
  %v1333 = vpop.f32.mrf.mxu0
  %v1334 = vadd.f32 0.0, %v1333
  %1335 = vmatmul.bf16.gmra.mxu0 %v1286
  %v1336 = vpop.f32.mrf.mxu0
  %v1337 = vadd.f32 0.0, %v1336
  %v1338 = vpop.f32.mrf.mxu0
  %v1339 = vadd.f32 0.0, %v1338
  %1340 = vmatmul.bf16.gmra.mxu0 %v1289
  %v1341 = vpop.f32.mrf.mxu0
  %v1342 = vadd.f32 0.0, %v1341
  %v1343 = vpop.f32.mrf.mxu0
  %v1344 = vadd.f32 0.0, %v1343
  %1345 = vmatmul.bf16.gmra.mxu0 %v1292
  %v1346 = vpop.f32.mrf.mxu0
  %v1347 = vadd.f32 0.0, %v1346
  %v1348 = vpop.f32.mrf.mxu0
  %v1349 = vadd.f32 0.0, %v1348
  %1350 = vmatmul.bf16.gmra.mxu0 %v1295
  %v1351 = vpop.f32.mrf.mxu0
  %v1352 = vadd.f32 0.0, %v1351
  %v1353 = vpop.f32.mrf.mxu0
  %v1354 = vadd.f32 0.0, %v1353
  %1355 = vmatmul.bf16.gmra.mxu0 %v1298
  %v1356 = vpop.f32.mrf.mxu0
  %v1357 = vadd.f32 0.0, %v1356
  %v1358 = vpop.f32.mrf.mxu0
  %v1359 = vadd.f32 0.0, %v1358
  %1360 = vmatmul.bf16.gmra.mxu0 %v1301
  %v1361 = vpop.f32.mrf.mxu0
  %v1362 = vadd.f32 0.0, %v1361
  %v1363 = vpop.f32.mrf.mxu0
  %v1364 = vadd.f32 0.0, %v1363
  %1365 = vmatmul.bf16.gmra.mxu0 %v1304
  %v1366 = vpop.f32.mrf.mxu0
  %v1367 = vadd.f32 0.0, %v1366
  %v1368 = vpop.f32.mrf.mxu0
  %v1369 = vadd.f32 0.0, %v1368
  %1370 = vmatmul.bf16.gmra.mxu0 %v1307
  %v1371 = vpop.f32.mrf.mxu0
  %v1372 = vadd.f32 0.0, %v1371
  %v1373 = vpop.f32.mrf.mxu0
  %v1374 = vadd.f32 0.0, %v1373
  %1375 = vmatmul.bf16.gmra.mxu0 %v1310
  %v1376 = vpop.f32.mrf.mxu0
  %v1377 = vadd.f32 0.0, %v1376
  %v1378 = vpop.f32.mrf.mxu0
  %v1379 = vadd.f32 0.0, %v1378
  %1380 = vdwg.mxu0
  %v1381 = vpack.c.bf16 %v1322, %v1322
  %v1382 = vpack.c.bf16 %v1324, %v1324
  %v1383 = vpack.c.bf16 %v1327, %v1327
  %v1384 = vpack.c.bf16 %v1329, %v1329
  %v1385 = vpack.c.bf16 %v1332, %v1332
  %v1386 = vpack.c.bf16 %v1334, %v1334
  %v1387 = vpack.c.bf16 %v1337, %v1337
  %v1388 = vpack.c.bf16 %v1339, %v1339
  %v1389 = vpack.c.bf16 %v1342, %v1342
  %v1390 = vpack.c.bf16 %v1344, %v1344
  %v1391 = vpack.c.bf16 %v1347, %v1347
  %v1392 = vpack.c.bf16 %v1349, %v1349
  %v1393 = vpack.c.bf16 %v1352, %v1352
  %v1394 = vpack.c.bf16 %v1354, %v1354
  %v1395 = vpack.c.bf16 %v1357, %v1357
  %v1396 = vpack.c.bf16 %v1359, %v1359
  %v1397 = vpack.c.bf16 %v1362, %v1362
  %v1398 = vpack.c.bf16 %v1364, %v1364
  %v1399 = vpack.c.bf16 %v1367, %v1367
  %v1400 = vpack.c.bf16 %v1369, %v1369
  %v1401 = vpack.c.bf16 %v1372, %v1372
  %v1402 = vpack.c.bf16 %v1374, %v1374
  %v1403 = vpack.c.bf16 %v1377, %v1377
  %v1404 = vpack.c.bf16 %v1379, %v1379
  %v1405 = vld [vmem:[%s31] sm:$0xff]
  %v1406 = vld [vmem:[%s31 + $0x8] sm:$0xff]
  %v1407 = vld [vmem:[%s31 + $0x10] sm:$0xff]
  %v1408 = vld [vmem:[%s31 + $0x18] sm:$0xff]
  %v1409 = vld [vmem:[%s31 + $0x20] sm:$0xff]
  %v1410 = vld [vmem:[%s31 + $0x28] sm:$0xff]
  %v1411 = vld [vmem:[%s31 + $0x30] sm:$0xff]
  %v1412 = vld [vmem:[%s31 + $0x38] sm:$0xff]
  %v1413 = vld [vmem:[%s31 + $0x40] sm:$0xff]
  %v1414 = vld [vmem:[%s31 + $0x48] sm:$0xff]
  %v1415 = vld [vmem:[%s31 + $0x50] sm:$0xff]
  %v1416 = vld [vmem:[%s31 + $0x58] sm:$0xff]
  %v1417 = vld [vmem:[%s31 + $0x60] sm:$0xff]
  %v1418 = vld [vmem:[%s31 + $0x68] sm:$0xff]
  %v1419 = vld [vmem:[%s31 + $0x70] sm:$0xff]
  %v1420 = vld [vmem:[%s31 + $0x78] sm:$0xff]
  %v1421 = vld [vmem:[%s31 + $0x80] sm:$0xff]
  %v1422 = vld [vmem:[%s31 + $0x88] sm:$0xff]
  %v1423 = vld [vmem:[%s31 + $0x90] sm:$0xff]
  %v1424 = vld [vmem:[%s31 + $0x98] sm:$0xff]
  %v1425 = vld [vmem:[%s31 + $0xa0] sm:$0xff]
  %v1426 = vld [vmem:[%s31 + $0xa8] sm:$0xff]
  %v1427 = vld [vmem:[%s31 + $0xb0] sm:$0xff]
  %v1428 = vld [vmem:[%s31 + $0xb8] sm:$0xff]
  %v1429 = vld [vmem:[%s31 + $0xc0] sm:$0xff]
  %v1430 = vld [vmem:[%s31 + $0xc8] sm:$0xff]
  %v1431 = vld [vmem:[%s31 + $0xd0] sm:$0xff]
  %v1432 = vld [vmem:[%s31 + $0xd8] sm:$0xff]
  %v1433 = vld [vmem:[%s31 + $0xe0] sm:$0xff]
  %v1434 = vld [vmem:[%s31 + $0xe8] sm:$0xff]
  %v1435 = vld [vmem:[%s31 + $0xf0] sm:$0xff]
  %v1436 = vld [vmem:[%s31 + $0xf8] sm:$0xff]
  %v1437 = vld [vmem:[%s29] sm:$0xff]
  %v1438 = vld [vmem:[%s29 + $0x8] sm:$0xff]
  %v1439 = vld [vmem:[%s29 + $0x10] sm:$0xff]
  %v1440 = vld [vmem:[%s29 + $0x18] sm:$0xff]
  %v1441 = vld [vmem:[%s29 + $0x20] sm:$0xff]
  %v1442 = vld [vmem:[%s29 + $0x28] sm:$0xff]
  %v1443 = vld [vmem:[%s29 + $0x30] sm:$0xff]
  %v1444 = vld [vmem:[%s29 + $0x38] sm:$0xff]
  %v1445 = vld [vmem:[%s29 + $0x40] sm:$0xff]
  %v1446 = vld [vmem:[%s29 + $0x48] sm:$0xff]
  %v1447 = vld [vmem:[%s29 + $0x50] sm:$0xff]
  %v1448 = vld [vmem:[%s29 + $0x58] sm:$0xff]
  %v1449 = vld [vmem:[%s29 + $0x60] sm:$0xff]
  %v1450 = vld [vmem:[%s29 + $0x68] sm:$0xff]
  %v1451 = vld [vmem:[%s29 + $0x70] sm:$0xff]
  %v1452 = vld [vmem:[%s29 + $0x78] sm:$0xff]
  %v1453 = vld [vmem:[%s29 + $0x80] sm:$0xff]
  %v1454 = vld [vmem:[%s29 + $0x88] sm:$0xff]
  %v1455 = vld [vmem:[%s29 + $0x90] sm:$0xff]
  %v1456 = vld [vmem:[%s29 + $0x98] sm:$0xff]
  %v1457 = vld [vmem:[%s29 + $0xa0] sm:$0xff]
  %v1458 = vld [vmem:[%s29 + $0xa8] sm:$0xff]
  %v1459 = vld [vmem:[%s29 + $0xb0] sm:$0xff]
  %v1460 = vld [vmem:[%s29 + $0xb8] sm:$0xff]
  %v1461 = vld [vmem:[%s29 + $0xc0] sm:$0xff]
  %v1462 = vld [vmem:[%s29 + $0xc8] sm:$0xff]
  %v1463 = vld [vmem:[%s29 + $0xd0] sm:$0xff]
  %v1464 = vld [vmem:[%s29 + $0xd8] sm:$0xff]
  %v1465 = vld [vmem:[%s29 + $0xe0] sm:$0xff]
  %v1466 = vld [vmem:[%s29 + $0xe8] sm:$0xff]
  %v1467 = vld [vmem:[%s29 + $0xf0] sm:$0xff]
  %v1468 = vld [vmem:[%s29 + $0xf8] sm:$0xff]
  %v1501 = vunpack.c.l.b16 %v1437
  %v1502 = vunpack.c.h.b16 %v1437
  %v1503 = vunpack.c.l.b16 %v1438
  %v1504 = vunpack.c.h.b16 %v1438
  %v1505 = vunpack.c.l.b16 %v1439
  %v1506 = vunpack.c.h.b16 %v1439
  %v1507 = vunpack.c.l.b16 %v1440
  %v1508 = vunpack.c.h.b16 %v1440
  %v1509 = vunpack.c.l.b16 %v1441
  %v1510 = vunpack.c.h.b16 %v1441
  %v1511 = vunpack.c.l.b16 %v1442
  %v1512 = vunpack.c.h.b16 %v1442
  %v1513 = vunpack.c.l.b16 %v1443
  %v1514 = vunpack.c.h.b16 %v1443
  %v1515 = vunpack.c.l.b16 %v1444
  %v1516 = vunpack.c.h.b16 %v1444
  %v1517 = vunpack.c.l.b16 %v1445
  %v1518 = vunpack.c.h.b16 %v1445
  %v1519 = vunpack.c.l.b16 %v1446
  %v1520 = vunpack.c.h.b16 %v1446
  %v1521 = vunpack.c.l.b16 %v1447
  %v1522 = vunpack.c.h.b16 %v1447
  %v1523 = vunpack.c.l.b16 %v1448
  %v1524 = vunpack.c.h.b16 %v1448
  %v1525 = vunpack.c.l.b16 %v1449
  %v1526 = vunpack.c.h.b16 %v1449
  %v1527 = vunpack.c.l.b16 %v1450
  %v1528 = vunpack.c.h.b16 %v1450
  %v1529 = vunpack.c.l.b16 %v1451
  %v1530 = vunpack.c.h.b16 %v1451
  %v1531 = vunpack.c.l.b16 %v1452
  %v1532 = vunpack.c.h.b16 %v1452
  %v1533 = vunpack.c.l.b16 %v1453
  %v1534 = vunpack.c.h.b16 %v1453
  %v1535 = vunpack.c.l.b16 %v1454
  %v1536 = vunpack.c.h.b16 %v1454
  %v1537 = vunpack.c.l.b16 %v1455
  %v1538 = vunpack.c.h.b16 %v1455
  %v1539 = vunpack.c.l.b16 %v1456
  %v1540 = vunpack.c.h.b16 %v1456
  %v1541 = vunpack.c.l.b16 %v1457
  %v1542 = vunpack.c.h.b16 %v1457
  %v1543 = vunpack.c.l.b16 %v1458
  %v1544 = vunpack.c.h.b16 %v1458
  %v1545 = vunpack.c.l.b16 %v1459
  %v1546 = vunpack.c.h.b16 %v1459
  %v1547 = vunpack.c.l.b16 %v1460
  %v1548 = vunpack.c.h.b16 %v1460
  %v1549 = vunpack.c.l.b16 %v1461
  %v1550 = vunpack.c.h.b16 %v1461
  %v1551 = vunpack.c.l.b16 %v1462
  %v1552 = vunpack.c.h.b16 %v1462
  %v1553 = vunpack.c.l.b16 %v1463
  %v1554 = vunpack.c.h.b16 %v1463
  %v1555 = vunpack.c.l.b16 %v1464
  %v1556 = vunpack.c.h.b16 %v1464
  %v1557 = vunpack.c.l.b16 %v1465
  %v1558 = vunpack.c.h.b16 %v1465
  %v1559 = vunpack.c.l.b16 %v1466
  %v1560 = vunpack.c.h.b16 %v1466
  %v1561 = vunpack.c.l.b16 %v1467
  %v1562 = vunpack.c.h.b16 %v1467
  %v1563 = vunpack.c.l.b16 %v1468
  %v1564 = vunpack.c.h.b16 %v1468
  %v1565 = vpack.c.b16 %v1503, %v1501
  %v1566 = vpack.c.b16 %v1504, %v1502
  %v1567 = vpack.c.b16 %v1507, %v1505
  %v1568 = vpack.c.b16 %v1508, %v1506
  %v1569 = vpack.c.b16 %v1511, %v1509
  %v1570 = vpack.c.b16 %v1512, %v1510
  %v1571 = vpack.c.b16 %v1515, %v1513
  %v1572 = vpack.c.b16 %v1516, %v1514
  %v1573 = vpack.c.b16 %v1519, %v1517
  %v1574 = vpack.c.b16 %v1520, %v1518
  %v1575 = vpack.c.b16 %v1523, %v1521
  %v1576 = vpack.c.b16 %v1524, %v1522
  %v1577 = vpack.c.b16 %v1527, %v1525
  %v1578 = vpack.c.b16 %v1528, %v1526
  %v1579 = vpack.c.b16 %v1531, %v1529
  %v1580 = vpack.c.b16 %v1532, %v1530
  %v1581 = vpack.c.b16 %v1535, %v1533
  %v1582 = vpack.c.b16 %v1536, %v1534
  %v1583 = vpack.c.b16 %v1539, %v1537
  %v1584 = vpack.c.b16 %v1540, %v1538
  %v1585 = vpack.c.b16 %v1543, %v1541
  %v1586 = vpack.c.b16 %v1544, %v1542
  %v1587 = vpack.c.b16 %v1547, %v1545
  %v1588 = vpack.c.b16 %v1548, %v1546
  %v1589 = vpack.c.b16 %v1551, %v1549
  %v1590 = vpack.c.b16 %v1552, %v1550
  %v1591 = vpack.c.b16 %v1555, %v1553
  %v1592 = vpack.c.b16 %v1556, %v1554
  %v1593 = vpack.c.b16 %v1559, %v1557
  %v1594 = vpack.c.b16 %v1560, %v1558
  %v1595 = vpack.c.b16 %v1563, %v1561
  %v1596 = vpack.c.b16 %v1564, %v1562
  %v1637 = vunpack.c.l.b16 %v1381
  %v1638 = vunpack.c.l.b16 %v1382
  %v1639 = vunpack.c.l.b16 %v1383
  %v1640 = vunpack.c.l.b16 %v1384
  %v1641 = vunpack.c.l.b16 %v1385
  %v1642 = vunpack.c.l.b16 %v1386
  %v1643 = vunpack.c.l.b16 %v1387
  %v1644 = vunpack.c.l.b16 %v1388
  %v1645 = vunpack.c.l.b16 %v1389
  %v1646 = vunpack.c.l.b16 %v1390
  %v1647 = vunpack.c.l.b16 %v1391
  %v1648 = vunpack.c.l.b16 %v1392
  %v1649 = vunpack.c.l.b16 %v1393
  %v1650 = vunpack.c.l.b16 %v1394
  %v1651 = vunpack.c.l.b16 %v1395
  %v1652 = vunpack.c.l.b16 %v1396
  %v1653 = vunpack.c.l.b16 %v1397
  %v1654 = vunpack.c.l.b16 %v1398
  %v1655 = vunpack.c.l.b16 %v1399
  %v1656 = vunpack.c.l.b16 %v1400
  %v1657 = vunpack.c.l.b16 %v1401
  %v1658 = vunpack.c.l.b16 %v1402
  %v1659 = vunpack.c.l.b16 %v1403
  %v1660 = vunpack.c.l.b16 %v1404
  %v1661 = vpack.c.b16 %v1638, %v1637
  %v1662 = vpack.c.b16 %v1640, %v1639
  %v1663 = vpack.c.b16 %v1642, %v1641
  %v1664 = vpack.c.b16 %v1644, %v1643
  %v1665 = vpack.c.b16 %v1646, %v1645
  %v1666 = vpack.c.b16 %v1648, %v1647
  %v1667 = vpack.c.b16 %v1650, %v1649
  %v1668 = vpack.c.b16 %v1652, %v1651
  %v1669 = vpack.c.b16 %v1654, %v1653
  %v1670 = vpack.c.b16 %v1656, %v1655
  %v1671 = vpack.c.b16 %v1658, %v1657
  %v1672 = vpack.c.b16 %v1660, %v1659
  %v1686 = vsel %vm1069, %v1566, 0
  %v1689 = vsel %vm1069, %v1568, 0
  %v1692 = vsel %vm1069, %v1570, 0
  %v1695 = vsel %vm1069, %v1572, 0
  %v1698 = vsel %vm1069, %v1574, 0
  %v1701 = vsel %vm1069, %v1576, 0
  %v1704 = vsel %vm1069, %v1578, 0
  %v1707 = vsel %vm1069, %v1580, 0
  %v1710 = vsel %vm1069, %v1582, 0
  %v1713 = vsel %vm1069, %v1584, 0
  %v1716 = vsel %vm1069, %v1586, 0
  %v1719 = vsel %vm1069, %v1588, 0
  %v1722 = vsel %vm1069, %v1590, 0
  %v1725 = vsel %vm1069, %v1592, 0
  %v1728 = vsel %vm1069, %v1594, 0
  %v1731 = vsel %vm1069, %v1596, 0
  %1733 = vmatpush.bf16.msra.mxu0 %v1668
  %1734 = vmatpush.bf16.msra.mxu0 %v1667
  %1735 = vmatpush.bf16.msra.mxu0 %v1666
  %1736 = vmatpush.bf16.msra.mxu0 %v1665
  %1737 = vmatpush.bf16.msra.mxu0 %v1664
  %1738 = vmatpush.bf16.msra.mxu0 %v1663
  %1739 = vmatpush.bf16.msra.mxu0 %v1662
  %1740 = vmatpush.bf16.msra.mxu0 %v1661
  %1741 = vmatmul.bf16.gmra.mxu0 %v1565
  %v1742 = vpop.f32.mrf.mxu0
  %v1743 = vadd.f32 0.0, %v1742
  %v1744 = vpop.f32.mrf.mxu0
  %v1745 = vadd.f32 0.0, %v1744
  %1746 = vmatmul.bf16.gmra.mxu0 %v1567
  %v1747 = vpop.f32.mrf.mxu0
  %v1748 = vadd.f32 0.0, %v1747
  %v1749 = vpop.f32.mrf.mxu0
  %v1750 = vadd.f32 0.0, %v1749
  %1751 = vmatmul.bf16.gmra.mxu0 %v1569
  %v1752 = vpop.f32.mrf.mxu0
  %v1753 = vadd.f32 0.0, %v1752
  %v1754 = vpop.f32.mrf.mxu0
  %v1755 = vadd.f32 0.0, %v1754
  %1756 = vmatmul.bf16.gmra.mxu0 %v1571
  %v1757 = vpop.f32.mrf.mxu0
  %v1758 = vadd.f32 0.0, %v1757
  %v1759 = vpop.f32.mrf.mxu0
  %v1760 = vadd.f32 0.0, %v1759
  %1761 = vmatmul.bf16.gmra.mxu0 %v1573
  %v1762 = vpop.f32.mrf.mxu0
  %v1763 = vadd.f32 0.0, %v1762
  %v1764 = vpop.f32.mrf.mxu0
  %v1765 = vadd.f32 0.0, %v1764
  %1766 = vmatmul.bf16.gmra.mxu0 %v1575
  %v1767 = vpop.f32.mrf.mxu0
  %v1768 = vadd.f32 0.0, %v1767
  %v1769 = vpop.f32.mrf.mxu0
  %v1770 = vadd.f32 0.0, %v1769
  %1771 = vmatmul.bf16.gmra.mxu0 %v1577
  %v1772 = vpop.f32.mrf.mxu0
  %v1773 = vadd.f32 0.0, %v1772
  %v1774 = vpop.f32.mrf.mxu0
  %v1775 = vadd.f32 0.0, %v1774
  %1776 = vmatmul.bf16.gmra.mxu0 %v1579
  %v1777 = vpop.f32.mrf.mxu0
  %v1778 = vadd.f32 0.0, %v1777
  %v1779 = vpop.f32.mrf.mxu0
  %v1780 = vadd.f32 0.0, %v1779
  %1781 = vmatmul.bf16.gmra.mxu0 %v1581
  %v1782 = vpop.f32.mrf.mxu0
  %v1783 = vadd.f32 0.0, %v1782
  %v1784 = vpop.f32.mrf.mxu0
  %v1785 = vadd.f32 0.0, %v1784
  %1786 = vmatmul.bf16.gmra.mxu0 %v1583
  %v1787 = vpop.f32.mrf.mxu0
  %v1788 = vadd.f32 0.0, %v1787
  %v1789 = vpop.f32.mrf.mxu0
  %v1790 = vadd.f32 0.0, %v1789
  %1791 = vmatmul.bf16.gmra.mxu0 %v1585
  %v1792 = vpop.f32.mrf.mxu0
  %v1793 = vadd.f32 0.0, %v1792
  %v1794 = vpop.f32.mrf.mxu0
  %v1795 = vadd.f32 0.0, %v1794
  %1796 = vmatmul.bf16.gmra.mxu0 %v1587
  %v1797 = vpop.f32.mrf.mxu0
  %v1798 = vadd.f32 0.0, %v1797
  %v1799 = vpop.f32.mrf.mxu0
  %v1800 = vadd.f32 0.0, %v1799
  %1801 = vmatmul.bf16.gmra.mxu0 %v1589
  %v1802 = vpop.f32.mrf.mxu0
  %v1803 = vadd.f32 0.0, %v1802
  %v1804 = vpop.f32.mrf.mxu0
  %v1805 = vadd.f32 0.0, %v1804
  %1806 = vmatmul.bf16.gmra.mxu0 %v1591
  %v1807 = vpop.f32.mrf.mxu0
  %v1808 = vadd.f32 0.0, %v1807
  %v1809 = vpop.f32.mrf.mxu0
  %v1810 = vadd.f32 0.0, %v1809
  %1811 = vmatmul.bf16.gmra.mxu0 %v1593
  %v1812 = vpop.f32.mrf.mxu0
  %v1813 = vadd.f32 0.0, %v1812
  %v1814 = vpop.f32.mrf.mxu0
  %v1815 = vadd.f32 0.0, %v1814
  %1816 = vmatmul.bf16.gmra.mxu0 %v1595
  %v1817 = vpop.f32.mrf.mxu0
  %v1818 = vadd.f32 0.0, %v1817
  %v1819 = vpop.f32.mrf.mxu0
  %v1820 = vadd.f32 0.0, %v1819
  %1821 = vdwg.mxu0
  %1822 = vmatpush.bf16.msra.mxu0 0
  %1823 = vmatpush.bf16.msra.mxu0 0
  %1824 = vmatpush.bf16.msra.mxu0 0
  %1825 = vmatpush.bf16.msra.mxu0 0
  %1826 = vmatpush.bf16.msra.mxu0 %v1672
  %1827 = vmatpush.bf16.msra.mxu0 %v1671
  %1828 = vmatpush.bf16.msra.mxu0 %v1670
  %1829 = vmatpush.bf16.msra.mxu0 %v1669
  %1830 = vmatmul.bf16.gmra.mxu0 %v1686
  %v1831 = vpop.f32.mrf.mxu0
  %v1832 = vadd.f32 %v1743, %v1831
  %v1833 = vpop.f32.mrf.mxu0
  %v1834 = vadd.f32 %v1745, %v1833
  %1835 = vmatmul.bf16.gmra.mxu0 %v1689
  %v1836 = vpop.f32.mrf.mxu0
  %v1837 = vadd.f32 %v1748, %v1836
  %v1838 = vpop.f32.mrf.mxu0
  %v1839 = vadd.f32 %v1750, %v1838
  %1840 = vmatmul.bf16.gmra.mxu0 %v1692
  %v1841 = vpop.f32.mrf.mxu0
  %v1842 = vadd.f32 %v1753, %v1841
  %v1843 = vpop.f32.mrf.mxu0
  %v1844 = vadd.f32 %v1755, %v1843
  %1845 = vmatmul.bf16.gmra.mxu0 %v1695
  %v1846 = vpop.f32.mrf.mxu0
  %v1847 = vadd.f32 %v1758, %v1846
  %v1848 = vpop.f32.mrf.mxu0
  %v1849 = vadd.f32 %v1760, %v1848
  %1850 = vmatmul.bf16.gmra.mxu0 %v1698
  %v1851 = vpop.f32.mrf.mxu0
  %v1852 = vadd.f32 %v1763, %v1851
  %v1853 = vpop.f32.mrf.mxu0
  %v1854 = vadd.f32 %v1765, %v1853
  %1855 = vmatmul.bf16.gmra.mxu0 %v1701
  %v1856 = vpop.f32.mrf.mxu0
  %v1857 = vadd.f32 %v1768, %v1856
  %v1858 = vpop.f32.mrf.mxu0
  %v1859 = vadd.f32 %v1770, %v1858
  %1860 = vmatmul.bf16.gmra.mxu0 %v1704
  %v1861 = vpop.f32.mrf.mxu0
  %v1862 = vadd.f32 %v1773, %v1861
  %v1863 = vpop.f32.mrf.mxu0
  %v1864 = vadd.f32 %v1775, %v1863
  %1865 = vmatmul.bf16.gmra.mxu0 %v1707
  %v1866 = vpop.f32.mrf.mxu0
  %v1867 = vadd.f32 %v1778, %v1866
  %v1868 = vpop.f32.mrf.mxu0
  %v1869 = vadd.f32 %v1780, %v1868
  %1870 = vmatmul.bf16.gmra.mxu0 %v1710
  %v1871 = vpop.f32.mrf.mxu0
  %v1872 = vadd.f32 %v1783, %v1871
  %v1873 = vpop.f32.mrf.mxu0
  %v1874 = vadd.f32 %v1785, %v1873
  %1875 = vmatmul.bf16.gmra.mxu0 %v1713
  %v1876 = vpop.f32.mrf.mxu0
  %v1877 = vadd.f32 %v1788, %v1876
  %v1878 = vpop.f32.mrf.mxu0
  %v1879 = vadd.f32 %v1790, %v1878
  %1880 = vmatmul.bf16.gmra.mxu0 %v1716
  %v1881 = vpop.f32.mrf.mxu0
  %v1882 = vadd.f32 %v1793, %v1881
  %v1883 = vpop.f32.mrf.mxu0
  %v1884 = vadd.f32 %v1795, %v1883
  %1885 = vmatmul.bf16.gmra.mxu0 %v1719
  %v1886 = vpop.f32.mrf.mxu0
  %v1887 = vadd.f32 %v1798, %v1886
  %v1888 = vpop.f32.mrf.mxu0
  %v1889 = vadd.f32 %v1800, %v1888
  %1890 = vmatmul.bf16.gmra.mxu0 %v1722
  %v1891 = vpop.f32.mrf.mxu0
  %v1892 = vadd.f32 %v1803, %v1891
  %v1893 = vpop.f32.mrf.mxu0
  %v1894 = vadd.f32 %v1805, %v1893
  %1895 = vmatmul.bf16.gmra.mxu0 %v1725
  %v1896 = vpop.f32.mrf.mxu0
  %v1897 = vadd.f32 %v1808, %v1896
  %v1898 = vpop.f32.mrf.mxu0
  %v1899 = vadd.f32 %v1810, %v1898
  %1900 = vmatmul.bf16.gmra.mxu0 %v1728
  %v1901 = vpop.f32.mrf.mxu0
  %v1902 = vadd.f32 %v1813, %v1901
  %v1903 = vpop.f32.mrf.mxu0
  %v1904 = vadd.f32 %v1815, %v1903
  %1905 = vmatmul.bf16.gmra.mxu0 %v1731
  %v1906 = vpop.f32.mrf.mxu0
  %v1907 = vadd.f32 %v1818, %v1906
  %v1908 = vpop.f32.mrf.mxu0
  %v1909 = vadd.f32 %v1820, %v1908
  %1910 = vdwg.mxu0
  %1912 = vset.pattern.permute.xlu0 0
  %1913 = vperm.xlu0 %1912, %v1405
  %v1914 = vpop.permute.xlu0 %1913
  %1917 = vset.pattern.permute.xlu0 0
  %1918 = vperm.xlu0 %1917, %v1406
  %v1919 = vpop.permute.xlu0 %1918
  %1922 = vset.pattern.permute.xlu0 0
  %1923 = vperm.xlu0 %1922, %v1407
  %v1924 = vpop.permute.xlu0 %1923
  %1927 = vset.pattern.permute.xlu0 0
  %1928 = vperm.xlu0 %1927, %v1408
  %v1929 = vpop.permute.xlu0 %1928
  %1932 = vset.pattern.permute.xlu0 0
  %1933 = vperm.xlu0 %1932, %v1409
  %v1934 = vpop.permute.xlu0 %1933
  %1937 = vset.pattern.permute.xlu0 0
  %1938 = vperm.xlu0 %1937, %v1410
  %v1939 = vpop.permute.xlu0 %1938
  %1942 = vset.pattern.permute.xlu0 0
  %1943 = vperm.xlu0 %1942, %v1411
  %v1944 = vpop.permute.xlu0 %1943
  %1947 = vset.pattern.permute.xlu0 0
  %1948 = vperm.xlu0 %1947, %v1412
  %v1949 = vpop.permute.xlu0 %1948
  %1952 = vset.pattern.permute.xlu0 0
  %1953 = vperm.xlu0 %1952, %v1413
  %v1954 = vpop.permute.xlu0 %1953
  %1957 = vset.pattern.permute.xlu0 0
  %1958 = vperm.xlu0 %1957, %v1414
  %v1959 = vpop.permute.xlu0 %1958
  %1962 = vset.pattern.permute.xlu0 0
  %1963 = vperm.xlu0 %1962, %v1415
  %v1964 = vpop.permute.xlu0 %1963
  %1967 = vset.pattern.permute.xlu0 0
  %1968 = vperm.xlu0 %1967, %v1416
  %v1969 = vpop.permute.xlu0 %1968
  %1972 = vset.pattern.permute.xlu0 0
  %1973 = vperm.xlu0 %1972, %v1417
  %v1974 = vpop.permute.xlu0 %1973
  %1977 = vset.pattern.permute.xlu0 0
  %1978 = vperm.xlu0 %1977, %v1418
  %v1979 = vpop.permute.xlu0 %1978
  %1982 = vset.pattern.permute.xlu0 0
  %1983 = vperm.xlu0 %1982, %v1419
  %v1984 = vpop.permute.xlu0 %1983
  %1987 = vset.pattern.permute.xlu0 0
  %1988 = vperm.xlu0 %1987, %v1420
  %v1989 = vpop.permute.xlu0 %1988
  %1992 = vset.pattern.permute.xlu0 0
  %1993 = vperm.xlu0 %1992, %v1421
  %v1994 = vpop.permute.xlu0 %1993
  %1997 = vset.pattern.permute.xlu0 0
  %1998 = vperm.xlu0 %1997, %v1422
  %v1999 = vpop.permute.xlu0 %1998
  %2002 = vset.pattern.permute.xlu0 0
  %2003 = vperm.xlu0 %2002, %v1423
  %v2004 = vpop.permute.xlu0 %2003
  %2007 = vset.pattern.permute.xlu0 0
  %2008 = vperm.xlu0 %2007, %v1424
  %v2009 = vpop.permute.xlu0 %2008
  %2012 = vset.pattern.permute.xlu0 0
  %2013 = vperm.xlu0 %2012, %v1425
  %v2014 = vpop.permute.xlu0 %2013
  %2017 = vset.pattern.permute.xlu0 0
  %2018 = vperm.xlu0 %2017, %v1426
  %v2019 = vpop.permute.xlu0 %2018
  %2022 = vset.pattern.permute.xlu0 0
  %2023 = vperm.xlu0 %2022, %v1427
  %v2024 = vpop.permute.xlu0 %2023
  %2027 = vset.pattern.permute.xlu0 0
  %2028 = vperm.xlu0 %2027, %v1428
  %v2029 = vpop.permute.xlu0 %2028
  %2032 = vset.pattern.permute.xlu0 0
  %2033 = vperm.xlu0 %2032, %v1429
  %v2034 = vpop.permute.xlu0 %2033
  %2037 = vset.pattern.permute.xlu0 0
  %2038 = vperm.xlu0 %2037, %v1430
  %v2039 = vpop.permute.xlu0 %2038
  %2042 = vset.pattern.permute.xlu0 0
  %2043 = vperm.xlu0 %2042, %v1431
  %v2044 = vpop.permute.xlu0 %2043
  %2047 = vset.pattern.permute.xlu0 0
  %2048 = vperm.xlu0 %2047, %v1432
  %v2049 = vpop.permute.xlu0 %2048
  %2052 = vset.pattern.permute.xlu0 0
  %2053 = vperm.xlu0 %2052, %v1433
  %v2054 = vpop.permute.xlu0 %2053
  %2057 = vset.pattern.permute.xlu0 0
  %2058 = vperm.xlu0 %2057, %v1434
  %v2059 = vpop.permute.xlu0 %2058
  %2062 = vset.pattern.permute.xlu0 0
  %2063 = vperm.xlu0 %2062, %v1435
  %v2064 = vpop.permute.xlu0 %2063
  %2067 = vset.pattern.permute.xlu0 0
  %2068 = vperm.xlu0 %2067, %v1436
  %v2069 = vpop.permute.xlu0 %2068
  %v2071 = vadd.f32 %v1914, %v1832
  %v2072 = vadd.f32 %v1919, %v1834
  %v2073 = vadd.f32 %v1924, %v1837
  %v2074 = vadd.f32 %v1929, %v1839
  %v2075 = vadd.f32 %v1934, %v1842
  %v2076 = vadd.f32 %v1939, %v1844
  %v2077 = vadd.f32 %v1944, %v1847
  %v2078 = vadd.f32 %v1949, %v1849
  %v2079 = vadd.f32 %v1954, %v1852
  %v2080 = vadd.f32 %v1959, %v1854
  %v2081 = vadd.f32 %v1964, %v1857
  %v2082 = vadd.f32 %v1969, %v1859
  %v2083 = vadd.f32 %v1974, %v1862
  %v2084 = vadd.f32 %v1979, %v1864
  %v2085 = vadd.f32 %v1984, %v1867
  %v2086 = vadd.f32 %v1989, %v1869
  %v2087 = vadd.f32 %v1994, %v1872
  %v2088 = vadd.f32 %v1999, %v1874
  %v2089 = vadd.f32 %v2004, %v1877
  %v2090 = vadd.f32 %v2009, %v1879
  %v2091 = vadd.f32 %v2014, %v1882
  %v2092 = vadd.f32 %v2019, %v1884
  %v2093 = vadd.f32 %v2024, %v1887
  %v2094 = vadd.f32 %v2029, %v1889
  %v2095 = vadd.f32 %v2034, %v1892
  %v2096 = vadd.f32 %v2039, %v1894
  %v2097 = vadd.f32 %v2044, %v1897
  %v2098 = vadd.f32 %v2049, %v1899
  %v2099 = vadd.f32 %v2054, %v1902
  %v2100 = vadd.f32 %v2059, %v1904
  %v2101 = vadd.f32 %v2064, %v1907
  %v2102 = vadd.f32 %v2069, %v1909
  %s2103 = scalar_lea.vmem %s29, 256
  %v2104 = vld [vmem:[%s2103] sm:$0xff]
  %v2105 = vld [vmem:[%s2103 + $0x8] sm:$0xff]
  %v2106 = vld [vmem:[%s2103 + $0x10] sm:$0xff]
  %v2107 = vld [vmem:[%s2103 + $0x18] sm:$0xff]
  %v2108 = vld [vmem:[%s2103 + $0x20] sm:$0xff]
  %v2109 = vld [vmem:[%s2103 + $0x28] sm:$0xff]
  %v2110 = vld [vmem:[%s2103 + $0x30] sm:$0xff]
  %v2111 = vld [vmem:[%s2103 + $0x38] sm:$0xff]
  %v2112 = vld [vmem:[%s2103 + $0x40] sm:$0xff]
  %v2113 = vld [vmem:[%s2103 + $0x48] sm:$0xff]
  %v2114 = vld [vmem:[%s2103 + $0x50] sm:$0xff]
  %v2115 = vld [vmem:[%s2103 + $0x58] sm:$0xff]
  %v2116 = vld [vmem:[%s2103 + $0x60] sm:$0xff]
  %v2117 = vld [vmem:[%s2103 + $0x68] sm:$0xff]
  %v2118 = vld [vmem:[%s2103 + $0x70] sm:$0xff]
  %v2119 = vld [vmem:[%s2103 + $0x78] sm:$0xff]
  %v2120 = vld [vmem:[%s2103 + $0x80] sm:$0xff]
  %v2121 = vld [vmem:[%s2103 + $0x88] sm:$0xff]
  %v2122 = vld [vmem:[%s2103 + $0x90] sm:$0xff]
  %v2123 = vld [vmem:[%s2103 + $0x98] sm:$0xff]
  %v2124 = vld [vmem:[%s2103 + $0xa0] sm:$0xff]
  %v2125 = vld [vmem:[%s2103 + $0xa8] sm:$0xff]
  %v2126 = vld [vmem:[%s2103 + $0xb0] sm:$0xff]
  %v2127 = vld [vmem:[%s2103 + $0xb8] sm:$0xff]
  %v2128 = vld [vmem:[%s2103 + $0xc0] sm:$0xff]
  %v2129 = vld [vmem:[%s2103 + $0xc8] sm:$0xff]
  %v2130 = vld [vmem:[%s2103 + $0xd0] sm:$0xff]
  %v2131 = vld [vmem:[%s2103 + $0xd8] sm:$0xff]
  %v2132 = vld [vmem:[%s2103 + $0xe0] sm:$0xff]
  %v2133 = vld [vmem:[%s2103 + $0xe8] sm:$0xff]
  %v2134 = vld [vmem:[%s2103 + $0xf0] sm:$0xff]
  %v2135 = vld [vmem:[%s2103 + $0xf8] sm:$0xff]
  %v2168 = vunpack.c.l.b16 %v2104
  %v2169 = vunpack.c.h.b16 %v2104
  %v2170 = vunpack.c.l.b16 %v2105
  %v2171 = vunpack.c.h.b16 %v2105
  %v2172 = vunpack.c.l.b16 %v2106
  %v2173 = vunpack.c.h.b16 %v2106
  %v2174 = vunpack.c.l.b16 %v2107
  %v2175 = vunpack.c.h.b16 %v2107
  %v2176 = vunpack.c.l.b16 %v2108
  %v2177 = vunpack.c.h.b16 %v2108
  %v2178 = vunpack.c.l.b16 %v2109
  %v2179 = vunpack.c.h.b16 %v2109
  %v2180 = vunpack.c.l.b16 %v2110
  %v2181 = vunpack.c.h.b16 %v2110
  %v2182 = vunpack.c.l.b16 %v2111
  %v2183 = vunpack.c.h.b16 %v2111
  %v2184 = vunpack.c.l.b16 %v2112
  %v2185 = vunpack.c.h.b16 %v2112
  %v2186 = vunpack.c.l.b16 %v2113
  %v2187 = vunpack.c.h.b16 %v2113
  %v2188 = vunpack.c.l.b16 %v2114
  %v2189 = vunpack.c.h.b16 %v2114
  %v2190 = vunpack.c.l.b16 %v2115
  %v2191 = vunpack.c.h.b16 %v2115
  %v2192 = vunpack.c.l.b16 %v2116
  %v2193 = vunpack.c.h.b16 %v2116
  %v2194 = vunpack.c.l.b16 %v2117
  %v2195 = vunpack.c.h.b16 %v2117
  %v2196 = vunpack.c.l.b16 %v2118
  %v2197 = vunpack.c.h.b16 %v2118
  %v2198 = vunpack.c.l.b16 %v2119
  %v2199 = vunpack.c.h.b16 %v2119
  %v2200 = vunpack.c.l.b16 %v2120
  %v2201 = vunpack.c.h.b16 %v2120
  %v2202 = vunpack.c.l.b16 %v2121
  %v2203 = vunpack.c.h.b16 %v2121
  %v2204 = vunpack.c.l.b16 %v2122
  %v2205 = vunpack.c.h.b16 %v2122
  %v2206 = vunpack.c.l.b16 %v2123
  %v2207 = vunpack.c.h.b16 %v2123
  %v2208 = vunpack.c.l.b16 %v2124
  %v2209 = vunpack.c.h.b16 %v2124
  %v2210 = vunpack.c.l.b16 %v2125
  %v2211 = vunpack.c.h.b16 %v2125
  %v2212 = vunpack.c.l.b16 %v2126
  %v2213 = vunpack.c.h.b16 %v2126
  %v2214 = vunpack.c.l.b16 %v2127
  %v2215 = vunpack.c.h.b16 %v2127
  %v2216 = vunpack.c.l.b16 %v2128
  %v2217 = vunpack.c.h.b16 %v2128
  %v2218 = vunpack.c.l.b16 %v2129
  %v2219 = vunpack.c.h.b16 %v2129
  %v2220 = vunpack.c.l.b16 %v2130
  %v2221 = vunpack.c.h.b16 %v2130
  %v2222 = vunpack.c.l.b16 %v2131
  %v2223 = vunpack.c.h.b16 %v2131
  %v2224 = vunpack.c.l.b16 %v2132
  %v2225 = vunpack.c.h.b16 %v2132
  %v2226 = vunpack.c.l.b16 %v2133
  %v2227 = vunpack.c.h.b16 %v2133
  %v2228 = vunpack.c.l.b16 %v2134
  %v2229 = vunpack.c.h.b16 %v2134
  %v2230 = vunpack.c.l.b16 %v2135
  %v2231 = vunpack.c.h.b16 %v2135
  %v2232 = vpack.c.b16 %v2170, %v2168
  %v2233 = vpack.c.b16 %v2171, %v2169
  %v2234 = vpack.c.b16 %v2174, %v2172
  %v2235 = vpack.c.b16 %v2175, %v2173
  %v2236 = vpack.c.b16 %v2178, %v2176
  %v2237 = vpack.c.b16 %v2179, %v2177
  %v2238 = vpack.c.b16 %v2182, %v2180
  %v2239 = vpack.c.b16 %v2183, %v2181
  %v2240 = vpack.c.b16 %v2186, %v2184
  %v2241 = vpack.c.b16 %v2187, %v2185
  %v2242 = vpack.c.b16 %v2190, %v2188
  %v2243 = vpack.c.b16 %v2191, %v2189
  %v2244 = vpack.c.b16 %v2194, %v2192
  %v2245 = vpack.c.b16 %v2195, %v2193
  %v2246 = vpack.c.b16 %v2198, %v2196
  %v2247 = vpack.c.b16 %v2199, %v2197
  %v2248 = vpack.c.b16 %v2202, %v2200
  %v2249 = vpack.c.b16 %v2203, %v2201
  %v2250 = vpack.c.b16 %v2206, %v2204
  %v2251 = vpack.c.b16 %v2207, %v2205
  %v2252 = vpack.c.b16 %v2210, %v2208
  %v2253 = vpack.c.b16 %v2211, %v2209
  %v2254 = vpack.c.b16 %v2214, %v2212
  %v2255 = vpack.c.b16 %v2215, %v2213
  %v2256 = vpack.c.b16 %v2218, %v2216
  %v2257 = vpack.c.b16 %v2219, %v2217
  %v2258 = vpack.c.b16 %v2222, %v2220
  %v2259 = vpack.c.b16 %v2223, %v2221
  %v2260 = vpack.c.b16 %v2226, %v2224
  %v2261 = vpack.c.b16 %v2227, %v2225
  %v2262 = vpack.c.b16 %v2230, %v2228
  %v2263 = vpack.c.b16 %v2231, %v2229
  %2280 = vrot.lane.b32.xlu0 %v1661, 112
  %v2281 = vpop.permute.xlu0 %2280
  %2282 = vrot.lane.b32.xlu0 %v1662, 112
  %v2283 = vpop.permute.xlu0 %2282
  %2284 = vrot.lane.b32.xlu0 %v1663, 112
  %v2285 = vpop.permute.xlu0 %2284
  %2286 = vrot.lane.b32.xlu0 %v1664, 112
  %v2287 = vpop.permute.xlu0 %2286
  %2288 = vrot.lane.b32.xlu0 %v1665, 112
  %v2289 = vpop.permute.xlu0 %2288
  %2290 = vrot.lane.b32.xlu0 %v1666, 112
  %v2291 = vpop.permute.xlu0 %2290
  %2292 = vrot.lane.b32.xlu0 %v1667, 112
  %v2293 = vpop.permute.xlu0 %2292
  %2294 = vrot.lane.b32.xlu0 %v1668, 112
  %v2295 = vpop.permute.xlu0 %2294
  %2296 = vrot.lane.b32.xlu0 %v1669, 112
  %v2297 = vpop.permute.xlu0 %2296
  %2298 = vrot.lane.b32.xlu0 %v1670, 112
  %v2299 = vpop.permute.xlu0 %2298
  %2300 = vrot.lane.b32.xlu0 %v1671, 112
  %v2301 = vpop.permute.xlu0 %2300
  %2302 = vrot.lane.b32.xlu0 %v1672, 112
  %v2303 = vpop.permute.xlu0 %2302
  %v2317 = vsel %vm1069, %v2233, 0
  %v2320 = vsel %vm1069, %v2235, 0
  %v2323 = vsel %vm1069, %v2237, 0
  %v2326 = vsel %vm1069, %v2239, 0
  %v2329 = vsel %vm1069, %v2241, 0
  %v2332 = vsel %vm1069, %v2243, 0
  %v2335 = vsel %vm1069, %v2245, 0
  %v2338 = vsel %vm1069, %v2247, 0
  %v2341 = vsel %vm1069, %v2249, 0
  %v2344 = vsel %vm1069, %v2251, 0
  %v2347 = vsel %vm1069, %v2253, 0
  %v2350 = vsel %vm1069, %v2255, 0
  %v2353 = vsel %vm1069, %v2257, 0
  %v2356 = vsel %vm1069, %v2259, 0
  %v2359 = vsel %vm1069, %v2261, 0
  %v2362 = vsel %vm1069, %v2263, 0
  %2364 = vmatpush.bf16.msra.mxu0 %v2295
  %2365 = vmatpush.bf16.msra.mxu0 %v2293
  %2366 = vmatpush.bf16.msra.mxu0 %v2291
  %2367 = vmatpush.bf16.msra.mxu0 %v2289
  %2368 = vmatpush.bf16.msra.mxu0 %v2287
  %2369 = vmatpush.bf16.msra.mxu0 %v2285
  %2370 = vmatpush.bf16.msra.mxu0 %v2283
  %2371 = vmatpush.bf16.msra.mxu0 %v2281
  %2372 = vmatmul.bf16.gmra.mxu0 %v2232
  %v2373 = vpop.f32.mrf.mxu0
  %v2374 = vadd.f32 0.0, %v2373
  %v2375 = vpop.f32.mrf.mxu0
  %v2376 = vadd.f32 0.0, %v2375
  %2377 = vmatmul.bf16.gmra.mxu0 %v2234
  %v2378 = vpop.f32.mrf.mxu0
  %v2379 = vadd.f32 0.0, %v2378
  %v2380 = vpop.f32.mrf.mxu0
  %v2381 = vadd.f32 0.0, %v2380
  %2382 = vmatmul.bf16.gmra.mxu0 %v2236
  %v2383 = vpop.f32.mrf.mxu0
  %v2384 = vadd.f32 0.0, %v2383
  %v2385 = vpop.f32.mrf.mxu0
  %v2386 = vadd.f32 0.0, %v2385
  %2387 = vmatmul.bf16.gmra.mxu0 %v2238
  %v2388 = vpop.f32.mrf.mxu0
  %v2389 = vadd.f32 0.0, %v2388
  %v2390 = vpop.f32.mrf.mxu0
  %v2391 = vadd.f32 0.0, %v2390
  %2392 = vmatmul.bf16.gmra.mxu0 %v2240
  %v2393 = vpop.f32.mrf.mxu0
  %v2394 = vadd.f32 0.0, %v2393
  %v2395 = vpop.f32.mrf.mxu0
  %v2396 = vadd.f32 0.0, %v2395
  %2397 = vmatmul.bf16.gmra.mxu0 %v2242
  %v2398 = vpop.f32.mrf.mxu0
  %v2399 = vadd.f32 0.0, %v2398
  %v2400 = vpop.f32.mrf.mxu0
  %v2401 = vadd.f32 0.0, %v2400
  %2402 = vmatmul.bf16.gmra.mxu0 %v2244
  %v2403 = vpop.f32.mrf.mxu0
  %v2404 = vadd.f32 0.0, %v2403
  %v2405 = vpop.f32.mrf.mxu0
  %v2406 = vadd.f32 0.0, %v2405
  %2407 = vmatmul.bf16.gmra.mxu0 %v2246
  %v2408 = vpop.f32.mrf.mxu0
  %v2409 = vadd.f32 0.0, %v2408
  %v2410 = vpop.f32.mrf.mxu0
  %v2411 = vadd.f32 0.0, %v2410
  %2412 = vmatmul.bf16.gmra.mxu0 %v2248
  %v2413 = vpop.f32.mrf.mxu0
  %v2414 = vadd.f32 0.0, %v2413
  %v2415 = vpop.f32.mrf.mxu0
  %v2416 = vadd.f32 0.0, %v2415
  %2417 = vmatmul.bf16.gmra.mxu0 %v2250
  %v2418 = vpop.f32.mrf.mxu0
  %v2419 = vadd.f32 0.0, %v2418
  %v2420 = vpop.f32.mrf.mxu0
  %v2421 = vadd.f32 0.0, %v2420
  %2422 = vmatmul.bf16.gmra.mxu0 %v2252
  %v2423 = vpop.f32.mrf.mxu0
  %v2424 = vadd.f32 0.0, %v2423
  %v2425 = vpop.f32.mrf.mxu0
  %v2426 = vadd.f32 0.0, %v2425
  %2427 = vmatmul.bf16.gmra.mxu0 %v2254
  %v2428 = vpop.f32.mrf.mxu0
  %v2429 = vadd.f32 0.0, %v2428
  %v2430 = vpop.f32.mrf.mxu0
  %v2431 = vadd.f32 0.0, %v2430
  %2432 = vmatmul.bf16.gmra.mxu0 %v2256
  %v2433 = vpop.f32.mrf.mxu0
  %v2434 = vadd.f32 0.0, %v2433
  %v2435 = vpop.f32.mrf.mxu0
  %v2436 = vadd.f32 0.0, %v2435
  %2437 = vmatmul.bf16.gmra.mxu0 %v2258
  %v2438 = vpop.f32.mrf.mxu0
  %v2439 = vadd.f32 0.0, %v2438
  %v2440 = vpop.f32.mrf.mxu0
  %v2441 = vadd.f32 0.0, %v2440
  %2442 = vmatmul.bf16.gmra.mxu0 %v2260
  %v2443 = vpop.f32.mrf.mxu0
  %v2444 = vadd.f32 0.0, %v2443
  %v2445 = vpop.f32.mrf.mxu0
  %v2446 = vadd.f32 0.0, %v2445
  %2447 = vmatmul.bf16.gmra.mxu0 %v2262
  %v2448 = vpop.f32.mrf.mxu0
  %v2449 = vadd.f32 0.0, %v2448
  %v2450 = vpop.f32.mrf.mxu0
  %v2451 = vadd.f32 0.0, %v2450
  %2452 = vdwg.mxu0
  %2453 = vmatpush.bf16.msra.mxu0 0
  %2454 = vmatpush.bf16.msra.mxu0 0
  %2455 = vmatpush.bf16.msra.mxu0 0
  %2456 = vmatpush.bf16.msra.mxu0 0
  %2457 = vmatpush.bf16.msra.mxu0 %v2303
  %2458 = vmatpush.bf16.msra.mxu0 %v2301
  %2459 = vmatpush.bf16.msra.mxu0 %v2299
  %2460 = vmatpush.bf16.msra.mxu0 %v2297
  %2461 = vmatmul.bf16.gmra.mxu0 %v2317
  %v2462 = vpop.f32.mrf.mxu0
  %v2463 = vadd.f32 %v2374, %v2462
  %v2464 = vpop.f32.mrf.mxu0
  %v2465 = vadd.f32 %v2376, %v2464
  %2466 = vmatmul.bf16.gmra.mxu0 %v2320
  %v2467 = vpop.f32.mrf.mxu0
  %v2468 = vadd.f32 %v2379, %v2467
  %v2469 = vpop.f32.mrf.mxu0
  %v2470 = vadd.f32 %v2381, %v2469
  %2471 = vmatmul.bf16.gmra.mxu0 %v2323
  %v2472 = vpop.f32.mrf.mxu0
  %v2473 = vadd.f32 %v2384, %v2472
  %v2474 = vpop.f32.mrf.mxu0
  %v2475 = vadd.f32 %v2386, %v2474
  %2476 = vmatmul.bf16.gmra.mxu0 %v2326
  %v2477 = vpop.f32.mrf.mxu0
  %v2478 = vadd.f32 %v2389, %v2477
  %v2479 = vpop.f32.mrf.mxu0
  %v2480 = vadd.f32 %v2391, %v2479
  %2481 = vmatmul.bf16.gmra.mxu0 %v2329
  %v2482 = vpop.f32.mrf.mxu0
  %v2483 = vadd.f32 %v2394, %v2482
  %v2484 = vpop.f32.mrf.mxu0
  %v2485 = vadd.f32 %v2396, %v2484
  %2486 = vmatmul.bf16.gmra.mxu0 %v2332
  %v2487 = vpop.f32.mrf.mxu0
  %v2488 = vadd.f32 %v2399, %v2487
  %v2489 = vpop.f32.mrf.mxu0
  %v2490 = vadd.f32 %v2401, %v2489
  %2491 = vmatmul.bf16.gmra.mxu0 %v2335
  %v2492 = vpop.f32.mrf.mxu0
  %v2493 = vadd.f32 %v2404, %v2492
  %v2494 = vpop.f32.mrf.mxu0
  %v2495 = vadd.f32 %v2406, %v2494
  %2496 = vmatmul.bf16.gmra.mxu0 %v2338
  %v2497 = vpop.f32.mrf.mxu0
  %v2498 = vadd.f32 %v2409, %v2497
  %v2499 = vpop.f32.mrf.mxu0
  %v2500 = vadd.f32 %v2411, %v2499
  %2501 = vmatmul.bf16.gmra.mxu0 %v2341
  %v2502 = vpop.f32.mrf.mxu0
  %v2503 = vadd.f32 %v2414, %v2502
  %v2504 = vpop.f32.mrf.mxu0
  %v2505 = vadd.f32 %v2416, %v2504
  %2506 = vmatmul.bf16.gmra.mxu0 %v2344
  %v2507 = vpop.f32.mrf.mxu0
  %v2508 = vadd.f32 %v2419, %v2507
  %v2509 = vpop.f32.mrf.mxu0
  %v2510 = vadd.f32 %v2421, %v2509
  %2511 = vmatmul.bf16.gmra.mxu0 %v2347
  %v2512 = vpop.f32.mrf.mxu0
  %v2513 = vadd.f32 %v2424, %v2512
  %v2514 = vpop.f32.mrf.mxu0
  %v2515 = vadd.f32 %v2426, %v2514
  %2516 = vmatmul.bf16.gmra.mxu0 %v2350
  %v2517 = vpop.f32.mrf.mxu0
  %v2518 = vadd.f32 %v2429, %v2517
  %v2519 = vpop.f32.mrf.mxu0
  %v2520 = vadd.f32 %v2431, %v2519
  %2521 = vmatmul.bf16.gmra.mxu0 %v2353
  %v2522 = vpop.f32.mrf.mxu0
  %v2523 = vadd.f32 %v2434, %v2522
  %v2524 = vpop.f32.mrf.mxu0
  %v2525 = vadd.f32 %v2436, %v2524
  %2526 = vmatmul.bf16.gmra.mxu0 %v2356
  %v2527 = vpop.f32.mrf.mxu0
  %v2528 = vadd.f32 %v2439, %v2527
  %v2529 = vpop.f32.mrf.mxu0
  %v2530 = vadd.f32 %v2441, %v2529
  %2531 = vmatmul.bf16.gmra.mxu0 %v2359
  %v2532 = vpop.f32.mrf.mxu0
  %v2533 = vadd.f32 %v2444, %v2532
  %v2534 = vpop.f32.mrf.mxu0
  %v2535 = vadd.f32 %v2446, %v2534
  %2536 = vmatmul.bf16.gmra.mxu0 %v2362
  %v2537 = vpop.f32.mrf.mxu0
  %v2538 = vadd.f32 %v2449, %v2537
  %v2539 = vpop.f32.mrf.mxu0
  %v2540 = vadd.f32 %v2451, %v2539
  %2541 = vdwg.mxu0
  %v2542 = vadd.f32 %v2071, %v2463
  %v2543 = vadd.f32 %v2072, %v2465
  %v2544 = vadd.f32 %v2073, %v2468
  %v2545 = vadd.f32 %v2074, %v2470
  %v2546 = vadd.f32 %v2075, %v2473
  %v2547 = vadd.f32 %v2076, %v2475
  %v2548 = vadd.f32 %v2077, %v2478
  %v2549 = vadd.f32 %v2078, %v2480
  %v2550 = vadd.f32 %v2079, %v2483
  %v2551 = vadd.f32 %v2080, %v2485
  %v2552 = vadd.f32 %v2081, %v2488
  %v2553 = vadd.f32 %v2082, %v2490
  %v2554 = vadd.f32 %v2083, %v2493
  %v2555 = vadd.f32 %v2084, %v2495
  %v2556 = vadd.f32 %v2085, %v2498
  %v2557 = vadd.f32 %v2086, %v2500
  %v2558 = vadd.f32 %v2087, %v2503
  %v2559 = vadd.f32 %v2088, %v2505
  %v2560 = vadd.f32 %v2089, %v2508
  %v2561 = vadd.f32 %v2090, %v2510
  %v2562 = vadd.f32 %v2091, %v2513
  %v2563 = vadd.f32 %v2092, %v2515
  %v2564 = vadd.f32 %v2093, %v2518
  %v2565 = vadd.f32 %v2094, %v2520
  %v2566 = vadd.f32 %v2095, %v2523
  %v2567 = vadd.f32 %v2096, %v2525
  %v2568 = vadd.f32 %v2097, %v2528
  %v2569 = vadd.f32 %v2098, %v2530
  %v2570 = vadd.f32 %v2099, %v2533
  %v2571 = vadd.f32 %v2100, %v2535
  %v2572 = vadd.f32 %v2101, %v2538
  %v2573 = vadd.f32 %v2102, %v2540
  %s2574 = scalar_lea.vmem %s29, 512
  %v2575 = vld [vmem:[%s2574] sm:$0xff]
  %v2576 = vld [vmem:[%s2574 + $0x8] sm:$0xff]
  %v2577 = vld [vmem:[%s2574 + $0x10] sm:$0xff]
  %v2578 = vld [vmem:[%s2574 + $0x18] sm:$0xff]
  %v2579 = vld [vmem:[%s2574 + $0x20] sm:$0xff]
  %v2580 = vld [vmem:[%s2574 + $0x28] sm:$0xff]
  %v2581 = vld [vmem:[%s2574 + $0x30] sm:$0xff]
  %v2582 = vld [vmem:[%s2574 + $0x38] sm:$0xff]
  %v2583 = vld [vmem:[%s2574 + $0x40] sm:$0xff]
  %v2584 = vld [vmem:[%s2574 + $0x48] sm:$0xff]
  %v2585 = vld [vmem:[%s2574 + $0x50] sm:$0xff]
  %v2586 = vld [vmem:[%s2574 + $0x58] sm:$0xff]
  %v2587 = vld [vmem:[%s2574 + $0x60] sm:$0xff]
  %v2588 = vld [vmem:[%s2574 + $0x68] sm:$0xff]
  %v2589 = vld [vmem:[%s2574 + $0x70] sm:$0xff]
  %v2590 = vld [vmem:[%s2574 + $0x78] sm:$0xff]
  %v2591 = vld [vmem:[%s2574 + $0x80] sm:$0xff]
  %v2592 = vld [vmem:[%s2574 + $0x88] sm:$0xff]
  %v2593 = vld [vmem:[%s2574 + $0x90] sm:$0xff]
  %v2594 = vld [vmem:[%s2574 + $0x98] sm:$0xff]
  %v2595 = vld [vmem:[%s2574 + $0xa0] sm:$0xff]
  %v2596 = vld [vmem:[%s2574 + $0xa8] sm:$0xff]
  %v2597 = vld [vmem:[%s2574 + $0xb0] sm:$0xff]
  %v2598 = vld [vmem:[%s2574 + $0xb8] sm:$0xff]
  %v2599 = vld [vmem:[%s2574 + $0xc0] sm:$0xff]
  %v2600 = vld [vmem:[%s2574 + $0xc8] sm:$0xff]
  %v2601 = vld [vmem:[%s2574 + $0xd0] sm:$0xff]
  %v2602 = vld [vmem:[%s2574 + $0xd8] sm:$0xff]
  %v2603 = vld [vmem:[%s2574 + $0xe0] sm:$0xff]
  %v2604 = vld [vmem:[%s2574 + $0xe8] sm:$0xff]
  %v2605 = vld [vmem:[%s2574 + $0xf0] sm:$0xff]
  %v2606 = vld [vmem:[%s2574 + $0xf8] sm:$0xff]
  %v2639 = vunpack.c.l.b16 %v2575
  %v2640 = vunpack.c.h.b16 %v2575
  %v2641 = vunpack.c.l.b16 %v2576
  %v2642 = vunpack.c.h.b16 %v2576
  %v2643 = vunpack.c.l.b16 %v2577
  %v2644 = vunpack.c.h.b16 %v2577
  %v2645 = vunpack.c.l.b16 %v2578
  %v2646 = vunpack.c.h.b16 %v2578
  %v2647 = vunpack.c.l.b16 %v2579
  %v2648 = vunpack.c.h.b16 %v2579
  %v2649 = vunpack.c.l.b16 %v2580
  %v2650 = vunpack.c.h.b16 %v2580
  %v2651 = vunpack.c.l.b16 %v2581
  %v2652 = vunpack.c.h.b16 %v2581
  %v2653 = vunpack.c.l.b16 %v2582
  %v2654 = vunpack.c.h.b16 %v2582
  %v2655 = vunpack.c.l.b16 %v2583
  %v2656 = vunpack.c.h.b16 %v2583
  %v2657 = vunpack.c.l.b16 %v2584
  %v2658 = vunpack.c.h.b16 %v2584
  %v2659 = vunpack.c.l.b16 %v2585
  %v2660 = vunpack.c.h.b16 %v2585
  %v2661 = vunpack.c.l.b16 %v2586
  %v2662 = vunpack.c.h.b16 %v2586
  %v2663 = vunpack.c.l.b16 %v2587
  %v2664 = vunpack.c.h.b16 %v2587
  %v2665 = vunpack.c.l.b16 %v2588
  %v2666 = vunpack.c.h.b16 %v2588
  %v2667 = vunpack.c.l.b16 %v2589
  %v2668 = vunpack.c.h.b16 %v2589
  %v2669 = vunpack.c.l.b16 %v2590
  %v2670 = vunpack.c.h.b16 %v2590
  %v2671 = vunpack.c.l.b16 %v2591
  %v2672 = vunpack.c.h.b16 %v2591
  %v2673 = vunpack.c.l.b16 %v2592
  %v2674 = vunpack.c.h.b16 %v2592
  %v2675 = vunpack.c.l.b16 %v2593
  %v2676 = vunpack.c.h.b16 %v2593
  %v2677 = vunpack.c.l.b16 %v2594
  %v2678 = vunpack.c.h.b16 %v2594
  %v2679 = vunpack.c.l.b16 %v2595
  %v2680 = vunpack.c.h.b16 %v2595
  %v2681 = vunpack.c.l.b16 %v2596
  %v2682 = vunpack.c.h.b16 %v2596
  %v2683 = vunpack.c.l.b16 %v2597
  %v2684 = vunpack.c.h.b16 %v2597
  %v2685 = vunpack.c.l.b16 %v2598
  %v2686 = vunpack.c.h.b16 %v2598
  %v2687 = vunpack.c.l.b16 %v2599
  %v2688 = vunpack.c.h.b16 %v2599
  %v2689 = vunpack.c.l.b16 %v2600
  %v2690 = vunpack.c.h.b16 %v2600
  %v2691 = vunpack.c.l.b16 %v2601
  %v2692 = vunpack.c.h.b16 %v2601
  %v2693 = vunpack.c.l.b16 %v2602
  %v2694 = vunpack.c.h.b16 %v2602
  %v2695 = vunpack.c.l.b16 %v2603
  %v2696 = vunpack.c.h.b16 %v2603
  %v2697 = vunpack.c.l.b16 %v2604
  %v2698 = vunpack.c.h.b16 %v2604
  %v2699 = vunpack.c.l.b16 %v2605
  %v2700 = vunpack.c.h.b16 %v2605
  %v2701 = vunpack.c.l.b16 %v2606
  %v2702 = vunpack.c.h.b16 %v2606
  %v2703 = vpack.c.b16 %v2641, %v2639
  %v2704 = vpack.c.b16 %v2642, %v2640
  %v2705 = vpack.c.b16 %v2645, %v2643
  %v2706 = vpack.c.b16 %v2646, %v2644
  %v2707 = vpack.c.b16 %v2649, %v2647
  %v2708 = vpack.c.b16 %v2650, %v2648
  %v2709 = vpack.c.b16 %v2653, %v2651
  %v2710 = vpack.c.b16 %v2654, %v2652
  %v2711 = vpack.c.b16 %v2657, %v2655
  %v2712 = vpack.c.b16 %v2658, %v2656
  %v2713 = vpack.c.b16 %v2661, %v2659
  %v2714 = vpack.c.b16 %v2662, %v2660
  %v2715 = vpack.c.b16 %v2665, %v2663
  %v2716 = vpack.c.b16 %v2666, %v2664
  %v2717 = vpack.c.b16 %v2669, %v2667
  %v2718 = vpack.c.b16 %v2670, %v2668
  %v2719 = vpack.c.b16 %v2673, %v2671
  %v2720 = vpack.c.b16 %v2674, %v2672
  %v2721 = vpack.c.b16 %v2677, %v2675
  %v2722 = vpack.c.b16 %v2678, %v2676
  %v2723 = vpack.c.b16 %v2681, %v2679
  %v2724 = vpack.c.b16 %v2682, %v2680
  %v2725 = vpack.c.b16 %v2685, %v2683
  %v2726 = vpack.c.b16 %v2686, %v2684
  %v2727 = vpack.c.b16 %v2689, %v2687
  %v2728 = vpack.c.b16 %v2690, %v2688
  %v2729 = vpack.c.b16 %v2693, %v2691
  %v2730 = vpack.c.b16 %v2694, %v2692
  %v2731 = vpack.c.b16 %v2697, %v2695
  %v2732 = vpack.c.b16 %v2698, %v2696
  %v2733 = vpack.c.b16 %v2701, %v2699
  %v2734 = vpack.c.b16 %v2702, %v2700
  %2751 = vrot.lane.b32.xlu0 %v1661, 96
  %v2752 = vpop.permute.xlu0 %2751
  %2753 = vrot.lane.b32.xlu0 %v1662, 96
  %v2754 = vpop.permute.xlu0 %2753
  %2755 = vrot.lane.b32.xlu0 %v1663, 96
  %v2756 = vpop.permute.xlu0 %2755
  %2757 = vrot.lane.b32.xlu0 %v1664, 96
  %v2758 = vpop.permute.xlu0 %2757
  %2759 = vrot.lane.b32.xlu0 %v1665, 96
  %v2760 = vpop.permute.xlu0 %2759
  %2761 = vrot.lane.b32.xlu0 %v1666, 96
  %v2762 = vpop.permute.xlu0 %2761
  %2763 = vrot.lane.b32.xlu0 %v1667, 96
  %v2764 = vpop.permute.xlu0 %2763
  %2765 = vrot.lane.b32.xlu0 %v1668, 96
  %v2766 = vpop.permute.xlu0 %2765
  %2767 = vrot.lane.b32.xlu0 %v1669, 96
  %v2768 = vpop.permute.xlu0 %2767
  %2769 = vrot.lane.b32.xlu0 %v1670, 96
  %v2770 = vpop.permute.xlu0 %2769
  %2771 = vrot.lane.b32.xlu0 %v1671, 96
  %v2772 = vpop.permute.xlu0 %2771
  %2773 = vrot.lane.b32.xlu0 %v1672, 96
  %v2774 = vpop.permute.xlu0 %2773
  %v2788 = vsel %vm1069, %v2704, 0
  %v2791 = vsel %vm1069, %v2706, 0
  %v2794 = vsel %vm1069, %v2708, 0
  %v2797 = vsel %vm1069, %v2710, 0
  %v2800 = vsel %vm1069, %v2712, 0
  %v2803 = vsel %vm1069, %v2714, 0
  %v2806 = vsel %vm1069, %v2716, 0
  %v2809 = vsel %vm1069, %v2718, 0
  %v2812 = vsel %vm1069, %v2720, 0
  %v2815 = vsel %vm1069, %v2722, 0
  %v2818 = vsel %vm1069, %v2724, 0
  %v2821 = vsel %vm1069, %v2726, 0
  %v2824 = vsel %vm1069, %v2728, 0
  %v2827 = vsel %vm1069, %v2730, 0
  %v2830 = vsel %vm1069, %v2732, 0
  %v2833 = vsel %vm1069, %v2734, 0
  %2835 = vmatpush.bf16.msra.mxu0 %v2766
  %2836 = vmatpush.bf16.msra.mxu0 %v2764
  %2837 = vmatpush.bf16.msra.mxu0 %v2762
  %2838 = vmatpush.bf16.msra.mxu0 %v2760
  %2839 = vmatpush.bf16.msra.mxu0 %v2758
  %2840 = vmatpush.bf16.msra.mxu0 %v2756
  %2841 = vmatpush.bf16.msra.mxu0 %v2754
  %2842 = vmatpush.bf16.msra.mxu0 %v2752
  %2843 = vmatmul.bf16.gmra.mxu0 %v2703
  %v2844 = vpop.f32.mrf.mxu0
  %v2845 = vadd.f32 0.0, %v2844
  %v2846 = vpop.f32.mrf.mxu0
  %v2847 = vadd.f32 0.0, %v2846
  %2848 = vmatmul.bf16.gmra.mxu0 %v2705
  %v2849 = vpop.f32.mrf.mxu0
  %v2850 = vadd.f32 0.0, %v2849
  %v2851 = vpop.f32.mrf.mxu0
  %v2852 = vadd.f32 0.0, %v2851
  %2853 = vmatmul.bf16.gmra.mxu0 %v2707
  %v2854 = vpop.f32.mrf.mxu0
  %v2855 = vadd.f32 0.0, %v2854
  %v2856 = vpop.f32.mrf.mxu0
  %v2857 = vadd.f32 0.0, %v2856
  %2858 = vmatmul.bf16.gmra.mxu0 %v2709
  %v2859 = vpop.f32.mrf.mxu0
  %v2860 = vadd.f32 0.0, %v2859
  %v2861 = vpop.f32.mrf.mxu0
  %v2862 = vadd.f32 0.0, %v2861
  %2863 = vmatmul.bf16.gmra.mxu0 %v2711
  %v2864 = vpop.f32.mrf.mxu0
  %v2865 = vadd.f32 0.0, %v2864
  %v2866 = vpop.f32.mrf.mxu0
  %v2867 = vadd.f32 0.0, %v2866
  %2868 = vmatmul.bf16.gmra.mxu0 %v2713
  %v2869 = vpop.f32.mrf.mxu0
  %v2870 = vadd.f32 0.0, %v2869
  %v2871 = vpop.f32.mrf.mxu0
  %v2872 = vadd.f32 0.0, %v2871
  %2873 = vmatmul.bf16.gmra.mxu0 %v2715
  %v2874 = vpop.f32.mrf.mxu0
  %v2875 = vadd.f32 0.0, %v2874
  %v2876 = vpop.f32.mrf.mxu0
  %v2877 = vadd.f32 0.0, %v2876
  %2878 = vmatmul.bf16.gmra.mxu0 %v2717
  %v2879 = vpop.f32.mrf.mxu0
  %v2880 = vadd.f32 0.0, %v2879
  %v2881 = vpop.f32.mrf.mxu0
  %v2882 = vadd.f32 0.0, %v2881
  %2883 = vmatmul.bf16.gmra.mxu0 %v2719
  %v2884 = vpop.f32.mrf.mxu0
  %v2885 = vadd.f32 0.0, %v2884
  %v2886 = vpop.f32.mrf.mxu0
  %v2887 = vadd.f32 0.0, %v2886
  %2888 = vmatmul.bf16.gmra.mxu0 %v2721
  %v2889 = vpop.f32.mrf.mxu0
  %v2890 = vadd.f32 0.0, %v2889
  %v2891 = vpop.f32.mrf.mxu0
  %v2892 = vadd.f32 0.0, %v2891
  %2893 = vmatmul.bf16.gmra.mxu0 %v2723
  %v2894 = vpop.f32.mrf.mxu0
  %v2895 = vadd.f32 0.0, %v2894
  %v2896 = vpop.f32.mrf.mxu0
  %v2897 = vadd.f32 0.0, %v2896
  %2898 = vmatmul.bf16.gmra.mxu0 %v2725
  %v2899 = vpop.f32.mrf.mxu0
  %v2900 = vadd.f32 0.0, %v2899
  %v2901 = vpop.f32.mrf.mxu0
  %v2902 = vadd.f32 0.0, %v2901
  %2903 = vmatmul.bf16.gmra.mxu0 %v2727
  %v2904 = vpop.f32.mrf.mxu0
  %v2905 = vadd.f32 0.0, %v2904
  %v2906 = vpop.f32.mrf.mxu0
  %v2907 = vadd.f32 0.0, %v2906
  %2908 = vmatmul.bf16.gmra.mxu0 %v2729
  %v2909 = vpop.f32.mrf.mxu0
  %v2910 = vadd.f32 0.0, %v2909
  %v2911 = vpop.f32.mrf.mxu0
  %v2912 = vadd.f32 0.0, %v2911
  %2913 = vmatmul.bf16.gmra.mxu0 %v2731
  %v2914 = vpop.f32.mrf.mxu0
  %v2915 = vadd.f32 0.0, %v2914
  %v2916 = vpop.f32.mrf.mxu0
  %v2917 = vadd.f32 0.0, %v2916
  %2918 = vmatmul.bf16.gmra.mxu0 %v2733
  %v2919 = vpop.f32.mrf.mxu0
  %v2920 = vadd.f32 0.0, %v2919
  %v2921 = vpop.f32.mrf.mxu0
  %v2922 = vadd.f32 0.0, %v2921
  %2923 = vdwg.mxu0
  %2924 = vmatpush.bf16.msra.mxu0 0
  %2925 = vmatpush.bf16.msra.mxu0 0
  %2926 = vmatpush.bf16.msra.mxu0 0
  %2927 = vmatpush.bf16.msra.mxu0 0
  %2928 = vmatpush.bf16.msra.mxu0 %v2774
  %2929 = vmatpush.bf16.msra.mxu0 %v2772
  %2930 = vmatpush.bf16.msra.mxu0 %v2770
  %2931 = vmatpush.bf16.msra.mxu0 %v2768
  %2932 = vmatmul.bf16.gmra.mxu0 %v2788
  %v2933 = vpop.f32.mrf.mxu0
  %v2934 = vadd.f32 %v2845, %v2933
  %v2935 = vpop.f32.mrf.mxu0
  %v2936 = vadd.f32 %v2847, %v2935
  %2937 = vmatmul.bf16.gmra.mxu0 %v2791
  %v2938 = vpop.f32.mrf.mxu0
  %v2939 = vadd.f32 %v2850, %v2938
  %v2940 = vpop.f32.mrf.mxu0
  %v2941 = vadd.f32 %v2852, %v2940
  %2942 = vmatmul.bf16.gmra.mxu0 %v2794
  %v2943 = vpop.f32.mrf.mxu0
  %v2944 = vadd.f32 %v2855, %v2943
  %v2945 = vpop.f32.mrf.mxu0
  %v2946 = vadd.f32 %v2857, %v2945
  %2947 = vmatmul.bf16.gmra.mxu0 %v2797
  %v2948 = vpop.f32.mrf.mxu0
  %v2949 = vadd.f32 %v2860, %v2948
  %v2950 = vpop.f32.mrf.mxu0
  %v2951 = vadd.f32 %v2862, %v2950
  %2952 = vmatmul.bf16.gmra.mxu0 %v2800
  %v2953 = vpop.f32.mrf.mxu0
  %v2954 = vadd.f32 %v2865, %v2953
  %v2955 = vpop.f32.mrf.mxu0
  %v2956 = vadd.f32 %v2867, %v2955
  %2957 = vmatmul.bf16.gmra.mxu0 %v2803
  %v2958 = vpop.f32.mrf.mxu0
  %v2959 = vadd.f32 %v2870, %v2958
  %v2960 = vpop.f32.mrf.mxu0
  %v2961 = vadd.f32 %v2872, %v2960
  %2962 = vmatmul.bf16.gmra.mxu0 %v2806
  %v2963 = vpop.f32.mrf.mxu0
  %v2964 = vadd.f32 %v2875, %v2963
  %v2965 = vpop.f32.mrf.mxu0
  %v2966 = vadd.f32 %v2877, %v2965
  %2967 = vmatmul.bf16.gmra.mxu0 %v2809
  %v2968 = vpop.f32.mrf.mxu0
  %v2969 = vadd.f32 %v2880, %v2968
  %v2970 = vpop.f32.mrf.mxu0
  %v2971 = vadd.f32 %v2882, %v2970
  %2972 = vmatmul.bf16.gmra.mxu0 %v2812
  %v2973 = vpop.f32.mrf.mxu0
  %v2974 = vadd.f32 %v2885, %v2973
  %v2975 = vpop.f32.mrf.mxu0
  %v2976 = vadd.f32 %v2887, %v2975
  %2977 = vmatmul.bf16.gmra.mxu0 %v2815
  %v2978 = vpop.f32.mrf.mxu0
  %v2979 = vadd.f32 %v2890, %v2978
  %v2980 = vpop.f32.mrf.mxu0
  %v2981 = vadd.f32 %v2892, %v2980
  %2982 = vmatmul.bf16.gmra.mxu0 %v2818
  %v2983 = vpop.f32.mrf.mxu0
  %v2984 = vadd.f32 %v2895, %v2983
  %v2985 = vpop.f32.mrf.mxu0
  %v2986 = vadd.f32 %v2897, %v2985
  %2987 = vmatmul.bf16.gmra.mxu0 %v2821
  %v2988 = vpop.f32.mrf.mxu0
  %v2989 = vadd.f32 %v2900, %v2988
  %v2990 = vpop.f32.mrf.mxu0
  %v2991 = vadd.f32 %v2902, %v2990
  %2992 = vmatmul.bf16.gmra.mxu0 %v2824
  %v2993 = vpop.f32.mrf.mxu0
  %v2994 = vadd.f32 %v2905, %v2993
  %v2995 = vpop.f32.mrf.mxu0
  %v2996 = vadd.f32 %v2907, %v2995
  %2997 = vmatmul.bf16.gmra.mxu0 %v2827
  %v2998 = vpop.f32.mrf.mxu0
  %v2999 = vadd.f32 %v2910, %v2998
  %v3000 = vpop.f32.mrf.mxu0
  %v3001 = vadd.f32 %v2912, %v3000
  %3002 = vmatmul.bf16.gmra.mxu0 %v2830
  %v3003 = vpop.f32.mrf.mxu0
  %v3004 = vadd.f32 %v2915, %v3003
  %v3005 = vpop.f32.mrf.mxu0
  %v3006 = vadd.f32 %v2917, %v3005
  %3007 = vmatmul.bf16.gmra.mxu0 %v2833
  %v3008 = vpop.f32.mrf.mxu0
  %v3009 = vadd.f32 %v2920, %v3008
  %v3010 = vpop.f32.mrf.mxu0
  %v3011 = vadd.f32 %v2922, %v3010
  %3012 = vdwg.mxu0
  %v3013 = vadd.f32 %v2542, %v2934
  %v3014 = vadd.f32 %v2543, %v2936
  %v3015 = vadd.f32 %v2544, %v2939
  %v3016 = vadd.f32 %v2545, %v2941
  %v3017 = vadd.f32 %v2546, %v2944
  %v3018 = vadd.f32 %v2547, %v2946
  %v3019 = vadd.f32 %v2548, %v2949
  %v3020 = vadd.f32 %v2549, %v2951
  %v3021 = vadd.f32 %v2550, %v2954
  %v3022 = vadd.f32 %v2551, %v2956
  %v3023 = vadd.f32 %v2552, %v2959
  %v3024 = vadd.f32 %v2553, %v2961
  %v3025 = vadd.f32 %v2554, %v2964
  %v3026 = vadd.f32 %v2555, %v2966
  %v3027 = vadd.f32 %v2556, %v2969
  %v3028 = vadd.f32 %v2557, %v2971
  %v3029 = vadd.f32 %v2558, %v2974
  %v3030 = vadd.f32 %v2559, %v2976
  %v3031 = vadd.f32 %v2560, %v2979
  %v3032 = vadd.f32 %v2561, %v2981
  %v3033 = vadd.f32 %v2562, %v2984
  %v3034 = vadd.f32 %v2563, %v2986
  %v3035 = vadd.f32 %v2564, %v2989
  %v3036 = vadd.f32 %v2565, %v2991
  %v3037 = vadd.f32 %v2566, %v2994
  %v3038 = vadd.f32 %v2567, %v2996
  %v3039 = vadd.f32 %v2568, %v2999
  %v3040 = vadd.f32 %v2569, %v3001
  %v3041 = vadd.f32 %v2570, %v3004
  %v3042 = vadd.f32 %v2571, %v3006
  %v3043 = vadd.f32 %v2572, %v3009
  %v3044 = vadd.f32 %v2573, %v3011
  %s3045 = scalar_lea.vmem %s29, 768
  %v3046 = vld [vmem:[%s3045] sm:$0xff]
  %v3047 = vld [vmem:[%s3045 + $0x8] sm:$0xff]
  %v3048 = vld [vmem:[%s3045 + $0x10] sm:$0xff]
  %v3049 = vld [vmem:[%s3045 + $0x18] sm:$0xff]
  %v3050 = vld [vmem:[%s3045 + $0x20] sm:$0xff]
  %v3051 = vld [vmem:[%s3045 + $0x28] sm:$0xff]
  %v3052 = vld [vmem:[%s3045 + $0x30] sm:$0xff]
  %v3053 = vld [vmem:[%s3045 + $0x38] sm:$0xff]
  %v3054 = vld [vmem:[%s3045 + $0x40] sm:$0xff]
  %v3055 = vld [vmem:[%s3045 + $0x48] sm:$0xff]
  %v3056 = vld [vmem:[%s3045 + $0x50] sm:$0xff]
  %v3057 = vld [vmem:[%s3045 + $0x58] sm:$0xff]
  %v3058 = vld [vmem:[%s3045 + $0x60] sm:$0xff]
  %v3059 = vld [vmem:[%s3045 + $0x68] sm:$0xff]
  %v3060 = vld [vmem:[%s3045 + $0x70] sm:$0xff]
  %v3061 = vld [vmem:[%s3045 + $0x78] sm:$0xff]
  %v3062 = vld [vmem:[%s3045 + $0x80] sm:$0xff]
  %v3063 = vld [vmem:[%s3045 + $0x88] sm:$0xff]
  %v3064 = vld [vmem:[%s3045 + $0x90] sm:$0xff]
  %v3065 = vld [vmem:[%s3045 + $0x98] sm:$0xff]
  %v3066 = vld [vmem:[%s3045 + $0xa0] sm:$0xff]
  %v3067 = vld [vmem:[%s3045 + $0xa8] sm:$0xff]
  %v3068 = vld [vmem:[%s3045 + $0xb0] sm:$0xff]
  %v3069 = vld [vmem:[%s3045 + $0xb8] sm:$0xff]
  %v3070 = vld [vmem:[%s3045 + $0xc0] sm:$0xff]
  %v3071 = vld [vmem:[%s3045 + $0xc8] sm:$0xff]
  %v3072 = vld [vmem:[%s3045 + $0xd0] sm:$0xff]
  %v3073 = vld [vmem:[%s3045 + $0xd8] sm:$0xff]
  %v3074 = vld [vmem:[%s3045 + $0xe0] sm:$0xff]
  %v3075 = vld [vmem:[%s3045 + $0xe8] sm:$0xff]
  %v3076 = vld [vmem:[%s3045 + $0xf0] sm:$0xff]
  %v3077 = vld [vmem:[%s3045 + $0xf8] sm:$0xff]
  %v3110 = vunpack.c.l.b16 %v3046
  %v3111 = vunpack.c.h.b16 %v3046
  %v3112 = vunpack.c.l.b16 %v3047
  %v3113 = vunpack.c.h.b16 %v3047
  %v3114 = vunpack.c.l.b16 %v3048
  %v3115 = vunpack.c.h.b16 %v3048
  %v3116 = vunpack.c.l.b16 %v3049
  %v3117 = vunpack.c.h.b16 %v3049
  %v3118 = vunpack.c.l.b16 %v3050
  %v3119 = vunpack.c.h.b16 %v3050
  %v3120 = vunpack.c.l.b16 %v3051
  %v3121 = vunpack.c.h.b16 %v3051
  %v3122 = vunpack.c.l.b16 %v3052
  %v3123 = vunpack.c.h.b16 %v3052
  %v3124 = vunpack.c.l.b16 %v3053
  %v3125 = vunpack.c.h.b16 %v3053
  %v3126 = vunpack.c.l.b16 %v3054
  %v3127 = vunpack.c.h.b16 %v3054
  %v3128 = vunpack.c.l.b16 %v3055
  %v3129 = vunpack.c.h.b16 %v3055
  %v3130 = vunpack.c.l.b16 %v3056
  %v3131 = vunpack.c.h.b16 %v3056
  %v3132 = vunpack.c.l.b16 %v3057
  %v3133 = vunpack.c.h.b16 %v3057
  %v3134 = vunpack.c.l.b16 %v3058
  %v3135 = vunpack.c.h.b16 %v3058
  %v3136 = vunpack.c.l.b16 %v3059
  %v3137 = vunpack.c.h.b16 %v3059
  %v3138 = vunpack.c.l.b16 %v3060
  %v3139 = vunpack.c.h.b16 %v3060
  %v3140 = vunpack.c.l.b16 %v3061
  %v3141 = vunpack.c.h.b16 %v3061
  %v3142 = vunpack.c.l.b16 %v3062
  %v3143 = vunpack.c.h.b16 %v3062
  %v3144 = vunpack.c.l.b16 %v3063
  %v3145 = vunpack.c.h.b16 %v3063
  %v3146 = vunpack.c.l.b16 %v3064
  %v3147 = vunpack.c.h.b16 %v3064
  %v3148 = vunpack.c.l.b16 %v3065
  %v3149 = vunpack.c.h.b16 %v3065
  %v3150 = vunpack.c.l.b16 %v3066
  %v3151 = vunpack.c.h.b16 %v3066
  %v3152 = vunpack.c.l.b16 %v3067
  %v3153 = vunpack.c.h.b16 %v3067
  %v3154 = vunpack.c.l.b16 %v3068
  %v3155 = vunpack.c.h.b16 %v3068
  %v3156 = vunpack.c.l.b16 %v3069
  %v3157 = vunpack.c.h.b16 %v3069
  %v3158 = vunpack.c.l.b16 %v3070
  %v3159 = vunpack.c.h.b16 %v3070
  %v3160 = vunpack.c.l.b16 %v3071
  %v3161 = vunpack.c.h.b16 %v3071
  %v3162 = vunpack.c.l.b16 %v3072
  %v3163 = vunpack.c.h.b16 %v3072
  %v3164 = vunpack.c.l.b16 %v3073
  %v3165 = vunpack.c.h.b16 %v3073
  %v3166 = vunpack.c.l.b16 %v3074
  %v3167 = vunpack.c.h.b16 %v3074
  %v3168 = vunpack.c.l.b16 %v3075
  %v3169 = vunpack.c.h.b16 %v3075
  %v3170 = vunpack.c.l.b16 %v3076
  %v3171 = vunpack.c.h.b16 %v3076
  %v3172 = vunpack.c.l.b16 %v3077
  %v3173 = vunpack.c.h.b16 %v3077
  %v3174 = vpack.c.b16 %v3112, %v3110
  %v3175 = vpack.c.b16 %v3113, %v3111
  %v3176 = vpack.c.b16 %v3116, %v3114
  %v3177 = vpack.c.b16 %v3117, %v3115
  %v3178 = vpack.c.b16 %v3120, %v3118
  %v3179 = vpack.c.b16 %v3121, %v3119
  %v3180 = vpack.c.b16 %v3124, %v3122
  %v3181 = vpack.c.b16 %v3125, %v3123
  %v3182 = vpack.c.b16 %v3128, %v3126
  %v3183 = vpack.c.b16 %v3129, %v3127
  %v3184 = vpack.c.b16 %v3132, %v3130
  %v3185 = vpack.c.b16 %v3133, %v3131
  %v3186 = vpack.c.b16 %v3136, %v3134
  %v3187 = vpack.c.b16 %v3137, %v3135
  %v3188 = vpack.c.b16 %v3140, %v3138
  %v3189 = vpack.c.b16 %v3141, %v3139
  %v3190 = vpack.c.b16 %v3144, %v3142
  %v3191 = vpack.c.b16 %v3145, %v3143
  %v3192 = vpack.c.b16 %v3148, %v3146
  %v3193 = vpack.c.b16 %v3149, %v3147
  %v3194 = vpack.c.b16 %v3152, %v3150
  %v3195 = vpack.c.b16 %v3153, %v3151
  %v3196 = vpack.c.b16 %v3156, %v3154
  %v3197 = vpack.c.b16 %v3157, %v3155
  %v3198 = vpack.c.b16 %v3160, %v3158
  %v3199 = vpack.c.b16 %v3161, %v3159
  %v3200 = vpack.c.b16 %v3164, %v3162
  %v3201 = vpack.c.b16 %v3165, %v3163
  %v3202 = vpack.c.b16 %v3168, %v3166
  %v3203 = vpack.c.b16 %v3169, %v3167
  %v3204 = vpack.c.b16 %v3172, %v3170
  %v3205 = vpack.c.b16 %v3173, %v3171
  %3222 = vrot.lane.b32.xlu0 %v1661, 80
  %v3223 = vpop.permute.xlu0 %3222
  %3224 = vrot.lane.b32.xlu0 %v1662, 80
  %v3225 = vpop.permute.xlu0 %3224
  %3226 = vrot.lane.b32.xlu0 %v1663, 80
  %v3227 = vpop.permute.xlu0 %3226
  %3228 = vrot.lane.b32.xlu0 %v1664, 80
  %v3229 = vpop.permute.xlu0 %3228
  %3230 = vrot.lane.b32.xlu0 %v1665, 80
  %v3231 = vpop.permute.xlu0 %3230
  %3232 = vrot.lane.b32.xlu0 %v1666, 80
  %v3233 = vpop.permute.xlu0 %3232
  %3234 = vrot.lane.b32.xlu0 %v1667, 80
  %v3235 = vpop.permute.xlu0 %3234
  %3236 = vrot.lane.b32.xlu0 %v1668, 80
  %v3237 = vpop.permute.xlu0 %3236
  %3238 = vrot.lane.b32.xlu0 %v1669, 80
  %v3239 = vpop.permute.xlu0 %3238
  %3240 = vrot.lane.b32.xlu0 %v1670, 80
  %v3241 = vpop.permute.xlu0 %3240
  %3242 = vrot.lane.b32.xlu0 %v1671, 80
  %v3243 = vpop.permute.xlu0 %3242
  %3244 = vrot.lane.b32.xlu0 %v1672, 80
  %v3245 = vpop.permute.xlu0 %3244
  %v3259 = vsel %vm1069, %v3175, 0
  %v3262 = vsel %vm1069, %v3177, 0
  %v3265 = vsel %vm1069, %v3179, 0
  %v3268 = vsel %vm1069, %v3181, 0
  %v3271 = vsel %vm1069, %v3183, 0
  %v3274 = vsel %vm1069, %v3185, 0
  %v3277 = vsel %vm1069, %v3187, 0
  %v3280 = vsel %vm1069, %v3189, 0
  %v3283 = vsel %vm1069, %v3191, 0
  %v3286 = vsel %vm1069, %v3193, 0
  %v3289 = vsel %vm1069, %v3195, 0
  %v3292 = vsel %vm1069, %v3197, 0
  %v3295 = vsel %vm1069, %v3199, 0
  %v3298 = vsel %vm1069, %v3201, 0
  %v3301 = vsel %vm1069, %v3203, 0
  %v3304 = vsel %vm1069, %v3205, 0
  %3306 = vmatpush.bf16.msra.mxu0 %v3237
  %3307 = vmatpush.bf16.msra.mxu0 %v3235
  %3308 = vmatpush.bf16.msra.mxu0 %v3233
  %3309 = vmatpush.bf16.msra.mxu0 %v3231
  %3310 = vmatpush.bf16.msra.mxu0 %v3229
  %3311 = vmatpush.bf16.msra.mxu0 %v3227
  %3312 = vmatpush.bf16.msra.mxu0 %v3225
  %3313 = vmatpush.bf16.msra.mxu0 %v3223
  %3314 = vmatmul.bf16.gmra.mxu0 %v3174
  %v3315 = vpop.f32.mrf.mxu0
  %v3316 = vadd.f32 0.0, %v3315
  %v3317 = vpop.f32.mrf.mxu0
  %v3318 = vadd.f32 0.0, %v3317
  %3319 = vmatmul.bf16.gmra.mxu0 %v3176
  %v3320 = vpop.f32.mrf.mxu0
  %v3321 = vadd.f32 0.0, %v3320
  %v3322 = vpop.f32.mrf.mxu0
  %v3323 = vadd.f32 0.0, %v3322
  %3324 = vmatmul.bf16.gmra.mxu0 %v3178
  %v3325 = vpop.f32.mrf.mxu0
  %v3326 = vadd.f32 0.0, %v3325
  %v3327 = vpop.f32.mrf.mxu0
  %v3328 = vadd.f32 0.0, %v3327
  %3329 = vmatmul.bf16.gmra.mxu0 %v3180
  %v3330 = vpop.f32.mrf.mxu0
  %v3331 = vadd.f32 0.0, %v3330
  %v3332 = vpop.f32.mrf.mxu0
  %v3333 = vadd.f32 0.0, %v3332
  %3334 = vmatmul.bf16.gmra.mxu0 %v3182
  %v3335 = vpop.f32.mrf.mxu0
  %v3336 = vadd.f32 0.0, %v3335
  %v3337 = vpop.f32.mrf.mxu0
  %v3338 = vadd.f32 0.0, %v3337
  %3339 = vmatmul.bf16.gmra.mxu0 %v3184
  %v3340 = vpop.f32.mrf.mxu0
  %v3341 = vadd.f32 0.0, %v3340
  %v3342 = vpop.f32.mrf.mxu0
  %v3343 = vadd.f32 0.0, %v3342
  %3344 = vmatmul.bf16.gmra.mxu0 %v3186
  %v3345 = vpop.f32.mrf.mxu0
  %v3346 = vadd.f32 0.0, %v3345
  %v3347 = vpop.f32.mrf.mxu0
  %v3348 = vadd.f32 0.0, %v3347
  %3349 = vmatmul.bf16.gmra.mxu0 %v3188
  %v3350 = vpop.f32.mrf.mxu0
  %v3351 = vadd.f32 0.0, %v3350
  %v3352 = vpop.f32.mrf.mxu0
  %v3353 = vadd.f32 0.0, %v3352
  %3354 = vmatmul.bf16.gmra.mxu0 %v3190
  %v3355 = vpop.f32.mrf.mxu0
  %v3356 = vadd.f32 0.0, %v3355
  %v3357 = vpop.f32.mrf.mxu0
  %v3358 = vadd.f32 0.0, %v3357
  %3359 = vmatmul.bf16.gmra.mxu0 %v3192
  %v3360 = vpop.f32.mrf.mxu0
  %v3361 = vadd.f32 0.0, %v3360
  %v3362 = vpop.f32.mrf.mxu0
  %v3363 = vadd.f32 0.0, %v3362
  %3364 = vmatmul.bf16.gmra.mxu0 %v3194
  %v3365 = vpop.f32.mrf.mxu0
  %v3366 = vadd.f32 0.0, %v3365
  %v3367 = vpop.f32.mrf.mxu0
  %v3368 = vadd.f32 0.0, %v3367
  %3369 = vmatmul.bf16.gmra.mxu0 %v3196
  %v3370 = vpop.f32.mrf.mxu0
  %v3371 = vadd.f32 0.0, %v3370
  %v3372 = vpop.f32.mrf.mxu0
  %v3373 = vadd.f32 0.0, %v3372
  %3374 = vmatmul.bf16.gmra.mxu0 %v3198
  %v3375 = vpop.f32.mrf.mxu0
  %v3376 = vadd.f32 0.0, %v3375
  %v3377 = vpop.f32.mrf.mxu0
  %v3378 = vadd.f32 0.0, %v3377
  %3379 = vmatmul.bf16.gmra.mxu0 %v3200
  %v3380 = vpop.f32.mrf.mxu0
  %v3381 = vadd.f32 0.0, %v3380
  %v3382 = vpop.f32.mrf.mxu0
  %v3383 = vadd.f32 0.0, %v3382
  %3384 = vmatmul.bf16.gmra.mxu0 %v3202
  %v3385 = vpop.f32.mrf.mxu0
  %v3386 = vadd.f32 0.0, %v3385
  %v3387 = vpop.f32.mrf.mxu0
  %v3388 = vadd.f32 0.0, %v3387
  %3389 = vmatmul.bf16.gmra.mxu0 %v3204
  %v3390 = vpop.f32.mrf.mxu0
  %v3391 = vadd.f32 0.0, %v3390
  %v3392 = vpop.f32.mrf.mxu0
  %v3393 = vadd.f32 0.0, %v3392
  %3394 = vdwg.mxu0
  %3395 = vmatpush.bf16.msra.mxu0 0
  %3396 = vmatpush.bf16.msra.mxu0 0
  %3397 = vmatpush.bf16.msra.mxu0 0
  %3398 = vmatpush.bf16.msra.mxu0 0
  %3399 = vmatpush.bf16.msra.mxu0 %v3245
  %3400 = vmatpush.bf16.msra.mxu0 %v3243
  %3401 = vmatpush.bf16.msra.mxu0 %v3241
  %3402 = vmatpush.bf16.msra.mxu0 %v3239
  %3403 = vmatmul.bf16.gmra.mxu0 %v3259
  %v3404 = vpop.f32.mrf.mxu0
  %v3405 = vadd.f32 %v3316, %v3404
  %v3406 = vpop.f32.mrf.mxu0
  %v3407 = vadd.f32 %v3318, %v3406
  %3408 = vmatmul.bf16.gmra.mxu0 %v3262
  %v3409 = vpop.f32.mrf.mxu0
  %v3410 = vadd.f32 %v3321, %v3409
  %v3411 = vpop.f32.mrf.mxu0
  %v3412 = vadd.f32 %v3323, %v3411
  %3413 = vmatmul.bf16.gmra.mxu0 %v3265
  %v3414 = vpop.f32.mrf.mxu0
  %v3415 = vadd.f32 %v3326, %v3414
  %v3416 = vpop.f32.mrf.mxu0
  %v3417 = vadd.f32 %v3328, %v3416
  %3418 = vmatmul.bf16.gmra.mxu0 %v3268
  %v3419 = vpop.f32.mrf.mxu0
  %v3420 = vadd.f32 %v3331, %v3419
  %v3421 = vpop.f32.mrf.mxu0
  %v3422 = vadd.f32 %v3333, %v3421
  %3423 = vmatmul.bf16.gmra.mxu0 %v3271
  %v3424 = vpop.f32.mrf.mxu0
  %v3425 = vadd.f32 %v3336, %v3424
  %v3426 = vpop.f32.mrf.mxu0
  %v3427 = vadd.f32 %v3338, %v3426
  %3428 = vmatmul.bf16.gmra.mxu0 %v3274
  %v3429 = vpop.f32.mrf.mxu0
  %v3430 = vadd.f32 %v3341, %v3429
  %v3431 = vpop.f32.mrf.mxu0
  %v3432 = vadd.f32 %v3343, %v3431
  %3433 = vmatmul.bf16.gmra.mxu0 %v3277
  %v3434 = vpop.f32.mrf.mxu0
  %v3435 = vadd.f32 %v3346, %v3434
  %v3436 = vpop.f32.mrf.mxu0
  %v3437 = vadd.f32 %v3348, %v3436
  %3438 = vmatmul.bf16.gmra.mxu0 %v3280
  %v3439 = vpop.f32.mrf.mxu0
  %v3440 = vadd.f32 %v3351, %v3439
  %v3441 = vpop.f32.mrf.mxu0
  %v3442 = vadd.f32 %v3353, %v3441
  %3443 = vmatmul.bf16.gmra.mxu0 %v3283
  %v3444 = vpop.f32.mrf.mxu0
  %v3445 = vadd.f32 %v3356, %v3444
  %v3446 = vpop.f32.mrf.mxu0
  %v3447 = vadd.f32 %v3358, %v3446
  %3448 = vmatmul.bf16.gmra.mxu0 %v3286
  %v3449 = vpop.f32.mrf.mxu0
  %v3450 = vadd.f32 %v3361, %v3449
  %v3451 = vpop.f32.mrf.mxu0
  %v3452 = vadd.f32 %v3363, %v3451
  %3453 = vmatmul.bf16.gmra.mxu0 %v3289
  %v3454 = vpop.f32.mrf.mxu0
  %v3455 = vadd.f32 %v3366, %v3454
  %v3456 = vpop.f32.mrf.mxu0
  %v3457 = vadd.f32 %v3368, %v3456
  %3458 = vmatmul.bf16.gmra.mxu0 %v3292
  %v3459 = vpop.f32.mrf.mxu0
  %v3460 = vadd.f32 %v3371, %v3459
  %v3461 = vpop.f32.mrf.mxu0
  %v3462 = vadd.f32 %v3373, %v3461
  %3463 = vmatmul.bf16.gmra.mxu0 %v3295
  %v3464 = vpop.f32.mrf.mxu0
  %v3465 = vadd.f32 %v3376, %v3464
  %v3466 = vpop.f32.mrf.mxu0
  %v3467 = vadd.f32 %v3378, %v3466
  %3468 = vmatmul.bf16.gmra.mxu0 %v3298
  %v3469 = vpop.f32.mrf.mxu0
  %v3470 = vadd.f32 %v3381, %v3469
  %v3471 = vpop.f32.mrf.mxu0
  %v3472 = vadd.f32 %v3383, %v3471
  %3473 = vmatmul.bf16.gmra.mxu0 %v3301
  %v3474 = vpop.f32.mrf.mxu0
  %v3475 = vadd.f32 %v3386, %v3474
  %v3476 = vpop.f32.mrf.mxu0
  %v3477 = vadd.f32 %v3388, %v3476
  %3478 = vmatmul.bf16.gmra.mxu0 %v3304
  %v3479 = vpop.f32.mrf.mxu0
  %v3480 = vadd.f32 %v3391, %v3479
  %v3481 = vpop.f32.mrf.mxu0
  %v3482 = vadd.f32 %v3393, %v3481
  %3483 = vdwg.mxu0
  %v3484 = vadd.f32 %v3013, %v3405
  %v3485 = vadd.f32 %v3014, %v3407
  %v3486 = vadd.f32 %v3015, %v3410
  %v3487 = vadd.f32 %v3016, %v3412
  %v3488 = vadd.f32 %v3017, %v3415
  %v3489 = vadd.f32 %v3018, %v3417
  %v3490 = vadd.f32 %v3019, %v3420
  %v3491 = vadd.f32 %v3020, %v3422
  %v3492 = vadd.f32 %v3021, %v3425
  %v3493 = vadd.f32 %v3022, %v3427
  %v3494 = vadd.f32 %v3023, %v3430
  %v3495 = vadd.f32 %v3024, %v3432
  %v3496 = vadd.f32 %v3025, %v3435
  %v3497 = vadd.f32 %v3026, %v3437
  %v3498 = vadd.f32 %v3027, %v3440
  %v3499 = vadd.f32 %v3028, %v3442
  %v3500 = vadd.f32 %v3029, %v3445
  %v3501 = vadd.f32 %v3030, %v3447
  %v3502 = vadd.f32 %v3031, %v3450
  %v3503 = vadd.f32 %v3032, %v3452
  %v3504 = vadd.f32 %v3033, %v3455
  %v3505 = vadd.f32 %v3034, %v3457
  %v3506 = vadd.f32 %v3035, %v3460
  %v3507 = vadd.f32 %v3036, %v3462
  %v3508 = vadd.f32 %v3037, %v3465
  %v3509 = vadd.f32 %v3038, %v3467
  %v3510 = vadd.f32 %v3039, %v3470
  %v3511 = vadd.f32 %v3040, %v3472
  %v3512 = vadd.f32 %v3041, %v3475
  %v3513 = vadd.f32 %v3042, %v3477
  %v3514 = vadd.f32 %v3043, %v3480
  %v3515 = vadd.f32 %v3044, %v3482
  %v3516 = vmax.f32 %v3484, 0.0
  %v3517 = vmax.f32 %v3485, 0.0
  %v3518 = vmax.f32 %v3486, 0.0
  %v3519 = vmax.f32 %v3487, 0.0
  %v3520 = vmax.f32 %v3488, 0.0
  %v3521 = vmax.f32 %v3489, 0.0
  %v3522 = vmax.f32 %v3490, 0.0
  %v3523 = vmax.f32 %v3491, 0.0
  %v3524 = vmax.f32 %v3492, 0.0
  %v3525 = vmax.f32 %v3493, 0.0
  %v3526 = vmax.f32 %v3494, 0.0
  %v3527 = vmax.f32 %v3495, 0.0
  %v3528 = vmax.f32 %v3496, 0.0
  %v3529 = vmax.f32 %v3497, 0.0
  %v3530 = vmax.f32 %v3498, 0.0
  %v3531 = vmax.f32 %v3499, 0.0
  %v3532 = vmax.f32 %v3500, 0.0
  %v3533 = vmax.f32 %v3501, 0.0
  %v3534 = vmax.f32 %v3502, 0.0
  %v3535 = vmax.f32 %v3503, 0.0
  %v3536 = vmax.f32 %v3504, 0.0
  %v3537 = vmax.f32 %v3505, 0.0
  %v3538 = vmax.f32 %v3506, 0.0
  %v3539 = vmax.f32 %v3507, 0.0
  %v3540 = vmax.f32 %v3508, 0.0
  %v3541 = vmax.f32 %v3509, 0.0
  %v3542 = vmax.f32 %v3510, 0.0
  %v3543 = vmax.f32 %v3511, 0.0
  %v3544 = vmax.f32 %v3512, 0.0
  %v3545 = vmax.f32 %v3513, 0.0
  %v3546 = vmax.f32 %v3514, 0.0
  %v3547 = vmax.f32 %v3515, 0.0
  %v3548 = vpack.c.bf16 %v3517, %v3516
  %v3549 = vpack.c.bf16 %v3519, %v3518
  %v3550 = vpack.c.bf16 %v3521, %v3520
  %v3551 = vpack.c.bf16 %v3523, %v3522
  %v3552 = vpack.c.bf16 %v3525, %v3524
  %v3553 = vpack.c.bf16 %v3527, %v3526
  %v3554 = vpack.c.bf16 %v3529, %v3528
  %v3555 = vpack.c.bf16 %v3531, %v3530
  %v3556 = vpack.c.bf16 %v3533, %v3532
  %v3557 = vpack.c.bf16 %v3535, %v3534
  %v3558 = vpack.c.bf16 %v3537, %v3536
  %v3559 = vpack.c.bf16 %v3539, %v3538
  %v3560 = vpack.c.bf16 %v3541, %v3540
  %v3561 = vpack.c.bf16 %v3543, %v3542
  %v3562 = vpack.c.bf16 %v3545, %v3544
  %v3563 = vpack.c.bf16 %v3547, %v3546
  %v3564 = vld [vmem:[%s33] sm:$0xf]
  %v3565 = vld [vmem:[%s33 + $0x4] sm:$0xf]
  %v3568 = vunpack.c.l.b16 %v3564
  %v3569 = vunpack.c.l.b16 %v3565
  %v3570 = vpack.c.b16 %v3569, %v3568
  %v3573 = vsel %vm913, %v3548, 0
  %v3576 = vsel %vm913, %v3549, 0
  %v3579 = vsel %vm913, %v3550, 0
  %v3582 = vsel %vm913, %v3551, 0
  %v3585 = vsel %vm913, %v3552, 0
  %v3588 = vsel %vm913, %v3553, 0
  %v3591 = vsel %vm913, %v3554, 0
  %v3594 = vsel %vm913, %v3555, 0
  %v3597 = vsel %vm913, %v3556, 0
  %v3600 = vsel %vm913, %v3557, 0
  %v3603 = vsel %vm913, %v3558, 0
  %v3606 = vsel %vm913, %v3559, 0
  %v3609 = vsel %vm913, %v3560, 0
  %v3612 = vsel %vm913, %v3561, 0
  %v3615 = vsel %vm913, %v3562, 0
  %v3618 = vsel %vm913, %v3563, 0
  %3620 = vmatpush.bf16.msra.mxu0 0
  %3621 = vmatpush.bf16.msra.mxu0 0
  %3622 = vmatpush.bf16.msra.mxu0 0
  %3623 = vmatpush.bf16.msra.mxu0 0
  %3624 = vmatpush.bf16.msra.mxu0 0
  %3625 = vmatpush.bf16.msra.mxu0 0
  %3626 = vmatpush.bf16.msra.mxu0 0
  %3627 = vmatpush.bf16.msra.mxu0 %v3570
  %3628 = vmatmul.bf16.gmra.mxu0 %v3573
  %v3629 = vpop.f32.mrf.mxu0
  %v3630 = vadd.f32 0.0, %v3629
  %v3631 = vpop.f32.mrf.mxu0
  %v3632 = vadd.f32 0.0, %v3631
  %3633 = vmatmul.bf16.gmra.mxu0 %v3576
  %v3634 = vpop.f32.mrf.mxu0
  %v3635 = vadd.f32 0.0, %v3634
  %v3636 = vpop.f32.mrf.mxu0
  %v3637 = vadd.f32 0.0, %v3636
  %3638 = vmatmul.bf16.gmra.mxu0 %v3579
  %v3639 = vpop.f32.mrf.mxu0
  %v3640 = vadd.f32 0.0, %v3639
  %v3641 = vpop.f32.mrf.mxu0
  %v3642 = vadd.f32 0.0, %v3641
  %3643 = vmatmul.bf16.gmra.mxu0 %v3582
  %v3644 = vpop.f32.mrf.mxu0
  %v3645 = vadd.f32 0.0, %v3644
  %v3646 = vpop.f32.mrf.mxu0
  %v3647 = vadd.f32 0.0, %v3646
  %3648 = vmatmul.bf16.gmra.mxu0 %v3585
  %v3649 = vpop.f32.mrf.mxu0
  %v3650 = vadd.f32 0.0, %v3649
  %v3651 = vpop.f32.mrf.mxu0
  %v3652 = vadd.f32 0.0, %v3651
  %3653 = vmatmul.bf16.gmra.mxu0 %v3588
  %v3654 = vpop.f32.mrf.mxu0
  %v3655 = vadd.f32 0.0, %v3654
  %v3656 = vpop.f32.mrf.mxu0
  %v3657 = vadd.f32 0.0, %v3656
  %3658 = vmatmul.bf16.gmra.mxu0 %v3591
  %v3659 = vpop.f32.mrf.mxu0
  %v3660 = vadd.f32 0.0, %v3659
  %v3661 = vpop.f32.mrf.mxu0
  %v3662 = vadd.f32 0.0, %v3661
  %3663 = vmatmul.bf16.gmra.mxu0 %v3594
  %v3664 = vpop.f32.mrf.mxu0
  %v3665 = vadd.f32 0.0, %v3664
  %v3666 = vpop.f32.mrf.mxu0
  %v3667 = vadd.f32 0.0, %v3666
  %3668 = vmatmul.bf16.gmra.mxu0 %v3597
  %v3669 = vpop.f32.mrf.mxu0
  %v3670 = vadd.f32 0.0, %v3669
  %v3671 = vpop.f32.mrf.mxu0
  %v3672 = vadd.f32 0.0, %v3671
  %3673 = vmatmul.bf16.gmra.mxu0 %v3600
  %v3674 = vpop.f32.mrf.mxu0
  %v3675 = vadd.f32 0.0, %v3674
  %v3676 = vpop.f32.mrf.mxu0
  %v3677 = vadd.f32 0.0, %v3676
  %3678 = vmatmul.bf16.gmra.mxu0 %v3603
  %v3679 = vpop.f32.mrf.mxu0
  %v3680 = vadd.f32 0.0, %v3679
  %v3681 = vpop.f32.mrf.mxu0
  %v3682 = vadd.f32 0.0, %v3681
  %3683 = vmatmul.bf16.gmra.mxu0 %v3606
  %v3684 = vpop.f32.mrf.mxu0
  %v3685 = vadd.f32 0.0, %v3684
  %v3686 = vpop.f32.mrf.mxu0
  %v3687 = vadd.f32 0.0, %v3686
  %3688 = vmatmul.bf16.gmra.mxu0 %v3609
  %v3689 = vpop.f32.mrf.mxu0
  %v3690 = vadd.f32 0.0, %v3689
  %v3691 = vpop.f32.mrf.mxu0
  %v3692 = vadd.f32 0.0, %v3691
  %3693 = vmatmul.bf16.gmra.mxu0 %v3612
  %v3694 = vpop.f32.mrf.mxu0
  %v3695 = vadd.f32 0.0, %v3694
  %v3696 = vpop.f32.mrf.mxu0
  %v3697 = vadd.f32 0.0, %v3696
  %3698 = vmatmul.bf16.gmra.mxu0 %v3615
  %v3699 = vpop.f32.mrf.mxu0
  %v3700 = vadd.f32 0.0, %v3699
  %v3701 = vpop.f32.mrf.mxu0
  %v3702 = vadd.f32 0.0, %v3701
  %3703 = vmatmul.bf16.gmra.mxu0 %v3618
  %v3704 = vpop.f32.mrf.mxu0
  %v3705 = vadd.f32 0.0, %v3704
  %v3706 = vpop.f32.mrf.mxu0
  %v3707 = vadd.f32 0.0, %v3706
  %3708 = vdwg.mxu0
  %v3709 = vpack.c.bf16 %v3630, %v3630
  %v3710 = vpack.c.bf16 %v3632, %v3632
  %v3711 = vpack.c.bf16 %v3635, %v3635
  %v3712 = vpack.c.bf16 %v3637, %v3637
  %v3713 = vpack.c.bf16 %v3640, %v3640
  %v3714 = vpack.c.bf16 %v3642, %v3642
  %v3715 = vpack.c.bf16 %v3645, %v3645
  %v3716 = vpack.c.bf16 %v3647, %v3647
  %v3717 = vpack.c.bf16 %v3650, %v3650
  %v3718 = vpack.c.bf16 %v3652, %v3652
  %v3719 = vpack.c.bf16 %v3655, %v3655
  %v3720 = vpack.c.bf16 %v3657, %v3657
  %v3721 = vpack.c.bf16 %v3660, %v3660
  %v3722 = vpack.c.bf16 %v3662, %v3662
  %v3723 = vpack.c.bf16 %v3665, %v3665
  %v3724 = vpack.c.bf16 %v3667, %v3667
  %v3725 = vpack.c.bf16 %v3670, %v3670
  %v3726 = vpack.c.bf16 %v3672, %v3672
  %v3727 = vpack.c.bf16 %v3675, %v3675
  %v3728 = vpack.c.bf16 %v3677, %v3677
  %v3729 = vpack.c.bf16 %v3680, %v3680
  %v3730 = vpack.c.bf16 %v3682, %v3682
  %v3731 = vpack.c.bf16 %v3685, %v3685
  %v3732 = vpack.c.bf16 %v3687, %v3687
  %v3733 = vpack.c.bf16 %v3690, %v3690
  %v3734 = vpack.c.bf16 %v3692, %v3692
  %v3735 = vpack.c.bf16 %v3695, %v3695
  %v3736 = vpack.c.bf16 %v3697, %v3697
  %v3737 = vpack.c.bf16 %v3700, %v3700
  %v3738 = vpack.c.bf16 %v3702, %v3702
  %v3739 = vpack.c.bf16 %v3705, %v3705
  %v3740 = vpack.c.bf16 %v3707, %v3707
  %v3741 = vld [vmem:[%s37] sm:$0xff]
  %v3742 = vld [vmem:[%s37 + $0x8] sm:$0xff]
  %v3743 = vld [vmem:[%s37 + $0x10] sm:$0xff]
  %v3744 = vld [vmem:[%s37 + $0x18] sm:$0xff]
  %v3745 = vld [vmem:[%s37 + $0x20] sm:$0xff]
  %v3746 = vld [vmem:[%s37 + $0x28] sm:$0xff]
  %v3747 = vld [vmem:[%s37 + $0x30] sm:$0xff]
  %v3748 = vld [vmem:[%s37 + $0x38] sm:$0xff]
  %v3749 = vld [vmem:[%s37 + $0x40] sm:$0xff]
  %v3750 = vld [vmem:[%s37 + $0x48] sm:$0xff]
  %v3751 = vld [vmem:[%s37 + $0x50] sm:$0xff]
  %v3752 = vld [vmem:[%s37 + $0x58] sm:$0xff]
  %v3753 = vld [vmem:[%s37 + $0x60] sm:$0xff]
  %v3754 = vld [vmem:[%s37 + $0x68] sm:$0xff]
  %v3755 = vld [vmem:[%s37 + $0x70] sm:$0xff]
  %v3756 = vld [vmem:[%s37 + $0x78] sm:$0xff]
  %v3757 = vld [vmem:[%s35] sm:$0xff]
  %v3758 = vld [vmem:[%s35 + $0x8] sm:$0xff]
  %v3759 = vld [vmem:[%s35 + $0x10] sm:$0xff]
  %v3760 = vld [vmem:[%s35 + $0x18] sm:$0xff]
  %v3761 = vld [vmem:[%s35 + $0x20] sm:$0xff]
  %v3762 = vld [vmem:[%s35 + $0x28] sm:$0xff]
  %v3763 = vld [vmem:[%s35 + $0x30] sm:$0xff]
  %v3764 = vld [vmem:[%s35 + $0x38] sm:$0xff]
  %v3765 = vld [vmem:[%s35 + $0x40] sm:$0xff]
  %v3766 = vld [vmem:[%s35 + $0x48] sm:$0xff]
  %v3767 = vld [vmem:[%s35 + $0x50] sm:$0xff]
  %v3768 = vld [vmem:[%s35 + $0x58] sm:$0xff]
  %v3769 = vld [vmem:[%s35 + $0x60] sm:$0xff]
  %v3770 = vld [vmem:[%s35 + $0x68] sm:$0xff]
  %v3771 = vld [vmem:[%s35 + $0x70] sm:$0xff]
  %v3772 = vld [vmem:[%s35 + $0x78] sm:$0xff]
  %v3789 = vunpack.c.l.b16 %v3757
  %v3790 = vunpack.c.h.b16 %v3757
  %v3791 = vunpack.c.l.b16 %v3758
  %v3792 = vunpack.c.h.b16 %v3758
  %v3793 = vunpack.c.l.b16 %v3759
  %v3794 = vunpack.c.h.b16 %v3759
  %v3795 = vunpack.c.l.b16 %v3760
  %v3796 = vunpack.c.h.b16 %v3760
  %v3797 = vunpack.c.l.b16 %v3761
  %v3798 = vunpack.c.h.b16 %v3761
  %v3799 = vunpack.c.l.b16 %v3762
  %v3800 = vunpack.c.h.b16 %v3762
  %v3801 = vunpack.c.l.b16 %v3763
  %v3802 = vunpack.c.h.b16 %v3763
  %v3803 = vunpack.c.l.b16 %v3764
  %v3804 = vunpack.c.h.b16 %v3764
  %v3805 = vunpack.c.l.b16 %v3765
  %v3806 = vunpack.c.h.b16 %v3765
  %v3807 = vunpack.c.l.b16 %v3766
  %v3808 = vunpack.c.h.b16 %v3766
  %v3809 = vunpack.c.l.b16 %v3767
  %v3810 = vunpack.c.h.b16 %v3767
  %v3811 = vunpack.c.l.b16 %v3768
  %v3812 = vunpack.c.h.b16 %v3768
  %v3813 = vunpack.c.l.b16 %v3769
  %v3814 = vunpack.c.h.b16 %v3769
  %v3815 = vunpack.c.l.b16 %v3770
  %v3816 = vunpack.c.h.b16 %v3770
  %v3817 = vunpack.c.l.b16 %v3771
  %v3818 = vunpack.c.h.b16 %v3771
  %v3819 = vunpack.c.l.b16 %v3772
  %v3820 = vunpack.c.h.b16 %v3772
  %v3821 = vpack.c.b16 %v3791, %v3789
  %v3822 = vpack.c.b16 %v3792, %v3790
  %v3823 = vpack.c.b16 %v3795, %v3793
  %v3824 = vpack.c.b16 %v3796, %v3794
  %v3825 = vpack.c.b16 %v3799, %v3797
  %v3826 = vpack.c.b16 %v3800, %v3798
  %v3827 = vpack.c.b16 %v3803, %v3801
  %v3828 = vpack.c.b16 %v3804, %v3802
  %v3829 = vpack.c.b16 %v3807, %v3805
  %v3830 = vpack.c.b16 %v3808, %v3806
  %v3831 = vpack.c.b16 %v3811, %v3809
  %v3832 = vpack.c.b16 %v3812, %v3810
  %v3833 = vpack.c.b16 %v3815, %v3813
  %v3834 = vpack.c.b16 %v3816, %v3814
  %v3835 = vpack.c.b16 %v3819, %v3817
  %v3836 = vpack.c.b16 %v3820, %v3818
  %v3885 = vunpack.c.l.b16 %v3709
  %v3886 = vunpack.c.l.b16 %v3710
  %v3887 = vunpack.c.l.b16 %v3711
  %v3888 = vunpack.c.l.b16 %v3712
  %v3889 = vunpack.c.l.b16 %v3713
  %v3890 = vunpack.c.l.b16 %v3714
  %v3891 = vunpack.c.l.b16 %v3715
  %v3892 = vunpack.c.l.b16 %v3716
  %v3893 = vunpack.c.l.b16 %v3717
  %v3894 = vunpack.c.l.b16 %v3718
  %v3895 = vunpack.c.l.b16 %v3719
  %v3896 = vunpack.c.l.b16 %v3720
  %v3897 = vunpack.c.l.b16 %v3721
  %v3898 = vunpack.c.l.b16 %v3722
  %v3899 = vunpack.c.l.b16 %v3723
  %v3900 = vunpack.c.l.b16 %v3724
  %v3901 = vunpack.c.l.b16 %v3725
  %v3902 = vunpack.c.l.b16 %v3726
  %v3903 = vunpack.c.l.b16 %v3727
  %v3904 = vunpack.c.l.b16 %v3728
  %v3905 = vunpack.c.l.b16 %v3729
  %v3906 = vunpack.c.l.b16 %v3730
  %v3907 = vunpack.c.l.b16 %v3731
  %v3908 = vunpack.c.l.b16 %v3732
  %v3909 = vunpack.c.l.b16 %v3733
  %v3910 = vunpack.c.l.b16 %v3734
  %v3911 = vunpack.c.l.b16 %v3735
  %v3912 = vunpack.c.l.b16 %v3736
  %v3913 = vunpack.c.l.b16 %v3737
  %v3914 = vunpack.c.l.b16 %v3738
  %v3915 = vunpack.c.l.b16 %v3739
  %v3916 = vunpack.c.l.b16 %v3740
  %v3917 = vpack.c.b16 %v3886, %v3885
  %v3918 = vpack.c.b16 %v3888, %v3887
  %v3919 = vpack.c.b16 %v3890, %v3889
  %v3920 = vpack.c.b16 %v3892, %v3891
  %v3921 = vpack.c.b16 %v3894, %v3893
  %v3922 = vpack.c.b16 %v3896, %v3895
  %v3923 = vpack.c.b16 %v3898, %v3897
  %v3924 = vpack.c.b16 %v3900, %v3899
  %v3925 = vpack.c.b16 %v3902, %v3901
  %v3926 = vpack.c.b16 %v3904, %v3903
  %v3927 = vpack.c.b16 %v3906, %v3905
  %v3928 = vpack.c.b16 %v3908, %v3907
  %v3929 = vpack.c.b16 %v3910, %v3909
  %v3930 = vpack.c.b16 %v3912, %v3911
  %v3931 = vpack.c.b16 %v3914, %v3913
  %v3932 = vpack.c.b16 %v3916, %v3915
  %3949 = vmatpush.bf16.msra.mxu0 %v3924
  %3950 = vmatpush.bf16.msra.mxu0 %v3923
  %3951 = vmatpush.bf16.msra.mxu0 %v3922
  %3952 = vmatpush.bf16.msra.mxu0 %v3921
  %3953 = vmatpush.bf16.msra.mxu0 %v3920
  %3954 = vmatpush.bf16.msra.mxu0 %v3919
  %3955 = vmatpush.bf16.msra.mxu0 %v3918
  %3956 = vmatpush.bf16.msra.mxu0 %v3917
  %3957 = vmatmul.bf16.gmra.mxu0 %v3821
  %v3958 = vpop.f32.mrf.mxu0
  %v3959 = vadd.f32 0.0, %v3958
  %v3960 = vpop.f32.mrf.mxu0
  %v3961 = vadd.f32 0.0, %v3960
  %3962 = vmatmul.bf16.gmra.mxu0 %v3823
  %v3963 = vpop.f32.mrf.mxu0
  %v3964 = vadd.f32 0.0, %v3963
  %v3965 = vpop.f32.mrf.mxu0
  %v3966 = vadd.f32 0.0, %v3965
  %3967 = vmatmul.bf16.gmra.mxu0 %v3825
  %v3968 = vpop.f32.mrf.mxu0
  %v3969 = vadd.f32 0.0, %v3968
  %v3970 = vpop.f32.mrf.mxu0
  %v3971 = vadd.f32 0.0, %v3970
  %3972 = vmatmul.bf16.gmra.mxu0 %v3827
  %v3973 = vpop.f32.mrf.mxu0
  %v3974 = vadd.f32 0.0, %v3973
  %v3975 = vpop.f32.mrf.mxu0
  %v3976 = vadd.f32 0.0, %v3975
  %3977 = vmatmul.bf16.gmra.mxu0 %v3829
  %v3978 = vpop.f32.mrf.mxu0
  %v3979 = vadd.f32 0.0, %v3978
  %v3980 = vpop.f32.mrf.mxu0
  %v3981 = vadd.f32 0.0, %v3980
  %3982 = vmatmul.bf16.gmra.mxu0 %v3831
  %v3983 = vpop.f32.mrf.mxu0
  %v3984 = vadd.f32 0.0, %v3983
  %v3985 = vpop.f32.mrf.mxu0
  %v3986 = vadd.f32 0.0, %v3985
  %3987 = vmatmul.bf16.gmra.mxu0 %v3833
  %v3988 = vpop.f32.mrf.mxu0
  %v3989 = vadd.f32 0.0, %v3988
  %v3990 = vpop.f32.mrf.mxu0
  %v3991 = vadd.f32 0.0, %v3990
  %3992 = vmatmul.bf16.gmra.mxu0 %v3835
  %v3993 = vpop.f32.mrf.mxu0
  %v3994 = vadd.f32 0.0, %v3993
  %v3995 = vpop.f32.mrf.mxu0
  %v3996 = vadd.f32 0.0, %v3995
  %3997 = vdwg.mxu0
  %3998 = vmatpush.bf16.msra.mxu0 %v3932
  %3999 = vmatpush.bf16.msra.mxu0 %v3931
  %4000 = vmatpush.bf16.msra.mxu0 %v3930
  %4001 = vmatpush.bf16.msra.mxu0 %v3929
  %4002 = vmatpush.bf16.msra.mxu0 %v3928
  %4003 = vmatpush.bf16.msra.mxu0 %v3927
  %4004 = vmatpush.bf16.msra.mxu0 %v3926
  %4005 = vmatpush.bf16.msra.mxu0 %v3925
  %4006 = vmatmul.bf16.gmra.mxu0 %v3822
  %v4007 = vpop.f32.mrf.mxu0
  %v4008 = vadd.f32 %v3959, %v4007
  %v4009 = vpop.f32.mrf.mxu0
  %v4010 = vadd.f32 %v3961, %v4009
  %4011 = vmatmul.bf16.gmra.mxu0 %v3824
  %v4012 = vpop.f32.mrf.mxu0
  %v4013 = vadd.f32 %v3964, %v4012
  %v4014 = vpop.f32.mrf.mxu0
  %v4015 = vadd.f32 %v3966, %v4014
  %4016 = vmatmul.bf16.gmra.mxu0 %v3826
  %v4017 = vpop.f32.mrf.mxu0
  %v4018 = vadd.f32 %v3969, %v4017
  %v4019 = vpop.f32.mrf.mxu0
  %v4020 = vadd.f32 %v3971, %v4019
  %4021 = vmatmul.bf16.gmra.mxu0 %v3828
  %v4022 = vpop.f32.mrf.mxu0
  %v4023 = vadd.f32 %v3974, %v4022
  %v4024 = vpop.f32.mrf.mxu0
  %v4025 = vadd.f32 %v3976, %v4024
  %4026 = vmatmul.bf16.gmra.mxu0 %v3830
  %v4027 = vpop.f32.mrf.mxu0
  %v4028 = vadd.f32 %v3979, %v4027
  %v4029 = vpop.f32.mrf.mxu0
  %v4030 = vadd.f32 %v3981, %v4029
  %4031 = vmatmul.bf16.gmra.mxu0 %v3832
  %v4032 = vpop.f32.mrf.mxu0
  %v4033 = vadd.f32 %v3984, %v4032
  %v4034 = vpop.f32.mrf.mxu0
  %v4035 = vadd.f32 %v3986, %v4034
  %4036 = vmatmul.bf16.gmra.mxu0 %v3834
  %v4037 = vpop.f32.mrf.mxu0
  %v4038 = vadd.f32 %v3989, %v4037
  %v4039 = vpop.f32.mrf.mxu0
  %v4040 = vadd.f32 %v3991, %v4039
  %4041 = vmatmul.bf16.gmra.mxu0 %v3836
  %v4042 = vpop.f32.mrf.mxu0
  %v4043 = vadd.f32 %v3994, %v4042
  %v4044 = vpop.f32.mrf.mxu0
  %v4045 = vadd.f32 %v3996, %v4044
  %4046 = vdwg.mxu0
  %4048 = vset.pattern.permute.xlu0 0
  %4049 = vperm.xlu0 %4048, %v3741
  %v4050 = vpop.permute.xlu0 %4049
  %4053 = vset.pattern.permute.xlu0 0
  %4054 = vperm.xlu0 %4053, %v3742
  %v4055 = vpop.permute.xlu0 %4054
  %4058 = vset.pattern.permute.xlu0 0
  %4059 = vperm.xlu0 %4058, %v3743
  %v4060 = vpop.permute.xlu0 %4059
  %4063 = vset.pattern.permute.xlu0 0
  %4064 = vperm.xlu0 %4063, %v3744
  %v4065 = vpop.permute.xlu0 %4064
  %4068 = vset.pattern.permute.xlu0 0
  %4069 = vperm.xlu0 %4068, %v3745
  %v4070 = vpop.permute.xlu0 %4069
  %4073 = vset.pattern.permute.xlu0 0
  %4074 = vperm.xlu0 %4073, %v3746
  %v4075 = vpop.permute.xlu0 %4074
  %4078 = vset.pattern.permute.xlu0 0
  %4079 = vperm.xlu0 %4078, %v3747
  %v4080 = vpop.permute.xlu0 %4079
  %4083 = vset.pattern.permute.xlu0 0
  %4084 = vperm.xlu0 %4083, %v3748
  %v4085 = vpop.permute.xlu0 %4084
  %4088 = vset.pattern.permute.xlu0 0
  %4089 = vperm.xlu0 %4088, %v3749
  %v4090 = vpop.permute.xlu0 %4089
  %4093 = vset.pattern.permute.xlu0 0
  %4094 = vperm.xlu0 %4093, %v3750
  %v4095 = vpop.permute.xlu0 %4094
  %4098 = vset.pattern.permute.xlu0 0
  %4099 = vperm.xlu0 %4098, %v3751
  %v4100 = vpop.permute.xlu0 %4099
  %4103 = vset.pattern.permute.xlu0 0
  %4104 = vperm.xlu0 %4103, %v3752
  %v4105 = vpop.permute.xlu0 %4104
  %4108 = vset.pattern.permute.xlu0 0
  %4109 = vperm.xlu0 %4108, %v3753
  %v4110 = vpop.permute.xlu0 %4109
  %4113 = vset.pattern.permute.xlu0 0
  %4114 = vperm.xlu0 %4113, %v3754
  %v4115 = vpop.permute.xlu0 %4114
  %4118 = vset.pattern.permute.xlu0 0
  %4119 = vperm.xlu0 %4118, %v3755
  %v4120 = vpop.permute.xlu0 %4119
  %4123 = vset.pattern.permute.xlu0 0
  %4124 = vperm.xlu0 %4123, %v3756
  %v4125 = vpop.permute.xlu0 %4124
  %v4127 = vadd.f32 %v4050, %v4008
  %v4128 = vadd.f32 %v4055, %v4010
  %v4129 = vadd.f32 %v4060, %v4013
  %v4130 = vadd.f32 %v4065, %v4015
  %v4131 = vadd.f32 %v4070, %v4018
  %v4132 = vadd.f32 %v4075, %v4020
  %v4133 = vadd.f32 %v4080, %v4023
  %v4134 = vadd.f32 %v4085, %v4025
  %v4135 = vadd.f32 %v4090, %v4028
  %v4136 = vadd.f32 %v4095, %v4030
  %v4137 = vadd.f32 %v4100, %v4033
  %v4138 = vadd.f32 %v4105, %v4035
  %v4139 = vadd.f32 %v4110, %v4038
  %v4140 = vadd.f32 %v4115, %v4040
  %v4141 = vadd.f32 %v4120, %v4043
  %v4142 = vadd.f32 %v4125, %v4045
  %s4143 = scalar_lea.vmem %s35, 128
  %v4144 = vld [vmem:[%s4143] sm:$0xff]
  %v4145 = vld [vmem:[%s4143 + $0x8] sm:$0xff]
  %v4146 = vld [vmem:[%s4143 + $0x10] sm:$0xff]
  %v4147 = vld [vmem:[%s4143 + $0x18] sm:$0xff]
  %v4148 = vld [vmem:[%s4143 + $0x20] sm:$0xff]
  %v4149 = vld [vmem:[%s4143 + $0x28] sm:$0xff]
  %v4150 = vld [vmem:[%s4143 + $0x30] sm:$0xff]
  %v4151 = vld [vmem:[%s4143 + $0x38] sm:$0xff]
  %v4152 = vld [vmem:[%s4143 + $0x40] sm:$0xff]
  %v4153 = vld [vmem:[%s4143 + $0x48] sm:$0xff]
  %v4154 = vld [vmem:[%s4143 + $0x50] sm:$0xff]
  %v4155 = vld [vmem:[%s4143 + $0x58] sm:$0xff]
  %v4156 = vld [vmem:[%s4143 + $0x60] sm:$0xff]
  %v4157 = vld [vmem:[%s4143 + $0x68] sm:$0xff]
  %v4158 = vld [vmem:[%s4143 + $0x70] sm:$0xff]
  %v4159 = vld [vmem:[%s4143 + $0x78] sm:$0xff]
  %v4176 = vunpack.c.l.b16 %v4144
  %v4177 = vunpack.c.h.b16 %v4144
  %v4178 = vunpack.c.l.b16 %v4145
  %v4179 = vunpack.c.h.b16 %v4145
  %v4180 = vunpack.c.l.b16 %v4146
  %v4181 = vunpack.c.h.b16 %v4146
  %v4182 = vunpack.c.l.b16 %v4147
  %v4183 = vunpack.c.h.b16 %v4147
  %v4184 = vunpack.c.l.b16 %v4148
  %v4185 = vunpack.c.h.b16 %v4148
  %v4186 = vunpack.c.l.b16 %v4149
  %v4187 = vunpack.c.h.b16 %v4149
  %v4188 = vunpack.c.l.b16 %v4150
  %v4189 = vunpack.c.h.b16 %v4150
  %v4190 = vunpack.c.l.b16 %v4151
  %v4191 = vunpack.c.h.b16 %v4151
  %v4192 = vunpack.c.l.b16 %v4152
  %v4193 = vunpack.c.h.b16 %v4152
  %v4194 = vunpack.c.l.b16 %v4153
  %v4195 = vunpack.c.h.b16 %v4153
  %v4196 = vunpack.c.l.b16 %v4154
  %v4197 = vunpack.c.h.b16 %v4154
  %v4198 = vunpack.c.l.b16 %v4155
  %v4199 = vunpack.c.h.b16 %v4155
  %v4200 = vunpack.c.l.b16 %v4156
  %v4201 = vunpack.c.h.b16 %v4156
  %v4202 = vunpack.c.l.b16 %v4157
  %v4203 = vunpack.c.h.b16 %v4157
  %v4204 = vunpack.c.l.b16 %v4158
  %v4205 = vunpack.c.h.b16 %v4158
  %v4206 = vunpack.c.l.b16 %v4159
  %v4207 = vunpack.c.h.b16 %v4159
  %v4208 = vpack.c.b16 %v4178, %v4176
  %v4209 = vpack.c.b16 %v4179, %v4177
  %v4210 = vpack.c.b16 %v4182, %v4180
  %v4211 = vpack.c.b16 %v4183, %v4181
  %v4212 = vpack.c.b16 %v4186, %v4184
  %v4213 = vpack.c.b16 %v4187, %v4185
  %v4214 = vpack.c.b16 %v4190, %v4188
  %v4215 = vpack.c.b16 %v4191, %v4189
  %v4216 = vpack.c.b16 %v4194, %v4192
  %v4217 = vpack.c.b16 %v4195, %v4193
  %v4218 = vpack.c.b16 %v4198, %v4196
  %v4219 = vpack.c.b16 %v4199, %v4197
  %v4220 = vpack.c.b16 %v4202, %v4200
  %v4221 = vpack.c.b16 %v4203, %v4201
  %v4222 = vpack.c.b16 %v4206, %v4204
  %v4223 = vpack.c.b16 %v4207, %v4205
  %4240 = vrot.lane.b32.xlu0 %v3917, 120
  %v4241 = vpop.permute.xlu0 %4240
  %4242 = vrot.lane.b32.xlu0 %v3918, 120
  %v4243 = vpop.permute.xlu0 %4242
  %4244 = vrot.lane.b32.xlu0 %v3919, 120
  %v4245 = vpop.permute.xlu0 %4244
  %4246 = vrot.lane.b32.xlu0 %v3920, 120
  %v4247 = vpop.permute.xlu0 %4246
  %4248 = vrot.lane.b32.xlu0 %v3921, 120
  %v4249 = vpop.permute.xlu0 %4248
  %4250 = vrot.lane.b32.xlu0 %v3922, 120
  %v4251 = vpop.permute.xlu0 %4250
  %4252 = vrot.lane.b32.xlu0 %v3923, 120
  %v4253 = vpop.permute.xlu0 %4252
  %4254 = vrot.lane.b32.xlu0 %v3924, 120
  %v4255 = vpop.permute.xlu0 %4254
  %4256 = vrot.lane.b32.xlu0 %v3925, 120
  %v4257 = vpop.permute.xlu0 %4256
  %4258 = vrot.lane.b32.xlu0 %v3926, 120
  %v4259 = vpop.permute.xlu0 %4258
  %4260 = vrot.lane.b32.xlu0 %v3927, 120
  %v4261 = vpop.permute.xlu0 %4260
  %4262 = vrot.lane.b32.xlu0 %v3928, 120
  %v4263 = vpop.permute.xlu0 %4262
  %4264 = vrot.lane.b32.xlu0 %v3929, 120
  %v4265 = vpop.permute.xlu0 %4264
  %4266 = vrot.lane.b32.xlu0 %v3930, 120
  %v4267 = vpop.permute.xlu0 %4266
  %4268 = vrot.lane.b32.xlu0 %v3931, 120
  %v4269 = vpop.permute.xlu0 %4268
  %4270 = vrot.lane.b32.xlu0 %v3932, 120
  %v4271 = vpop.permute.xlu0 %4270
  %4288 = vmatpush.bf16.msra.mxu0 %v4255
  %4289 = vmatpush.bf16.msra.mxu0 %v4253
  %4290 = vmatpush.bf16.msra.mxu0 %v4251
  %4291 = vmatpush.bf16.msra.mxu0 %v4249
  %4292 = vmatpush.bf16.msra.mxu0 %v4247
  %4293 = vmatpush.bf16.msra.mxu0 %v4245
  %4294 = vmatpush.bf16.msra.mxu0 %v4243
  %4295 = vmatpush.bf16.msra.mxu0 %v4241
  %4296 = vmatmul.bf16.gmra.mxu0 %v4208
  %v4297 = vpop.f32.mrf.mxu0
  %v4298 = vadd.f32 0.0, %v4297
  %v4299 = vpop.f32.mrf.mxu0
  %v4300 = vadd.f32 0.0, %v4299
  %4301 = vmatmul.bf16.gmra.mxu0 %v4210
  %v4302 = vpop.f32.mrf.mxu0
  %v4303 = vadd.f32 0.0, %v4302
  %v4304 = vpop.f32.mrf.mxu0
  %v4305 = vadd.f32 0.0, %v4304
  %4306 = vmatmul.bf16.gmra.mxu0 %v4212
  %v4307 = vpop.f32.mrf.mxu0
  %v4308 = vadd.f32 0.0, %v4307
  %v4309 = vpop.f32.mrf.mxu0
  %v4310 = vadd.f32 0.0, %v4309
  %4311 = vmatmul.bf16.gmra.mxu0 %v4214
  %v4312 = vpop.f32.mrf.mxu0
  %v4313 = vadd.f32 0.0, %v4312
  %v4314 = vpop.f32.mrf.mxu0
  %v4315 = vadd.f32 0.0, %v4314
  %4316 = vmatmul.bf16.gmra.mxu0 %v4216
  %v4317 = vpop.f32.mrf.mxu0
  %v4318 = vadd.f32 0.0, %v4317
  %v4319 = vpop.f32.mrf.mxu0
  %v4320 = vadd.f32 0.0, %v4319
  %4321 = vmatmul.bf16.gmra.mxu0 %v4218
  %v4322 = vpop.f32.mrf.mxu0
  %v4323 = vadd.f32 0.0, %v4322
  %v4324 = vpop.f32.mrf.mxu0
  %v4325 = vadd.f32 0.0, %v4324
  %4326 = vmatmul.bf16.gmra.mxu0 %v4220
  %v4327 = vpop.f32.mrf.mxu0
  %v4328 = vadd.f32 0.0, %v4327
  %v4329 = vpop.f32.mrf.mxu0
  %v4330 = vadd.f32 0.0, %v4329
  %4331 = vmatmul.bf16.gmra.mxu0 %v4222
  %v4332 = vpop.f32.mrf.mxu0
  %v4333 = vadd.f32 0.0, %v4332
  %v4334 = vpop.f32.mrf.mxu0
  %v4335 = vadd.f32 0.0, %v4334
  %4336 = vdwg.mxu0
  %4337 = vmatpush.bf16.msra.mxu0 %v4271
  %4338 = vmatpush.bf16.msra.mxu0 %v4269
  %4339 = vmatpush.bf16.msra.mxu0 %v4267
  %4340 = vmatpush.bf16.msra.mxu0 %v4265
  %4341 = vmatpush.bf16.msra.mxu0 %v4263
  %4342 = vmatpush.bf16.msra.mxu0 %v4261
  %4343 = vmatpush.bf16.msra.mxu0 %v4259
  %4344 = vmatpush.bf16.msra.mxu0 %v4257
  %4345 = vmatmul.bf16.gmra.mxu0 %v4209
  %v4346 = vpop.f32.mrf.mxu0
  %v4347 = vadd.f32 %v4298, %v4346
  %v4348 = vpop.f32.mrf.mxu0
  %v4349 = vadd.f32 %v4300, %v4348
  %4350 = vmatmul.bf16.gmra.mxu0 %v4211
  %v4351 = vpop.f32.mrf.mxu0
  %v4352 = vadd.f32 %v4303, %v4351
  %v4353 = vpop.f32.mrf.mxu0
  %v4354 = vadd.f32 %v4305, %v4353
  %4355 = vmatmul.bf16.gmra.mxu0 %v4213
  %v4356 = vpop.f32.mrf.mxu0
  %v4357 = vadd.f32 %v4308, %v4356
  %v4358 = vpop.f32.mrf.mxu0
  %v4359 = vadd.f32 %v4310, %v4358
  %4360 = vmatmul.bf16.gmra.mxu0 %v4215
  %v4361 = vpop.f32.mrf.mxu0
  %v4362 = vadd.f32 %v4313, %v4361
  %v4363 = vpop.f32.mrf.mxu0
  %v4364 = vadd.f32 %v4315, %v4363
  %4365 = vmatmul.bf16.gmra.mxu0 %v4217
  %v4366 = vpop.f32.mrf.mxu0
  %v4367 = vadd.f32 %v4318, %v4366
  %v4368 = vpop.f32.mrf.mxu0
  %v4369 = vadd.f32 %v4320, %v4368
  %4370 = vmatmul.bf16.gmra.mxu0 %v4219
  %v4371 = vpop.f32.mrf.mxu0
  %v4372 = vadd.f32 %v4323, %v4371
  %v4373 = vpop.f32.mrf.mxu0
  %v4374 = vadd.f32 %v4325, %v4373
  %4375 = vmatmul.bf16.gmra.mxu0 %v4221
  %v4376 = vpop.f32.mrf.mxu0
  %v4377 = vadd.f32 %v4328, %v4376
  %v4378 = vpop.f32.mrf.mxu0
  %v4379 = vadd.f32 %v4330, %v4378
  %4380 = vmatmul.bf16.gmra.mxu0 %v4223
  %v4381 = vpop.f32.mrf.mxu0
  %v4382 = vadd.f32 %v4333, %v4381
  %v4383 = vpop.f32.mrf.mxu0
  %v4384 = vadd.f32 %v4335, %v4383
  %4385 = vdwg.mxu0
  %v4386 = vadd.f32 %v4127, %v4347
  %v4387 = vadd.f32 %v4128, %v4349
  %v4388 = vadd.f32 %v4129, %v4352
  %v4389 = vadd.f32 %v4130, %v4354
  %v4390 = vadd.f32 %v4131, %v4357
  %v4391 = vadd.f32 %v4132, %v4359
  %v4392 = vadd.f32 %v4133, %v4362
  %v4393 = vadd.f32 %v4134, %v4364
  %v4394 = vadd.f32 %v4135, %v4367
  %v4395 = vadd.f32 %v4136, %v4369
  %v4396 = vadd.f32 %v4137, %v4372
  %v4397 = vadd.f32 %v4138, %v4374
  %v4398 = vadd.f32 %v4139, %v4377
  %v4399 = vadd.f32 %v4140, %v4379
  %v4400 = vadd.f32 %v4141, %v4382
  %v4401 = vadd.f32 %v4142, %v4384
  %s4402 = scalar_lea.vmem %s35, 256
  %v4403 = vld [vmem:[%s4402] sm:$0xff]
  %v4404 = vld [vmem:[%s4402 + $0x8] sm:$0xff]
  %v4405 = vld [vmem:[%s4402 + $0x10] sm:$0xff]
  %v4406 = vld [vmem:[%s4402 + $0x18] sm:$0xff]
  %v4407 = vld [vmem:[%s4402 + $0x20] sm:$0xff]
  %v4408 = vld [vmem:[%s4402 + $0x28] sm:$0xff]
  %v4409 = vld [vmem:[%s4402 + $0x30] sm:$0xff]
  %v4410 = vld [vmem:[%s4402 + $0x38] sm:$0xff]
  %v4411 = vld [vmem:[%s4402 + $0x40] sm:$0xff]
  %v4412 = vld [vmem:[%s4402 + $0x48] sm:$0xff]
  %v4413 = vld [vmem:[%s4402 + $0x50] sm:$0xff]
  %v4414 = vld [vmem:[%s4402 + $0x58] sm:$0xff]
  %v4415 = vld [vmem:[%s4402 + $0x60] sm:$0xff]
  %v4416 = vld [vmem:[%s4402 + $0x68] sm:$0xff]
  %v4417 = vld [vmem:[%s4402 + $0x70] sm:$0xff]
  %v4418 = vld [vmem:[%s4402 + $0x78] sm:$0xff]
  %v4435 = vunpack.c.l.b16 %v4403
  %v4436 = vunpack.c.h.b16 %v4403
  %v4437 = vunpack.c.l.b16 %v4404
  %v4438 = vunpack.c.h.b16 %v4404
  %v4439 = vunpack.c.l.b16 %v4405
  %v4440 = vunpack.c.h.b16 %v4405
  %v4441 = vunpack.c.l.b16 %v4406
  %v4442 = vunpack.c.h.b16 %v4406
  %v4443 = vunpack.c.l.b16 %v4407
  %v4444 = vunpack.c.h.b16 %v4407
  %v4445 = vunpack.c.l.b16 %v4408
  %v4446 = vunpack.c.h.b16 %v4408
  %v4447 = vunpack.c.l.b16 %v4409
  %v4448 = vunpack.c.h.b16 %v4409
  %v4449 = vunpack.c.l.b16 %v4410
  %v4450 = vunpack.c.h.b16 %v4410
  %v4451 = vunpack.c.l.b16 %v4411
  %v4452 = vunpack.c.h.b16 %v4411
  %v4453 = vunpack.c.l.b16 %v4412
  %v4454 = vunpack.c.h.b16 %v4412
  %v4455 = vunpack.c.l.b16 %v4413
  %v4456 = vunpack.c.h.b16 %v4413
  %v4457 = vunpack.c.l.b16 %v4414
  %v4458 = vunpack.c.h.b16 %v4414
  %v4459 = vunpack.c.l.b16 %v4415
  %v4460 = vunpack.c.h.b16 %v4415
  %v4461 = vunpack.c.l.b16 %v4416
  %v4462 = vunpack.c.h.b16 %v4416
  %v4463 = vunpack.c.l.b16 %v4417
  %v4464 = vunpack.c.h.b16 %v4417
  %v4465 = vunpack.c.l.b16 %v4418
  %v4466 = vunpack.c.h.b16 %v4418
  %v4467 = vpack.c.b16 %v4437, %v4435
  %v4468 = vpack.c.b16 %v4438, %v4436
  %v4469 = vpack.c.b16 %v4441, %v4439
  %v4470 = vpack.c.b16 %v4442, %v4440
  %v4471 = vpack.c.b16 %v4445, %v4443
  %v4472 = vpack.c.b16 %v4446, %v4444
  %v4473 = vpack.c.b16 %v4449, %v4447
  %v4474 = vpack.c.b16 %v4450, %v4448
  %v4475 = vpack.c.b16 %v4453, %v4451
  %v4476 = vpack.c.b16 %v4454, %v4452
  %v4477 = vpack.c.b16 %v4457, %v4455
  %v4478 = vpack.c.b16 %v4458, %v4456
  %v4479 = vpack.c.b16 %v4461, %v4459
  %v4480 = vpack.c.b16 %v4462, %v4460
  %v4481 = vpack.c.b16 %v4465, %v4463
  %v4482 = vpack.c.b16 %v4466, %v4464
  %4499 = vrot.lane.b32.xlu0 %v3917, 112
  %v4500 = vpop.permute.xlu0 %4499
  %4501 = vrot.lane.b32.xlu0 %v3918, 112
  %v4502 = vpop.permute.xlu0 %4501
  %4503 = vrot.lane.b32.xlu0 %v3919, 112
  %v4504 = vpop.permute.xlu0 %4503
  %4505 = vrot.lane.b32.xlu0 %v3920, 112
  %v4506 = vpop.permute.xlu0 %4505
  %4507 = vrot.lane.b32.xlu0 %v3921, 112
  %v4508 = vpop.permute.xlu0 %4507
  %4509 = vrot.lane.b32.xlu0 %v3922, 112
  %v4510 = vpop.permute.xlu0 %4509
  %4511 = vrot.lane.b32.xlu0 %v3923, 112
  %v4512 = vpop.permute.xlu0 %4511
  %4513 = vrot.lane.b32.xlu0 %v3924, 112
  %v4514 = vpop.permute.xlu0 %4513
  %4515 = vrot.lane.b32.xlu0 %v3925, 112
  %v4516 = vpop.permute.xlu0 %4515
  %4517 = vrot.lane.b32.xlu0 %v3926, 112
  %v4518 = vpop.permute.xlu0 %4517
  %4519 = vrot.lane.b32.xlu0 %v3927, 112
  %v4520 = vpop.permute.xlu0 %4519
  %4521 = vrot.lane.b32.xlu0 %v3928, 112
  %v4522 = vpop.permute.xlu0 %4521
  %4523 = vrot.lane.b32.xlu0 %v3929, 112
  %v4524 = vpop.permute.xlu0 %4523
  %4525 = vrot.lane.b32.xlu0 %v3930, 112
  %v4526 = vpop.permute.xlu0 %4525
  %4527 = vrot.lane.b32.xlu0 %v3931, 112
  %v4528 = vpop.permute.xlu0 %4527
  %4529 = vrot.lane.b32.xlu0 %v3932, 112
  %v4530 = vpop.permute.xlu0 %4529
  %4547 = vmatpush.bf16.msra.mxu0 %v4514
  %4548 = vmatpush.bf16.msra.mxu0 %v4512
  %4549 = vmatpush.bf16.msra.mxu0 %v4510
  %4550 = vmatpush.bf16.msra.mxu0 %v4508
  %4551 = vmatpush.bf16.msra.mxu0 %v4506
  %4552 = vmatpush.bf16.msra.mxu0 %v4504
  %4553 = vmatpush.bf16.msra.mxu0 %v4502
  %4554 = vmatpush.bf16.msra.mxu0 %v4500
  %4555 = vmatmul.bf16.gmra.mxu0 %v4467
  %v4556 = vpop.f32.mrf.mxu0
  %v4557 = vadd.f32 0.0, %v4556
  %v4558 = vpop.f32.mrf.mxu0
  %v4559 = vadd.f32 0.0, %v4558
  %4560 = vmatmul.bf16.gmra.mxu0 %v4469
  %v4561 = vpop.f32.mrf.mxu0
  %v4562 = vadd.f32 0.0, %v4561
  %v4563 = vpop.f32.mrf.mxu0
  %v4564 = vadd.f32 0.0, %v4563
  %4565 = vmatmul.bf16.gmra.mxu0 %v4471
  %v4566 = vpop.f32.mrf.mxu0
  %v4567 = vadd.f32 0.0, %v4566
  %v4568 = vpop.f32.mrf.mxu0
  %v4569 = vadd.f32 0.0, %v4568
  %4570 = vmatmul.bf16.gmra.mxu0 %v4473
  %v4571 = vpop.f32.mrf.mxu0
  %v4572 = vadd.f32 0.0, %v4571
  %v4573 = vpop.f32.mrf.mxu0
  %v4574 = vadd.f32 0.0, %v4573
  %4575 = vmatmul.bf16.gmra.mxu0 %v4475
  %v4576 = vpop.f32.mrf.mxu0
  %v4577 = vadd.f32 0.0, %v4576
  %v4578 = vpop.f32.mrf.mxu0
  %v4579 = vadd.f32 0.0, %v4578
  %4580 = vmatmul.bf16.gmra.mxu0 %v4477
  %v4581 = vpop.f32.mrf.mxu0
  %v4582 = vadd.f32 0.0, %v4581
  %v4583 = vpop.f32.mrf.mxu0
  %v4584 = vadd.f32 0.0, %v4583
  %4585 = vmatmul.bf16.gmra.mxu0 %v4479
  %v4586 = vpop.f32.mrf.mxu0
  %v4587 = vadd.f32 0.0, %v4586
  %v4588 = vpop.f32.mrf.mxu0
  %v4589 = vadd.f32 0.0, %v4588
  %4590 = vmatmul.bf16.gmra.mxu0 %v4481
  %v4591 = vpop.f32.mrf.mxu0
  %v4592 = vadd.f32 0.0, %v4591
  %v4593 = vpop.f32.mrf.mxu0
  %v4594 = vadd.f32 0.0, %v4593
  %4595 = vdwg.mxu0
  %4596 = vmatpush.bf16.msra.mxu0 %v4530
  %4597 = vmatpush.bf16.msra.mxu0 %v4528
  %4598 = vmatpush.bf16.msra.mxu0 %v4526
  %4599 = vmatpush.bf16.msra.mxu0 %v4524
  %4600 = vmatpush.bf16.msra.mxu0 %v4522
  %4601 = vmatpush.bf16.msra.mxu0 %v4520
  %4602 = vmatpush.bf16.msra.mxu0 %v4518
  %4603 = vmatpush.bf16.msra.mxu0 %v4516
  %4604 = vmatmul.bf16.gmra.mxu0 %v4468
  %v4605 = vpop.f32.mrf.mxu0
  %v4606 = vadd.f32 %v4557, %v4605
  %v4607 = vpop.f32.mrf.mxu0
  %v4608 = vadd.f32 %v4559, %v4607
  %4609 = vmatmul.bf16.gmra.mxu0 %v4470
  %v4610 = vpop.f32.mrf.mxu0
  %v4611 = vadd.f32 %v4562, %v4610
  %v4612 = vpop.f32.mrf.mxu0
  %v4613 = vadd.f32 %v4564, %v4612
  %4614 = vmatmul.bf16.gmra.mxu0 %v4472
  %v4615 = vpop.f32.mrf.mxu0
  %v4616 = vadd.f32 %v4567, %v4615
  %v4617 = vpop.f32.mrf.mxu0
  %v4618 = vadd.f32 %v4569, %v4617
  %4619 = vmatmul.bf16.gmra.mxu0 %v4474
  %v4620 = vpop.f32.mrf.mxu0
  %v4621 = vadd.f32 %v4572, %v4620
  %v4622 = vpop.f32.mrf.mxu0
  %v4623 = vadd.f32 %v4574, %v4622
  %4624 = vmatmul.bf16.gmra.mxu0 %v4476
  %v4625 = vpop.f32.mrf.mxu0
  %v4626 = vadd.f32 %v4577, %v4625
  %v4627 = vpop.f32.mrf.mxu0
  %v4628 = vadd.f32 %v4579, %v4627
  %4629 = vmatmul.bf16.gmra.mxu0 %v4478
  %v4630 = vpop.f32.mrf.mxu0
  %v4631 = vadd.f32 %v4582, %v4630
  %v4632 = vpop.f32.mrf.mxu0
  %v4633 = vadd.f32 %v4584, %v4632
  %4634 = vmatmul.bf16.gmra.mxu0 %v4480
  %v4635 = vpop.f32.mrf.mxu0
  %v4636 = vadd.f32 %v4587, %v4635
  %v4637 = vpop.f32.mrf.mxu0
  %v4638 = vadd.f32 %v4589, %v4637
  %4639 = vmatmul.bf16.gmra.mxu0 %v4482
  %v4640 = vpop.f32.mrf.mxu0
  %v4641 = vadd.f32 %v4592, %v4640
  %v4642 = vpop.f32.mrf.mxu0
  %v4643 = vadd.f32 %v4594, %v4642
  %4644 = vdwg.mxu0
  %v4645 = vadd.f32 %v4386, %v4606
  %v4646 = vadd.f32 %v4387, %v4608
  %v4647 = vadd.f32 %v4388, %v4611
  %v4648 = vadd.f32 %v4389, %v4613
  %v4649 = vadd.f32 %v4390, %v4616
  %v4650 = vadd.f32 %v4391, %v4618
  %v4651 = vadd.f32 %v4392, %v4621
  %v4652 = vadd.f32 %v4393, %v4623
  %v4653 = vadd.f32 %v4394, %v4626
  %v4654 = vadd.f32 %v4395, %v4628
  %v4655 = vadd.f32 %v4396, %v4631
  %v4656 = vadd.f32 %v4397, %v4633
  %v4657 = vadd.f32 %v4398, %v4636
  %v4658 = vadd.f32 %v4399, %v4638
  %v4659 = vadd.f32 %v4400, %v4641
  %v4660 = vadd.f32 %v4401, %v4643
  %s4661 = scalar_lea.vmem %s35, 384
  %v4662 = vld [vmem:[%s4661] sm:$0xff]
  %v4663 = vld [vmem:[%s4661 + $0x8] sm:$0xff]
  %v4664 = vld [vmem:[%s4661 + $0x10] sm:$0xff]
  %v4665 = vld [vmem:[%s4661 + $0x18] sm:$0xff]
  %v4666 = vld [vmem:[%s4661 + $0x20] sm:$0xff]
  %v4667 = vld [vmem:[%s4661 + $0x28] sm:$0xff]
  %v4668 = vld [vmem:[%s4661 + $0x30] sm:$0xff]
  %v4669 = vld [vmem:[%s4661 + $0x38] sm:$0xff]
  %v4670 = vld [vmem:[%s4661 + $0x40] sm:$0xff]
  %v4671 = vld [vmem:[%s4661 + $0x48] sm:$0xff]
  %v4672 = vld [vmem:[%s4661 + $0x50] sm:$0xff]
  %v4673 = vld [vmem:[%s4661 + $0x58] sm:$0xff]
  %v4674 = vld [vmem:[%s4661 + $0x60] sm:$0xff]
  %v4675 = vld [vmem:[%s4661 + $0x68] sm:$0xff]
  %v4676 = vld [vmem:[%s4661 + $0x70] sm:$0xff]
  %v4677 = vld [vmem:[%s4661 + $0x78] sm:$0xff]
  %v4694 = vunpack.c.l.b16 %v4662
  %v4695 = vunpack.c.h.b16 %v4662
  %v4696 = vunpack.c.l.b16 %v4663
  %v4697 = vunpack.c.h.b16 %v4663
  %v4698 = vunpack.c.l.b16 %v4664
  %v4699 = vunpack.c.h.b16 %v4664
  %v4700 = vunpack.c.l.b16 %v4665
  %v4701 = vunpack.c.h.b16 %v4665
  %v4702 = vunpack.c.l.b16 %v4666
  %v4703 = vunpack.c.h.b16 %v4666
  %v4704 = vunpack.c.l.b16 %v4667
  %v4705 = vunpack.c.h.b16 %v4667
  %v4706 = vunpack.c.l.b16 %v4668
  %v4707 = vunpack.c.h.b16 %v4668
  %v4708 = vunpack.c.l.b16 %v4669
  %v4709 = vunpack.c.h.b16 %v4669
  %v4710 = vunpack.c.l.b16 %v4670
  %v4711 = vunpack.c.h.b16 %v4670
  %v4712 = vunpack.c.l.b16 %v4671
  %v4713 = vunpack.c.h.b16 %v4671
  %v4714 = vunpack.c.l.b16 %v4672
  %v4715 = vunpack.c.h.b16 %v4672
  %v4716 = vunpack.c.l.b16 %v4673
  %v4717 = vunpack.c.h.b16 %v4673
  %v4718 = vunpack.c.l.b16 %v4674
  %v4719 = vunpack.c.h.b16 %v4674
  %v4720 = vunpack.c.l.b16 %v4675
  %v4721 = vunpack.c.h.b16 %v4675
  %v4722 = vunpack.c.l.b16 %v4676
  %v4723 = vunpack.c.h.b16 %v4676
  %v4724 = vunpack.c.l.b16 %v4677
  %v4725 = vunpack.c.h.b16 %v4677
  %v4726 = vpack.c.b16 %v4696, %v4694
  %v4727 = vpack.c.b16 %v4697, %v4695
  %v4728 = vpack.c.b16 %v4700, %v4698
  %v4729 = vpack.c.b16 %v4701, %v4699
  %v4730 = vpack.c.b16 %v4704, %v4702
  %v4731 = vpack.c.b16 %v4705, %v4703
  %v4732 = vpack.c.b16 %v4708, %v4706
  %v4733 = vpack.c.b16 %v4709, %v4707
  %v4734 = vpack.c.b16 %v4712, %v4710
  %v4735 = vpack.c.b16 %v4713, %v4711
  %v4736 = vpack.c.b16 %v4716, %v4714
  %v4737 = vpack.c.b16 %v4717, %v4715
  %v4738 = vpack.c.b16 %v4720, %v4718
  %v4739 = vpack.c.b16 %v4721, %v4719
  %v4740 = vpack.c.b16 %v4724, %v4722
  %v4741 = vpack.c.b16 %v4725, %v4723
  %4758 = vrot.lane.b32.xlu0 %v3917, 104
  %v4759 = vpop.permute.xlu0 %4758
  %4760 = vrot.lane.b32.xlu0 %v3918, 104
  %v4761 = vpop.permute.xlu0 %4760
  %4762 = vrot.lane.b32.xlu0 %v3919, 104
  %v4763 = vpop.permute.xlu0 %4762
  %4764 = vrot.lane.b32.xlu0 %v3920, 104
  %v4765 = vpop.permute.xlu0 %4764
  %4766 = vrot.lane.b32.xlu0 %v3921, 104
  %v4767 = vpop.permute.xlu0 %4766
  %4768 = vrot.lane.b32.xlu0 %v3922, 104
  %v4769 = vpop.permute.xlu0 %4768
  %4770 = vrot.lane.b32.xlu0 %v3923, 104
  %v4771 = vpop.permute.xlu0 %4770
  %4772 = vrot.lane.b32.xlu0 %v3924, 104
  %v4773 = vpop.permute.xlu0 %4772
  %4774 = vrot.lane.b32.xlu0 %v3925, 104
  %v4775 = vpop.permute.xlu0 %4774
  %4776 = vrot.lane.b32.xlu0 %v3926, 104
  %v4777 = vpop.permute.xlu0 %4776
  %4778 = vrot.lane.b32.xlu0 %v3927, 104
  %v4779 = vpop.permute.xlu0 %4778
  %4780 = vrot.lane.b32.xlu0 %v3928, 104
  %v4781 = vpop.permute.xlu0 %4780
  %4782 = vrot.lane.b32.xlu0 %v3929, 104
  %v4783 = vpop.permute.xlu0 %4782
  %4784 = vrot.lane.b32.xlu0 %v3930, 104
  %v4785 = vpop.permute.xlu0 %4784
  %4786 = vrot.lane.b32.xlu0 %v3931, 104
  %v4787 = vpop.permute.xlu0 %4786
  %4788 = vrot.lane.b32.xlu0 %v3932, 104
  %v4789 = vpop.permute.xlu0 %4788
  %4806 = vmatpush.bf16.msra.mxu0 %v4773
  %4807 = vmatpush.bf16.msra.mxu0 %v4771
  %4808 = vmatpush.bf16.msra.mxu0 %v4769
  %4809 = vmatpush.bf16.msra.mxu0 %v4767
  %4810 = vmatpush.bf16.msra.mxu0 %v4765
  %4811 = vmatpush.bf16.msra.mxu0 %v4763
  %4812 = vmatpush.bf16.msra.mxu0 %v4761
  %4813 = vmatpush.bf16.msra.mxu0 %v4759
  %4814 = vmatmul.bf16.gmra.mxu0 %v4726
  %v4815 = vpop.f32.mrf.mxu0
  %v4816 = vadd.f32 0.0, %v4815
  %v4817 = vpop.f32.mrf.mxu0
  %v4818 = vadd.f32 0.0, %v4817
  %4819 = vmatmul.bf16.gmra.mxu0 %v4728
  %v4820 = vpop.f32.mrf.mxu0
  %v4821 = vadd.f32 0.0, %v4820
  %v4822 = vpop.f32.mrf.mxu0
  %v4823 = vadd.f32 0.0, %v4822
  %4824 = vmatmul.bf16.gmra.mxu0 %v4730
  %v4825 = vpop.f32.mrf.mxu0
  %v4826 = vadd.f32 0.0, %v4825
  %v4827 = vpop.f32.mrf.mxu0
  %v4828 = vadd.f32 0.0, %v4827
  %4829 = vmatmul.bf16.gmra.mxu0 %v4732
  %v4830 = vpop.f32.mrf.mxu0
  %v4831 = vadd.f32 0.0, %v4830
  %v4832 = vpop.f32.mrf.mxu0
  %v4833 = vadd.f32 0.0, %v4832
  %4834 = vmatmul.bf16.gmra.mxu0 %v4734
  %v4835 = vpop.f32.mrf.mxu0
  %v4836 = vadd.f32 0.0, %v4835
  %v4837 = vpop.f32.mrf.mxu0
  %v4838 = vadd.f32 0.0, %v4837
  %4839 = vmatmul.bf16.gmra.mxu0 %v4736
  %v4840 = vpop.f32.mrf.mxu0
  %v4841 = vadd.f32 0.0, %v4840
  %v4842 = vpop.f32.mrf.mxu0
  %v4843 = vadd.f32 0.0, %v4842
  %4844 = vmatmul.bf16.gmra.mxu0 %v4738
  %v4845 = vpop.f32.mrf.mxu0
  %v4846 = vadd.f32 0.0, %v4845
  %v4847 = vpop.f32.mrf.mxu0
  %v4848 = vadd.f32 0.0, %v4847
  %4849 = vmatmul.bf16.gmra.mxu0 %v4740
  %v4850 = vpop.f32.mrf.mxu0
  %v4851 = vadd.f32 0.0, %v4850
  %v4852 = vpop.f32.mrf.mxu0
  %v4853 = vadd.f32 0.0, %v4852
  %4854 = vdwg.mxu0
  %4855 = vmatpush.bf16.msra.mxu0 %v4789
  %4856 = vmatpush.bf16.msra.mxu0 %v4787
  %4857 = vmatpush.bf16.msra.mxu0 %v4785
  %4858 = vmatpush.bf16.msra.mxu0 %v4783
  %4859 = vmatpush.bf16.msra.mxu0 %v4781
  %4860 = vmatpush.bf16.msra.mxu0 %v4779
  %4861 = vmatpush.bf16.msra.mxu0 %v4777
  %4862 = vmatpush.bf16.msra.mxu0 %v4775
  %4863 = vmatmul.bf16.gmra.mxu0 %v4727
  %v4864 = vpop.f32.mrf.mxu0
  %v4865 = vadd.f32 %v4816, %v4864
  %v4866 = vpop.f32.mrf.mxu0
  %v4867 = vadd.f32 %v4818, %v4866
  %4868 = vmatmul.bf16.gmra.mxu0 %v4729
  %v4869 = vpop.f32.mrf.mxu0
  %v4870 = vadd.f32 %v4821, %v4869
  %v4871 = vpop.f32.mrf.mxu0
  %v4872 = vadd.f32 %v4823, %v4871
  %4873 = vmatmul.bf16.gmra.mxu0 %v4731
  %v4874 = vpop.f32.mrf.mxu0
  %v4875 = vadd.f32 %v4826, %v4874
  %v4876 = vpop.f32.mrf.mxu0
  %v4877 = vadd.f32 %v4828, %v4876
  %4878 = vmatmul.bf16.gmra.mxu0 %v4733
  %v4879 = vpop.f32.mrf.mxu0
  %v4880 = vadd.f32 %v4831, %v4879
  %v4881 = vpop.f32.mrf.mxu0
  %v4882 = vadd.f32 %v4833, %v4881
  %4883 = vmatmul.bf16.gmra.mxu0 %v4735
  %v4884 = vpop.f32.mrf.mxu0
  %v4885 = vadd.f32 %v4836, %v4884
  %v4886 = vpop.f32.mrf.mxu0
  %v4887 = vadd.f32 %v4838, %v4886
  %4888 = vmatmul.bf16.gmra.mxu0 %v4737
  %v4889 = vpop.f32.mrf.mxu0
  %v4890 = vadd.f32 %v4841, %v4889
  %v4891 = vpop.f32.mrf.mxu0
  %v4892 = vadd.f32 %v4843, %v4891
  %4893 = vmatmul.bf16.gmra.mxu0 %v4739
  %v4894 = vpop.f32.mrf.mxu0
  %v4895 = vadd.f32 %v4846, %v4894
  %v4896 = vpop.f32.mrf.mxu0
  %v4897 = vadd.f32 %v4848, %v4896
  %4898 = vmatmul.bf16.gmra.mxu0 %v4741
  %v4899 = vpop.f32.mrf.mxu0
  %v4900 = vadd.f32 %v4851, %v4899
  %v4901 = vpop.f32.mrf.mxu0
  %v4902 = vadd.f32 %v4853, %v4901
  %4903 = vdwg.mxu0
  %v4904 = vadd.f32 %v4645, %v4865
  %v4905 = vadd.f32 %v4646, %v4867
  %v4906 = vadd.f32 %v4647, %v4870
  %v4907 = vadd.f32 %v4648, %v4872
  %v4908 = vadd.f32 %v4649, %v4875
  %v4909 = vadd.f32 %v4650, %v4877
  %v4910 = vadd.f32 %v4651, %v4880
  %v4911 = vadd.f32 %v4652, %v4882
  %v4912 = vadd.f32 %v4653, %v4885
  %v4913 = vadd.f32 %v4654, %v4887
  %v4914 = vadd.f32 %v4655, %v4890
  %v4915 = vadd.f32 %v4656, %v4892
  %v4916 = vadd.f32 %v4657, %v4895
  %v4917 = vadd.f32 %v4658, %v4897
  %v4918 = vadd.f32 %v4659, %v4900
  %v4919 = vadd.f32 %v4660, %v4902
  %v4920 = vmax.f32 %v4904, 0.0
  %v4921 = vmax.f32 %v4905, 0.0
  %v4922 = vmax.f32 %v4906, 0.0
  %v4923 = vmax.f32 %v4907, 0.0
  %v4924 = vmax.f32 %v4908, 0.0
  %v4925 = vmax.f32 %v4909, 0.0
  %v4926 = vmax.f32 %v4910, 0.0
  %v4927 = vmax.f32 %v4911, 0.0
  %v4928 = vmax.f32 %v4912, 0.0
  %v4929 = vmax.f32 %v4913, 0.0
  %v4930 = vmax.f32 %v4914, 0.0
  %v4931 = vmax.f32 %v4915, 0.0
  %v4932 = vmax.f32 %v4916, 0.0
  %v4933 = vmax.f32 %v4917, 0.0
  %v4934 = vmax.f32 %v4918, 0.0
  %v4935 = vmax.f32 %v4919, 0.0
  %v4936 = vpack.c.bf16 %v4921, %v4920
  %v4937 = vpack.c.bf16 %v4923, %v4922
  %v4938 = vpack.c.bf16 %v4925, %v4924
  %v4939 = vpack.c.bf16 %v4927, %v4926
  %v4940 = vpack.c.bf16 %v4929, %v4928
  %v4941 = vpack.c.bf16 %v4931, %v4930
  %v4942 = vpack.c.bf16 %v4933, %v4932
  %v4943 = vpack.c.bf16 %v4935, %v4934
  %v4944 = vld [vmem:[%s39] sm:$0xf]
  %vm4945 = vcmask 64512
  %v4947 = vsel %vm4945, %v4936, 0
  %v4950 = vsel %vm4945, %v4937, 0
  %v4953 = vsel %vm4945, %v4938, 0
  %v4956 = vsel %vm4945, %v4939, 0
  %v4959 = vsel %vm4945, %v4940, 0
  %v4962 = vsel %vm4945, %v4941, 0
  %v4965 = vsel %vm4945, %v4942, 0
  %v4968 = vsel %vm4945, %v4943, 0
  %vm4970 = vcmask 1043456
  %v4972 = vsel %vm4970, %v4944, 0
  %4974 = vmatpush.bf16.msra.mxu0 0
  %4975 = vmatpush.bf16.msra.mxu0 0
  %4976 = vmatpush.bf16.msra.mxu0 0
  %4977 = vmatpush.bf16.msra.mxu0 0
  %4978 = vmatpush.bf16.msra.mxu0 0
  %4979 = vmatpush.bf16.msra.mxu0 0
  %4980 = vmatpush.bf16.msra.mxu0 0
  %4981 = vmatpush.bf16.msra.mxu0 %v4972
  %4982 = vmatmul.bf16.gmra.mxu0 %v4947
  %v4983 = vpop.f32.mrf.mxu0
  %v4984 = vadd.f32 0.0, %v4983
  %v4985 = vpop.f32.mrf.mxu0
  %v4986 = vadd.f32 0.0, %v4985
  %4987 = vmatmul.bf16.gmra.mxu0 %v4950
  %v4988 = vpop.f32.mrf.mxu0
  %v4989 = vadd.f32 0.0, %v4988
  %v4990 = vpop.f32.mrf.mxu0
  %v4991 = vadd.f32 0.0, %v4990
  %4992 = vmatmul.bf16.gmra.mxu0 %v4953
  %v4993 = vpop.f32.mrf.mxu0
  %v4994 = vadd.f32 0.0, %v4993
  %v4995 = vpop.f32.mrf.mxu0
  %v4996 = vadd.f32 0.0, %v4995
  %4997 = vmatmul.bf16.gmra.mxu0 %v4956
  %v4998 = vpop.f32.mrf.mxu0
  %v4999 = vadd.f32 0.0, %v4998
  %v5000 = vpop.f32.mrf.mxu0
  %v5001 = vadd.f32 0.0, %v5000
  %5002 = vmatmul.bf16.gmra.mxu0 %v4959
  %v5003 = vpop.f32.mrf.mxu0
  %v5004 = vadd.f32 0.0, %v5003
  %v5005 = vpop.f32.mrf.mxu0
  %v5006 = vadd.f32 0.0, %v5005
  %5007 = vmatmul.bf16.gmra.mxu0 %v4962
  %v5008 = vpop.f32.mrf.mxu0
  %v5009 = vadd.f32 0.0, %v5008
  %v5010 = vpop.f32.mrf.mxu0
  %v5011 = vadd.f32 0.0, %v5010
  %5012 = vmatmul.bf16.gmra.mxu0 %v4965
  %v5013 = vpop.f32.mrf.mxu0
  %v5014 = vadd.f32 0.0, %v5013
  %v5015 = vpop.f32.mrf.mxu0
  %v5016 = vadd.f32 0.0, %v5015
  %5017 = vmatmul.bf16.gmra.mxu0 %v4968
  %v5018 = vpop.f32.mrf.mxu0
  %v5019 = vadd.f32 0.0, %v5018
  %v5020 = vpop.f32.mrf.mxu0
  %v5021 = vadd.f32 0.0, %v5020
  %5022 = vdwg.mxu0
  %v5023 = vpack.c.bf16 %v4984, %v4984
  %v5024 = vpack.c.bf16 %v4986, %v4986
  %v5025 = vpack.c.bf16 %v4989, %v4989
  %v5026 = vpack.c.bf16 %v4991, %v4991
  %v5027 = vpack.c.bf16 %v4994, %v4994
  %v5028 = vpack.c.bf16 %v4996, %v4996
  %v5029 = vpack.c.bf16 %v4999, %v4999
  %v5030 = vpack.c.bf16 %v5001, %v5001
  %v5031 = vpack.c.bf16 %v5004, %v5004
  %v5032 = vpack.c.bf16 %v5006, %v5006
  %v5033 = vpack.c.bf16 %v5009, %v5009
  %v5034 = vpack.c.bf16 %v5011, %v5011
  %v5035 = vpack.c.bf16 %v5014, %v5014
  %v5036 = vpack.c.bf16 %v5016, %v5016
  %v5037 = vpack.c.bf16 %v5019, %v5019
  %v5038 = vpack.c.bf16 %v5021, %v5021
  %v5039 = vld [vmem:[%s43] sm:$0xff]
  %v5040 = vld [vmem:[%s41] sm:$0xf]
  %v5057 = vunpack.c.l.b16 %v5023
  %v5058 = vunpack.c.l.b16 %v5024
  %v5059 = vunpack.c.l.b16 %v5025
  %v5060 = vunpack.c.l.b16 %v5026
  %v5061 = vunpack.c.l.b16 %v5027
  %v5062 = vunpack.c.l.b16 %v5028
  %v5063 = vunpack.c.l.b16 %v5029
  %v5064 = vunpack.c.l.b16 %v5030
  %v5065 = vunpack.c.l.b16 %v5031
  %v5066 = vunpack.c.l.b16 %v5032
  %v5067 = vunpack.c.l.b16 %v5033
  %v5068 = vunpack.c.l.b16 %v5034
  %v5069 = vunpack.c.l.b16 %v5035
  %v5070 = vunpack.c.l.b16 %v5036
  %v5071 = vunpack.c.l.b16 %v5037
  %v5072 = vunpack.c.l.b16 %v5038
  %v5073 = vpack.c.b16 %v5058, %v5057
  %v5074 = vpack.c.b16 %v5060, %v5059
  %v5075 = vpack.c.b16 %v5062, %v5061
  %v5076 = vpack.c.b16 %v5064, %v5063
  %v5077 = vpack.c.b16 %v5066, %v5065
  %v5078 = vpack.c.b16 %v5068, %v5067
  %v5079 = vpack.c.b16 %v5070, %v5069
  %v5080 = vpack.c.b16 %v5072, %v5071
  %5089 = vmatpush.bf16.msra.mxu0 %v5080
  %5090 = vmatpush.bf16.msra.mxu0 %v5079
  %5091 = vmatpush.bf16.msra.mxu0 %v5078
  %5092 = vmatpush.bf16.msra.mxu0 %v5077
  %5093 = vmatpush.bf16.msra.mxu0 %v5076
  %5094 = vmatpush.bf16.msra.mxu0 %v5075
  %5095 = vmatpush.bf16.msra.mxu0 %v5074
  %5096 = vmatpush.bf16.msra.mxu0 %v5073
  %5097 = vmatmul.bf16.gmra.mxu0 %v5040
  %v5098 = vpop.f32.mrf.mxu0
  %v5099 = vadd.f32 0.0, %v5098
  %v5100 = vpop.f32.mrf.mxu0
  %5101 = vdwg.mxu0
  %5103 = vset.pattern.permute.xlu0 0
  %5104 = vperm.xlu0 %5103, %v5039
  %v5105 = vpop.permute.xlu0 %5104
  %v5107 = vadd.f32 %v5105, %v5099
  %s5108 = scalar_lea.vmem %s41, 4
  %v5109 = vld [vmem:[%s5108] sm:$0xf]
  %5110 = vrot.lane.b32.xlu0 %v5073, 124
  %v5111 = vpop.permute.xlu0 %5110
  %5112 = vrot.lane.b32.xlu0 %v5074, 124
  %v5113 = vpop.permute.xlu0 %5112
  %5114 = vrot.lane.b32.xlu0 %v5075, 124
  %v5115 = vpop.permute.xlu0 %5114
  %5116 = vrot.lane.b32.xlu0 %v5076, 124
  %v5117 = vpop.permute.xlu0 %5116
  %5118 = vrot.lane.b32.xlu0 %v5077, 124
  %v5119 = vpop.permute.xlu0 %5118
  %5120 = vrot.lane.b32.xlu0 %v5078, 124
  %v5121 = vpop.permute.xlu0 %5120
  %5122 = vrot.lane.b32.xlu0 %v5079, 124
  %v5123 = vpop.permute.xlu0 %5122
  %5124 = vrot.lane.b32.xlu0 %v5080, 124
  %v5125 = vpop.permute.xlu0 %5124
  %5134 = vmatpush.bf16.msra.mxu0 %v5125
  %5135 = vmatpush.bf16.msra.mxu0 %v5123
  %5136 = vmatpush.bf16.msra.mxu0 %v5121
  %5137 = vmatpush.bf16.msra.mxu0 %v5119
  %5138 = vmatpush.bf16.msra.mxu0 %v5117
  %5139 = vmatpush.bf16.msra.mxu0 %v5115
  %5140 = vmatpush.bf16.msra.mxu0 %v5113
  %5141 = vmatpush.bf16.msra.mxu0 %v5111
  %5142 = vmatmul.bf16.gmra.mxu0 %v5109
  %v5143 = vpop.f32.mrf.mxu0
  %v5144 = vadd.f32 0.0, %v5143
  %v5145 = vpop.f32.mrf.mxu0
  %5146 = vdwg.mxu0
  %v5147 = vadd.f32 %v5107, %v5144
  %s5148 = scalar_lea.vmem %s41, 8
  %v5149 = vld [vmem:[%s5148] sm:$0xf]
  %5150 = vrot.lane.b32.xlu0 %v5073, 120
  %v5151 = vpop.permute.xlu0 %5150
  %5152 = vrot.lane.b32.xlu0 %v5074, 120
  %v5153 = vpop.permute.xlu0 %5152
  %5154 = vrot.lane.b32.xlu0 %v5075, 120
  %v5155 = vpop.permute.xlu0 %5154
  %5156 = vrot.lane.b32.xlu0 %v5076, 120
  %v5157 = vpop.permute.xlu0 %5156
  %5158 = vrot.lane.b32.xlu0 %v5077, 120
  %v5159 = vpop.permute.xlu0 %5158
  %5160 = vrot.lane.b32.xlu0 %v5078, 120
  %v5161 = vpop.permute.xlu0 %5160
  %5162 = vrot.lane.b32.xlu0 %v5079, 120
  %v5163 = vpop.permute.xlu0 %5162
  %5164 = vrot.lane.b32.xlu0 %v5080, 120
  %v5165 = vpop.permute.xlu0 %5164
  %5174 = vmatpush.bf16.msra.mxu0 %v5165
  %5175 = vmatpush.bf16.msra.mxu0 %v5163
  %5176 = vmatpush.bf16.msra.mxu0 %v5161
  %5177 = vmatpush.bf16.msra.mxu0 %v5159
  %5178 = vmatpush.bf16.msra.mxu0 %v5157
  %5179 = vmatpush.bf16.msra.mxu0 %v5155
  %5180 = vmatpush.bf16.msra.mxu0 %v5153
  %5181 = vmatpush.bf16.msra.mxu0 %v5151
  %5182 = vmatmul.bf16.gmra.mxu0 %v5149
  %v5183 = vpop.f32.mrf.mxu0
  %v5184 = vadd.f32 0.0, %v5183
  %v5185 = vpop.f32.mrf.mxu0
  %5186 = vdwg.mxu0
  %v5187 = vadd.f32 %v5147, %v5184
  %s5188 = scalar_lea.vmem %s41, 12
  %v5189 = vld [vmem:[%s5188] sm:$0xf]
  %5190 = vrot.lane.b32.xlu0 %v5073, 116
  %v5191 = vpop.permute.xlu0 %5190
  %5192 = vrot.lane.b32.xlu0 %v5074, 116
  %v5193 = vpop.permute.xlu0 %5192
  %5194 = vrot.lane.b32.xlu0 %v5075, 116
  %v5195 = vpop.permute.xlu0 %5194
  %5196 = vrot.lane.b32.xlu0 %v5076, 116
  %v5197 = vpop.permute.xlu0 %5196
  %5198 = vrot.lane.b32.xlu0 %v5077, 116
  %v5199 = vpop.permute.xlu0 %5198
  %5200 = vrot.lane.b32.xlu0 %v5078, 116
  %v5201 = vpop.permute.xlu0 %5200
  %5202 = vrot.lane.b32.xlu0 %v5079, 116
  %v5203 = vpop.permute.xlu0 %5202
  %5204 = vrot.lane.b32.xlu0 %v5080, 116
  %v5205 = vpop.permute.xlu0 %5204
  %5214 = vmatpush.bf16.msra.mxu0 %v5205
  %5215 = vmatpush.bf16.msra.mxu0 %v5203
  %5216 = vmatpush.bf16.msra.mxu0 %v5201
  %5217 = vmatpush.bf16.msra.mxu0 %v5199
  %5218 = vmatpush.bf16.msra.mxu0 %v5197
  %5219 = vmatpush.bf16.msra.mxu0 %v5195
  %5220 = vmatpush.bf16.msra.mxu0 %v5193
  %5221 = vmatpush.bf16.msra.mxu0 %v5191
  %5222 = vmatmul.bf16.gmra.mxu0 %v5189
  %v5223 = vpop.f32.mrf.mxu0
  %v5224 = vadd.f32 0.0, %v5223
  %v5225 = vpop.f32.mrf.mxu0
  %5226 = vdwg.mxu0
  %v5227 = vadd.f32 %v5187, %v5224
  %v5228 = vmax.f32 %v5227, 0.0
  %v5229 = vpack.c.bf16 %v5228, %v5228
  %v5230 = vld [vmem:[%s45] sm:$0xf]
  %v5231 = vld [vmem:[%s45 + $0x4] sm:$0xf]
  %v5232 = vld [vmem:[%s47] sm:$0x1]
  %vm5233 = vcmask 31744
  %v5235 = vsel %vm5233, %v5229, 0
  %vm5237 = vcmask 1041408
  %v5239 = vsel %vm5237, %v5230, 0
  %5241 = vmatpush.bf16.msra.mxu0 0
  %5242 = vmatpush.bf16.msra.mxu0 0
  %5243 = vmatpush.bf16.msra.mxu0 0
  %5244 = vmatpush.bf16.msra.mxu0 0
  %5245 = vmatpush.bf16.msra.mxu0 0
  %5246 = vmatpush.bf16.msra.mxu0 0
  %5247 = vmatpush.bf16.msra.mxu0 0
  %5248 = vmatpush.bf16.msra.mxu0 %v5239
  %5249 = vmatmul.bf16.gmra.mxu0 %v5235
  %v5250 = vpop.f32.mrf.mxu0
  %v5251 = vadd.f32 0.0, %v5250
  %v5252 = vpop.f32.mrf.mxu0
  %5253 = vdwg.mxu0
  %v5255 = vperm.slane %v5232, 0
  %v5257 = vadd.f32 %v5255, %v5251
  %v5259 = vunpack.c.l.b16 %v5229
  %v5260 = vpack.c.b16 %v5259, %v5259
  %v5261 = vrot.slane %v5260, 1
  %v5263 = vunpack.c.l.b16 %v5230
  %v5264 = vpack.c.b16 %v5263, %v5263
  %v5265 = vrot.slane %v5264, 2
  %v5267 = vsel %vm5233, %v5261, 0
  %v5270 = vsel %vm5237, %v5265, 0
  %5272 = vmatpush.bf16.msra.mxu0 0
  %5273 = vmatpush.bf16.msra.mxu0 0
  %5274 = vmatpush.bf16.msra.mxu0 0
  %5275 = vmatpush.bf16.msra.mxu0 0
  %5276 = vmatpush.bf16.msra.mxu0 0
  %5277 = vmatpush.bf16.msra.mxu0 0
  %5278 = vmatpush.bf16.msra.mxu0 0
  %5279 = vmatpush.bf16.msra.mxu0 %v5270
  %5280 = vmatmul.bf16.gmra.mxu0 %v5267
  %v5281 = vpop.f32.mrf.mxu0
  %v5282 = vadd.f32 0.0, %v5281
  %v5283 = vpop.f32.mrf.mxu0
  %5284 = vdwg.mxu0
  %v5285 = vadd.f32 %v5257, %v5282
  %v5286 = vrot.slane %v5260, 2
  %v5288 = vsel %vm5233, %v5286, 0
  %v5291 = vsel %vm5237, %v5231, 0
  %5293 = vmatpush.bf16.msra.mxu0 0
  %5294 = vmatpush.bf16.msra.mxu0 0
  %5295 = vmatpush.bf16.msra.mxu0 0
  %5296 = vmatpush.bf16.msra.mxu0 0
  %5297 = vmatpush.bf16.msra.mxu0 0
  %5298 = vmatpush.bf16.msra.mxu0 0
  %5299 = vmatpush.bf16.msra.mxu0 0
  %5300 = vmatpush.bf16.msra.mxu0 %v5291
  %5301 = vmatmul.bf16.gmra.mxu0 %v5288
  %v5302 = vpop.f32.mrf.mxu0
  %v5303 = vadd.f32 0.0, %v5302
  %v5304 = vpop.f32.mrf.mxu0
  %5305 = vdwg.mxu0
  %v5306 = vadd.f32 %v5285, %v5303
  %v5307 = vrot.slane %v5260, 3
  %v5309 = vunpack.c.l.b16 %v5231
  %v5310 = vpack.c.b16 %v5309, %v5309
  %v5311 = vrot.slane %v5310, 2
  %v5313 = vsel %vm5233, %v5307, 0
  %v5316 = vsel %vm5237, %v5311, 0
  %5318 = vmatpush.bf16.msra.mxu0 0
  %5319 = vmatpush.bf16.msra.mxu0 0
  %5320 = vmatpush.bf16.msra.mxu0 0
  %5321 = vmatpush.bf16.msra.mxu0 0
  %5322 = vmatpush.bf16.msra.mxu0 0
  %5323 = vmatpush.bf16.msra.mxu0 0
  %5324 = vmatpush.bf16.msra.mxu0 0
  %5325 = vmatpush.bf16.msra.mxu0 %v5316
  %5326 = vmatmul.bf16.gmra.mxu0 %v5313
  %v5327 = vpop.f32.mrf.mxu0
  %v5328 = vadd.f32 0.0, %v5327
  %v5329 = vpop.f32.mrf.mxu0
  %5330 = vdwg.mxu0
  %v5331 = vadd.f32 %v5306, %v5328
  %v5332 = vpack.c.bf16 %v1221, %v1221
  %v5333 = vpack.c.bf16 %v5331, %v5331
  %v5334 = vld [vmem:[%s49] sm:$0xff]
  %v5335 = vld [vmem:[%s49 + $0x8] sm:$0xff]
  %v5336 = vld [vmem:[%s49 + $0x10] sm:$0xff]
  %v5337 = vld [vmem:[%s49 + $0x18] sm:$0xff]
  %v5338 = vld [vmem:[%s49 + $0x20] sm:$0xff]
  %v5339 = vld [vmem:[%s49 + $0x28] sm:$0xff]
  %v5340 = vld [vmem:[%s49 + $0x30] sm:$0xff]
  %v5341 = vld [vmem:[%s49 + $0x38] sm:$0xff]
  %v5342 = vld [vmem:[%s49 + $0x40] sm:$0xff]
  %v5343 = vld [vmem:[%s49 + $0x48] sm:$0xff]
  %v5344 = vld [vmem:[%s49 + $0x50] sm:$0xff]
  %v5345 = vld [vmem:[%s49 + $0x58] sm:$0xff]
  %v5346 = vld [vmem:[%s49 + $0x60] sm:$0xff]
  %v5347 = vld [vmem:[%s49 + $0x68] sm:$0xff]
  %v5348 = vld [vmem:[%s49 + $0x70] sm:$0xff]
  %v5349 = vld [vmem:[%s49 + $0x78] sm:$0xff]
  %v5350 = vld [vmem:[%s51] sm:$0xff]
  %v5351 = vld [vmem:[%s51 + $0x8] sm:$0xff]
  %v5352 = vld [vmem:[%s51 + $0x10] sm:$0xff]
  %v5353 = vld [vmem:[%s51 + $0x18] sm:$0xff]
  %v5354 = vld [vmem:[%s51 + $0x20] sm:$0xff]
  %v5355 = vld [vmem:[%s51 + $0x28] sm:$0xff]
  %v5356 = vld [vmem:[%s51 + $0x30] sm:$0xff]
  %v5357 = vld [vmem:[%s51 + $0x38] sm:$0xff]
  %v5358 = vld [vmem:[%s51 + $0x40] sm:$0xff]
  %v5359 = vld [vmem:[%s51 + $0x48] sm:$0xff]
  %v5360 = vld [vmem:[%s51 + $0x50] sm:$0xff]
  %v5361 = vld [vmem:[%s51 + $0x58] sm:$0xff]
  %v5362 = vld [vmem:[%s51 + $0x60] sm:$0xff]
  %v5363 = vld [vmem:[%s51 + $0x68] sm:$0xff]
  %v5364 = vld [vmem:[%s51 + $0x70] sm:$0xff]
  %v5365 = vld [vmem:[%s51 + $0x78] sm:$0xff]
  %v5382 = vunpack.c.l.b16 %v5350
  %v5383 = vunpack.c.h.b16 %v5350
  %v5384 = vunpack.c.l.b16 %v5351
  %v5385 = vunpack.c.h.b16 %v5351
  %v5386 = vunpack.c.l.b16 %v5352
  %v5387 = vunpack.c.h.b16 %v5352
  %v5388 = vunpack.c.l.b16 %v5353
  %v5389 = vunpack.c.h.b16 %v5353
  %v5390 = vunpack.c.l.b16 %v5354
  %v5391 = vunpack.c.h.b16 %v5354
  %v5392 = vunpack.c.l.b16 %v5355
  %v5393 = vunpack.c.h.b16 %v5355
  %v5394 = vunpack.c.l.b16 %v5356
  %v5395 = vunpack.c.h.b16 %v5356
  %v5396 = vunpack.c.l.b16 %v5357
  %v5397 = vunpack.c.h.b16 %v5357
  %v5398 = vunpack.c.l.b16 %v5358
  %v5399 = vunpack.c.h.b16 %v5358
  %v5400 = vunpack.c.l.b16 %v5359
  %v5401 = vunpack.c.h.b16 %v5359
  %v5402 = vunpack.c.l.b16 %v5360
  %v5403 = vunpack.c.h.b16 %v5360
  %v5404 = vunpack.c.l.b16 %v5361
  %v5405 = vunpack.c.h.b16 %v5361
  %v5406 = vunpack.c.l.b16 %v5362
  %v5407 = vunpack.c.h.b16 %v5362
  %v5408 = vunpack.c.l.b16 %v5363
  %v5409 = vunpack.c.h.b16 %v5363
  %v5410 = vunpack.c.l.b16 %v5364
  %v5411 = vunpack.c.h.b16 %v5364
  %v5412 = vunpack.c.l.b16 %v5365
  %v5413 = vunpack.c.h.b16 %v5365
  %v5414 = vpack.c.b16 %v5384, %v5382
  %v5415 = vpack.c.b16 %v5385, %v5383
  %v5416 = vpack.c.b16 %v5388, %v5386
  %v5417 = vpack.c.b16 %v5389, %v5387
  %v5418 = vpack.c.b16 %v5392, %v5390
  %v5419 = vpack.c.b16 %v5393, %v5391
  %v5420 = vpack.c.b16 %v5396, %v5394
  %v5421 = vpack.c.b16 %v5397, %v5395
  %v5422 = vpack.c.b16 %v5400, %v5398
  %v5423 = vpack.c.b16 %v5401, %v5399
  %v5424 = vpack.c.b16 %v5404, %v5402
  %v5425 = vpack.c.b16 %v5405, %v5403
  %v5426 = vpack.c.b16 %v5408, %v5406
  %v5427 = vpack.c.b16 %v5409, %v5407
  %v5428 = vpack.c.b16 %v5412, %v5410
  %v5429 = vpack.c.b16 %v5413, %v5411
  %5446 = vmatpush.bf16.msra.mxu0 %v5428
  %5447 = vmatpush.bf16.msra.mxu0 %v5426
  %5448 = vmatpush.bf16.msra.mxu0 %v5424
  %5449 = vmatpush.bf16.msra.mxu0 %v5422
  %5450 = vmatpush.bf16.msra.mxu0 %v5420
  %5451 = vmatpush.bf16.msra.mxu0 %v5418
  %5452 = vmatpush.bf16.msra.mxu0 %v5416
  %5453 = vmatpush.bf16.msra.mxu0 %v5414
  %5454 = vmatmul.bf16.gmra.mxu0 %v5333
  %v5455 = vpop.f32.mrf.mxu0
  %v5456 = vadd.f32 0.0, %v5455
  %v5457 = vpop.f32.mrf.mxu0
  %5458 = vdwg.mxu0
  %5459 = vmatpush.bf16.msra.mxu0 %v5429
  %5460 = vmatpush.bf16.msra.mxu0 %v5427
  %5461 = vmatpush.bf16.msra.mxu0 %v5425
  %5462 = vmatpush.bf16.msra.mxu0 %v5423
  %5463 = vmatpush.bf16.msra.mxu0 %v5421
  %5464 = vmatpush.bf16.msra.mxu0 %v5419
  %5465 = vmatpush.bf16.msra.mxu0 %v5417
  %5466 = vmatpush.bf16.msra.mxu0 %v5415
  %5467 = vmatmul.bf16.gmra.mxu0 %v5333
  %v5468 = vpop.f32.mrf.mxu0
  %v5469 = vadd.f32 0.0, %v5468
  %v5470 = vpop.f32.mrf.mxu0
  %5471 = vdwg.mxu0
  %v5488 = vunpack.c.l.b16 %v5334
  %v5489 = vunpack.c.h.b16 %v5334
  %v5490 = vunpack.c.l.b16 %v5335
  %v5491 = vunpack.c.h.b16 %v5335
  %v5492 = vunpack.c.l.b16 %v5336
  %v5493 = vunpack.c.h.b16 %v5336
  %v5494 = vunpack.c.l.b16 %v5337
  %v5495 = vunpack.c.h.b16 %v5337
  %v5496 = vunpack.c.l.b16 %v5338
  %v5497 = vunpack.c.h.b16 %v5338
  %v5498 = vunpack.c.l.b16 %v5339
  %v5499 = vunpack.c.h.b16 %v5339
  %v5500 = vunpack.c.l.b16 %v5340
  %v5501 = vunpack.c.h.b16 %v5340
  %v5502 = vunpack.c.l.b16 %v5341
  %v5503 = vunpack.c.h.b16 %v5341
  %v5504 = vunpack.c.l.b16 %v5342
  %v5505 = vunpack.c.h.b16 %v5342
  %v5506 = vunpack.c.l.b16 %v5343
  %v5507 = vunpack.c.h.b16 %v5343
  %v5508 = vunpack.c.l.b16 %v5344
  %v5509 = vunpack.c.h.b16 %v5344
  %v5510 = vunpack.c.l.b16 %v5345
  %v5511 = vunpack.c.h.b16 %v5345
  %v5512 = vunpack.c.l.b16 %v5346
  %v5513 = vunpack.c.h.b16 %v5346
  %v5514 = vunpack.c.l.b16 %v5347
  %v5515 = vunpack.c.h.b16 %v5347
  %v5516 = vunpack.c.l.b16 %v5348
  %v5517 = vunpack.c.h.b16 %v5348
  %v5518 = vunpack.c.l.b16 %v5349
  %v5519 = vunpack.c.h.b16 %v5349
  %v5520 = vpack.c.b16 %v5490, %v5488
  %v5521 = vpack.c.b16 %v5491, %v5489
  %v5522 = vpack.c.b16 %v5494, %v5492
  %v5523 = vpack.c.b16 %v5495, %v5493
  %v5524 = vpack.c.b16 %v5498, %v5496
  %v5525 = vpack.c.b16 %v5499, %v5497
  %v5526 = vpack.c.b16 %v5502, %v5500
  %v5527 = vpack.c.b16 %v5503, %v5501
  %v5528 = vpack.c.b16 %v5506, %v5504
  %v5529 = vpack.c.b16 %v5507, %v5505
  %v5530 = vpack.c.b16 %v5510, %v5508
  %v5531 = vpack.c.b16 %v5511, %v5509
  %v5532 = vpack.c.b16 %v5514, %v5512
  %v5533 = vpack.c.b16 %v5515, %v5513
  %v5534 = vpack.c.b16 %v5518, %v5516
  %v5535 = vpack.c.b16 %v5519, %v5517
  %5552 = vmatpush.bf16.msra.mxu0 %v5534
  %5553 = vmatpush.bf16.msra.mxu0 %v5532
  %5554 = vmatpush.bf16.msra.mxu0 %v5530
  %5555 = vmatpush.bf16.msra.mxu0 %v5528
  %5556 = vmatpush.bf16.msra.mxu0 %v5526
  %5557 = vmatpush.bf16.msra.mxu0 %v5524
  %5558 = vmatpush.bf16.msra.mxu0 %v5522
  %5559 = vmatpush.bf16.msra.mxu0 %v5520
  %5560 = vmatmul.bf16.gmra.mxu0 %v5332
  %v5561 = vpop.f32.mrf.mxu0
  %v5562 = vadd.f32 %v5456, %v5561
  %v5563 = vpop.f32.mrf.mxu0
  %5564 = vdwg.mxu0
  %5565 = vmatpush.bf16.msra.mxu0 %v5535
  %5566 = vmatpush.bf16.msra.mxu0 %v5533
  %5567 = vmatpush.bf16.msra.mxu0 %v5531
  %5568 = vmatpush.bf16.msra.mxu0 %v5529
  %5569 = vmatpush.bf16.msra.mxu0 %v5527
  %5570 = vmatpush.bf16.msra.mxu0 %v5525
  %5571 = vmatpush.bf16.msra.mxu0 %v5523
  %5572 = vmatpush.bf16.msra.mxu0 %v5521
  %5573 = vmatmul.bf16.gmra.mxu0 %v5332
  %v5574 = vpop.f32.mrf.mxu0
  %v5575 = vadd.f32 %v5469, %v5574
  %v5576 = vpop.f32.mrf.mxu0
  %5577 = vdwg.mxu0
  %v5578 = vld [vmem:[%s53] sm:$0x3]
  %v5580 = vperm.slane %v5578, 0
  %v5581 = vperm.slane %v5578, 1
  %v5584 = vadd.f32 %v5562, %v5580
  %v5585 = vadd.f32 %v5575, %v5581
  %v5586 = vmax.f32 %v5584, 0.0
  %v5587 = vmax.f32 %v5585, 0.0
  %v5588 = vpack.c.bf16 %v5587, %v5586
  %v5589 = vld [vmem:[%s55] sm:$0xff]
  %v5590 = vld [vmem:[%s55 + $0x8] sm:$0xff]
  %v5591 = vld [vmem:[%s55 + $0x10] sm:$0xff]
  %v5592 = vld [vmem:[%s55 + $0x18] sm:$0xff]
  %v5593 = vld [vmem:[%s55 + $0x20] sm:$0xff]
  %v5594 = vld [vmem:[%s55 + $0x28] sm:$0xff]
  %v5595 = vld [vmem:[%s55 + $0x30] sm:$0xff]
  %v5596 = vld [vmem:[%s55 + $0x38] sm:$0xff]
  %v5597 = vld [vmem:[%s55 + $0x40] sm:$0xff]
  %v5598 = vld [vmem:[%s55 + $0x48] sm:$0xff]
  %v5599 = vld [vmem:[%s55 + $0x50] sm:$0xff]
  %v5600 = vld [vmem:[%s55 + $0x58] sm:$0xff]
  %v5601 = vld [vmem:[%s55 + $0x60] sm:$0xff]
  %v5602 = vld [vmem:[%s55 + $0x68] sm:$0xff]
  %v5603 = vld [vmem:[%s55 + $0x70] sm:$0xff]
  %v5604 = vld [vmem:[%s55 + $0x78] sm:$0xff]
  %v5605 = vld [vmem:[%s57] sm:$0x3]
  %v5607 = vperm.slane %v5605, 0
  %v5608 = vperm.slane %v5605, 1
  %v5627 = vunpack.c.l.b16 %v5589
  %v5628 = vunpack.c.h.b16 %v5589
  %v5629 = vunpack.c.l.b16 %v5590
  %v5630 = vunpack.c.h.b16 %v5590
  %v5631 = vunpack.c.l.b16 %v5591
  %v5632 = vunpack.c.h.b16 %v5591
  %v5633 = vunpack.c.l.b16 %v5592
  %v5634 = vunpack.c.h.b16 %v5592
  %v5635 = vunpack.c.l.b16 %v5593
  %v5636 = vunpack.c.h.b16 %v5593
  %v5637 = vunpack.c.l.b16 %v5594
  %v5638 = vunpack.c.h.b16 %v5594
  %v5639 = vunpack.c.l.b16 %v5595
  %v5640 = vunpack.c.h.b16 %v5595
  %v5641 = vunpack.c.l.b16 %v5596
  %v5642 = vunpack.c.h.b16 %v5596
  %v5643 = vunpack.c.l.b16 %v5597
  %v5644 = vunpack.c.h.b16 %v5597
  %v5645 = vunpack.c.l.b16 %v5598
  %v5646 = vunpack.c.h.b16 %v5598
  %v5647 = vunpack.c.l.b16 %v5599
  %v5648 = vunpack.c.h.b16 %v5599
  %v5649 = vunpack.c.l.b16 %v5600
  %v5650 = vunpack.c.h.b16 %v5600
  %v5651 = vunpack.c.l.b16 %v5601
  %v5652 = vunpack.c.h.b16 %v5601
  %v5653 = vunpack.c.l.b16 %v5602
  %v5654 = vunpack.c.h.b16 %v5602
  %v5655 = vunpack.c.l.b16 %v5603
  %v5656 = vunpack.c.h.b16 %v5603
  %v5657 = vunpack.c.l.b16 %v5604
  %v5658 = vunpack.c.h.b16 %v5604
  %v5659 = vpack.c.b16 %v5629, %v5627
  %v5660 = vpack.c.b16 %v5630, %v5628
  %v5661 = vpack.c.b16 %v5633, %v5631
  %v5662 = vpack.c.b16 %v5634, %v5632
  %v5663 = vpack.c.b16 %v5637, %v5635
  %v5664 = vpack.c.b16 %v5638, %v5636
  %v5665 = vpack.c.b16 %v5641, %v5639
  %v5666 = vpack.c.b16 %v5642, %v5640
  %v5667 = vpack.c.b16 %v5645, %v5643
  %v5668 = vpack.c.b16 %v5646, %v5644
  %v5669 = vpack.c.b16 %v5649, %v5647
  %v5670 = vpack.c.b16 %v5650, %v5648
  %v5671 = vpack.c.b16 %v5653, %v5651
  %v5672 = vpack.c.b16 %v5654, %v5652
  %v5673 = vpack.c.b16 %v5657, %v5655
  %v5674 = vpack.c.b16 %v5658, %v5656
  %5691 = vmatpush.bf16.msra.mxu0 %v5673
  %5692 = vmatpush.bf16.msra.mxu0 %v5671
  %5693 = vmatpush.bf16.msra.mxu0 %v5669
  %5694 = vmatpush.bf16.msra.mxu0 %v5667
  %5695 = vmatpush.bf16.msra.mxu0 %v5665
  %5696 = vmatpush.bf16.msra.mxu0 %v5663
  %5697 = vmatpush.bf16.msra.mxu0 %v5661
  %5698 = vmatpush.bf16.msra.mxu0 %v5659
  %5699 = vmatmul.bf16.gmra.mxu0 %v5588
  %v5700 = vpop.f32.mrf.mxu0
  %v5701 = vadd.f32 %v5607, %v5700
  %v5702 = vpop.f32.mrf.mxu0
  %5703 = vdwg.mxu0
  %5704 = vmatpush.bf16.msra.mxu0 %v5674
  %5705 = vmatpush.bf16.msra.mxu0 %v5672
  %5706 = vmatpush.bf16.msra.mxu0 %v5670
  %5707 = vmatpush.bf16.msra.mxu0 %v5668
  %5708 = vmatpush.bf16.msra.mxu0 %v5666
  %5709 = vmatpush.bf16.msra.mxu0 %v5664
  %5710 = vmatpush.bf16.msra.mxu0 %v5662
  %5711 = vmatpush.bf16.msra.mxu0 %v5660
  %5712 = vmatmul.bf16.gmra.mxu0 %v5588
  %v5713 = vpop.f32.mrf.mxu0
  %v5714 = vadd.f32 %v5608, %v5713
  %v5715 = vpop.f32.mrf.mxu0
  %5716 = vdwg.mxu0
  %v5717 = vld [vmem:[%s59] sm:$0xf]
  %v5718 = vld [vmem:[%s59 + $0x4] sm:$0xf]
  %v5719 = vld [vmem:[%s59 + $0x8] sm:$0xf]
  %v5720 = vld [vmem:[%s59 + $0xc] sm:$0xf]
  %v5721 = vld [vmem:[%s59 + $0x10] sm:$0xf]
  %v5722 = vld [vmem:[%s59 + $0x14] sm:$0xf]
  %v5723 = vld [vmem:[%s59 + $0x18] sm:$0xf]
  %v5724 = vld [vmem:[%s59 + $0x1c] sm:$0xf]
  %v5725 = vld [vmem:[%s59 + $0x20] sm:$0xf]
  %v5726 = vld [vmem:[%s59 + $0x24] sm:$0xf]
  %v5727 = vld [vmem:[%s59 + $0x28] sm:$0xf]
  %v5728 = vld [vmem:[%s59 + $0x2c] sm:$0xf]
  %v5729 = vld [vmem:[%s59 + $0x30] sm:$0xf]
  %v5730 = vld [vmem:[%s59 + $0x34] sm:$0xf]
  %v5731 = vld [vmem:[%s59 + $0x38] sm:$0xf]
  %v5732 = vld [vmem:[%s59 + $0x3c] sm:$0xf]
  %v5733 = vld [vmem:[%s61] sm:$0x1]
  %v5735 = vperm.slane %v5733, 0
  %v5738 = vunpack.c.h.b16 %v5588
  %v5739 = vpack.c.b16 %v5738, %v5738
  %v5757 = vunpack.c.l.b16 %v5717
  %v5758 = vunpack.c.l.b16 %v5718
  %v5759 = vunpack.c.l.b16 %v5719
  %v5760 = vunpack.c.l.b16 %v5720
  %v5761 = vunpack.c.l.b16 %v5721
  %v5762 = vunpack.c.l.b16 %v5722
  %v5763 = vunpack.c.l.b16 %v5723
  %v5764 = vunpack.c.l.b16 %v5724
  %v5765 = vunpack.c.l.b16 %v5725
  %v5766 = vunpack.c.l.b16 %v5726
  %v5767 = vunpack.c.l.b16 %v5727
  %v5768 = vunpack.c.l.b16 %v5728
  %v5769 = vunpack.c.l.b16 %v5729
  %v5770 = vunpack.c.l.b16 %v5730
  %v5771 = vunpack.c.l.b16 %v5731
  %v5772 = vunpack.c.l.b16 %v5732
  %v5773 = vpack.c.b16 %v5758, %v5757
  %v5774 = vpack.c.b16 %v5760, %v5759
  %v5775 = vpack.c.b16 %v5762, %v5761
  %v5776 = vpack.c.b16 %v5764, %v5763
  %v5777 = vpack.c.b16 %v5766, %v5765
  %v5778 = vpack.c.b16 %v5768, %v5767
  %v5779 = vpack.c.b16 %v5770, %v5769
  %v5780 = vpack.c.b16 %v5772, %v5771
  %5789 = vmatpush.bf16.msra.mxu0 %v5780
  %5790 = vmatpush.bf16.msra.mxu0 %v5779
  %5791 = vmatpush.bf16.msra.mxu0 %v5778
  %5792 = vmatpush.bf16.msra.mxu0 %v5777
  %5793 = vmatpush.bf16.msra.mxu0 %v5776
  %5794 = vmatpush.bf16.msra.mxu0 %v5775
  %5795 = vmatpush.bf16.msra.mxu0 %v5774
  %5796 = vmatpush.bf16.msra.mxu0 %v5773
  %5797 = vmatmul.bf16.gmra.mxu0 %v5739
  %v5798 = vpop.f32.mrf.mxu0
  %v5799 = vadd.f32 %v5735, %v5798
  %v5800 = vpop.f32.mrf.mxu0
  %5801 = vdwg.mxu0
  %v5804 = vrot.slane %v5714, 6
  %v5805 = vsel %vm5237, %v5701, %v5804
  %5807 = vst [vmem:[%s63] sm:$0xf] %v5805
  %vm5808 = vcmask 517120
  %5809 = vst.msk [vmem:[%s63 + $0x4] sm:$0x3] %vm5808, %v5799
  // Predicated region
  $region126: #{forward.1} parent=0 // pred_check
    _
  $region127: #{forward.1} parent=0 // pred_check_branch
    %5811 = sbr.rel (0) target = $region129
  $region128: #{forward.1} parent=0 // pred_region
    _
  $region129: #{forward.1} parent=0 // pred_fallthru
    _
  // Predicated region
  $region130: #{forward.1} parent=0 // pred_check
    _
  $region131: #{forward.1} parent=0 // pred_check_branch
    %5813 = sbr.rel (0) target = $region133
  $region132: #{forward.1} parent=0 // pred_region
    _
  $region133: #{forward.1} parent=0 // pred_fallthru
    _

</llo_original>
